<compile_context>
chip_gen: v6e
topology: v6e:2x2x1
jax: 0.10.0
libtpu: 0.0.40
codegen_flags: <defaults>
</compile_context>

<pallas_src>
import functools

import numpy as np
import jax
import jax.numpy as jnp
from jax.experimental import pallas as pl
from jax.experimental.pallas import tpu as pltpu

CH1 = 32                      # ch1 in the torch module
NRES_F2 = 4                   # num_of_residuals_on_f2
NRES_F3 = 4                   # num_of_residuals_on_f3
NRES_F5 = 2                   # num_of_residuals_on_f5
NRES_F7 = 3                   # num_of_residuals_on_f7
NRES_F8 = 3                   # num_of_residuals_on_f8
LANES = 128                   # 4 voxels * 32 channels
PACK3D = 256                  # 8 voxels * 32 channels (256x256 MXU fill)


def _pick_tile(m, cap):
    for t in (cap, 2048, 1024, 512, 256, 128, 64, 32, 16, 8):
        if t <= cap and m % t == 0:
            return t
    return None


def _vmem_limit(est_bytes):
    # explicit scoped-VMEM ceiling: generous floor, capped at v7x physical
    return int(min(max(est_bytes + (8 << 20), 32 << 20), 64 << 20))


def _cparams(sems, est_bytes):
    return pltpu.CompilerParams(dimension_semantics=sems,
                                vmem_limit_bytes=_vmem_limit(est_bytes))


# ----------------------------------------------------------------------------
# Kernel 1: plain matmul + bias (+ReLU).  Only used for the single stride-2
# downsampling conv (im2col for stride-2 stays in XLA glue; the output is 4x
# smaller so this path is not on the critical HBM path).
# ----------------------------------------------------------------------------
def _mm_bias_kernel(a_ref, w_ref, b_ref, o_ref, *, relu):
    acc = jnp.dot(a_ref[...], w_ref[...], preferred_element_type=jnp.float32)
    acc = acc + b_ref[...]
    if relu:
        acc = jnp.maximum(acc, 0.0)
    o_ref[...] = acc


def matmul_bias(a, w, b, relu):
    m, k = a.shape
    n = w.shape[1]
    tm = _pick_tile(m, 1024)
    m_pad = m
    if tm is None:                        # rare fallback
        tm = 256
        m_pad = ((m + tm - 1) // tm) * tm
        a = jnp.pad(a, ((0, m_pad - m), (0, 0)))
    est = (2 * (tm * k + tm * n) + k * n + n) * 4
    out = pl.pallas_call(
        functools.partial(_mm_bias_kernel, relu=relu),
        out_shape=jax.ShapeDtypeStruct((m_pad, n), jnp.float32),
        grid=(m_pad // tm,),
        in_specs=[
            pl.BlockSpec((tm, k), lambda i: (i, 0)),
            pl.BlockSpec((k, n), lambda i: (0, 0)),
            pl.BlockSpec((1, n), lambda i: (0, 0)),
        ],
        out_specs=pl.BlockSpec((tm, n), lambda i: (i, 0)),
        compiler_params=_cparams(("parallel",), est),
    )(a, w, b.reshape(1, n))
    return out if m_pad == m else out[:m]


# ----------------------------------------------------------------------------
# Kernel 2: fused stem 3x3 conv (stride 1, Cin=3) with in-kernel zero padding.
# ----------------------------------------------------------------------------
def _conv3x3_stem_kernel(x_ref, w_ref, b_ref, o_ref, xp_ref, *, relu):
    H, W, Cin = x_ref.shape
    Cout = o_ref.shape[-1]
    xp_ref[...] = jnp.zeros_like(xp_ref)
    xp_ref[1:H + 1, 1:W + 1, :] = x_ref[...]
    acc = jnp.zeros((H * W, Cout), jnp.float32) + b_ref[...]
    k = 0
    for ky in range(3):
        for kx in range(3):
            patch = xp_ref[ky:ky + H, kx:kx + W, :].reshape(H * W, Cin)
            acc = acc + jnp.dot(patch, w_ref[k],
                                preferred_element_type=jnp.float32)
            k += 1
    if relu:
        acc = jnp.maximum(acc, 0.0)
    o_ref[...] = acc.reshape(H, W, Cout)


def conv2d_3x3_fused(x, w, b, relu=True):
    """x: [B, H, W, Cin], w: [9, Cin, Cout], b: [1, Cout]."""
    B, H, W, Cin = x.shape
    Cout = w.shape[-1]
    est = (2 * (H * W * Cin + H * W * Cout) + 9 * Cin * Cout
           + (H + 2) * (W + 2) * Cin + 2 * H * W * Cout) * 4
    return pl.pallas_call(
        functools.partial(_conv3x3_stem_kernel, relu=relu),
        out_shape=jax.ShapeDtypeStruct((B, H, W, Cout), jnp.float32),
        grid=(B,),
        in_specs=[
            pl.BlockSpec((None, H, W, Cin), lambda bi: (bi, 0, 0, 0)),
            pl.BlockSpec((9, Cin, Cout), lambda bi: (0, 0, 0)),
            pl.BlockSpec((1, Cout), lambda bi: (0, 0)),
        ],
        out_specs=pl.BlockSpec((None, H, W, Cout), lambda bi: (bi, 0, 0, 0)),
        scratch_shapes=[pltpu.VMEM((H + 2, W + 2, Cin), jnp.float32)],
        compiler_params=_cparams(("parallel",), est),
    )(x, w, b)


# ----------------------------------------------------------------------------
# Kernel 3: fused chain of N 2-D residual blocks (2 convs each).  All weights
# resident, intermediates re-padded in VMEM (no HBM round trips).  Each conv
# is an im2col into a VMEM scratch followed by ONE K=9*C MXU matmul.
# TODO(synk): at production resolutions this per-image block should be H-tiled
#             with explicit halos; whole-image blocks are fine at these sizes.
# ----------------------------------------------------------------------------
def _res2d_chain_kernel(x_ref, w_ref, b_ref, o_ref, xp_ref, yp_ref, pc_ref, *,
                        n_blocks):
    H, W, C = x_ref.shape
    xp_ref[...] = jnp.zeros_like(xp_ref)
    yp_ref[...] = jnp.zeros_like(yp_ref)
    xp_ref[1:H + 1, 1:W + 1, :] = x_ref[...]

    def conv(p_ref, widx):
        # im2col in VMEM -> single K=9*C matmul (fills the MXU K dimension).
        for ky in range(3):
            for kx in range(3):
                t = 3 * ky + kx
                pc_ref[:, t * C:(t + 1) * C] = (
                    p_ref[ky:ky + H, kx:kx + W, :].reshape(H * W, C))
        return jnp.dot(pc_ref[...], w_ref[widx],
                       preferred_element_type=jnp.float32) + b_ref[widx]

    for blk in range(n_blocks):
        y = jnp.maximum(conv(xp_ref, 2 * blk), 0.0)
        yp_ref[1:H + 1, 1:W + 1, :] = y.reshape(H, W, C)
        z = conv(yp_ref, 2 * blk + 1)
        xin = xp_ref[1:H + 1, 1:W + 1, :]
        xp_ref[1:H + 1, 1:W + 1, :] = jnp.maximum(
            xin + z.reshape(H, W, C), 0.0)
    o_ref[...] = xp_ref[1:H + 1, 1:W + 1, :]


def res2d_chain(x, w_st, b_st):
    """x: [B, H, W, C], w_st: [2n, 9, C, C], b_st: [2n, 1, C]."""
    B, H, W, C = x.shape
    n_layers = w_st.shape[0]
    n_blocks = n_layers // 2
    w2 = w_st.reshape(n_layers, 9 * C, C)
    est = (4 * H * W * C + n_layers * (9 * C * C + C)
           + 2 * (H + 2) * (W + 2) * C + H * W * 9 * C
           + 2 * H * W * C) * 4
    return pl.pallas_call(
        functools.partial(_res2d_chain_kernel, n_blocks=n_blocks),
        out_shape=jax.ShapeDtypeStruct((B, H, W, C), jnp.float32),
        grid=(B,),
        in_specs=[
            pl.BlockSpec((None, H, W, C), lambda bi: (bi, 0, 0, 0)),
            pl.BlockSpec((n_layers, 9 * C, C), lambda bi: (0, 0, 0)),
            pl.BlockSpec((n_layers, 1, C), lambda bi: (0, 0, 0)),
        ],
        out_specs=pl.BlockSpec((None, H, W, C), lambda bi: (bi, 0, 0, 0)),
        scratch_shapes=[pltpu.VMEM((H + 2, W + 2, C), jnp.float32),
                        pltpu.VMEM((H + 2, W + 2, C), jnp.float32),
                        pltpu.VMEM((H * W, 9 * C), jnp.float32)],
        compiler_params=_cparams(("parallel",), est),
    )(x, w2, b_st)


# Stride-2 downsampling conv: im2col glue in XLA + matmul kernel.
def conv2d_3x3_s2(x, w, b):
    B, H, W, C = x.shape
    Cout = w.shape[-1]
    Hout = (H + 2 - 3) // 2 + 1
    Wout = (W + 2 - 3) // 2 + 1
    xp = jnp.pad(x, ((0, 0), (1, 1), (1, 1), (0, 0)))
    cols = [xp[:, ky:ky + 2 * Hout:2, kx:kx + 2 * Wout:2, :]
            for ky in range(3) for kx in range(3)]
    patches = jnp.concatenate(cols, axis=-1)
    y = matmul_bias(patches.reshape(-1, 9 * C), w.reshape(9 * C, Cout), b,
                    relu=True)
    return y.reshape(B, Hout, Wout, Cout)


# ----------------------------------------------------------------------------
# Kernel 4: correlation cost volume, lane-dense bf16 output (B, D, H, W*C).
# vol[d, h, w, c] = L[h, w, c] * R[h, w - d, c]   (zero for w < d)
# ----------------------------------------------------------------------------
def _corr_kernel(l_ref, r_ref, o_ref, *, n_disp, c):
    l = l_ref[...]                       # (th, W*C)
    r = r_ref[...]                       # (th, (D+W)*C)
    wc = l_ref.shape[-1]
    # TODO(synk): for large D, tile disparities over a grid axis instead of a
    # full unroll (bounds code size / XLU pressure).
    for d in range(n_disp):
        off = (n_disp - d) * c
        o_ref[d] = (l * r[:, off:off + wc]).astype(jnp.bfloat16)


def patch_comparison_volume(l_feat, r_feat, max_disp):
    """[B, H, W, C] x2 -> lane-dense bf16 volume [B, D, H, W*C]."""
    B, H, W, C = l_feat.shape
    D = int(max_disp)
    l2 = l_feat.reshape(B, H, W * C)
    rp = jnp.pad(r_feat, ((0, 0), (0, 0), (D, 0), (0, 0)))
    rp = rp.reshape(B, H, (D + W) * C)
    th = 8 if H % 8 == 0 else H
    est = (2 * th * W * C * 4 + 2 * th * (D + W) * C * 4
           + 2 * D * th * W * C * 2)
    return pl.pallas_call(
        functools.partial(_corr_kernel, n_disp=D, c=C),
        out_shape=jax.ShapeDtypeStruct((B, D, H, W * C), jnp.bfloat16),
        grid=(B, H // th),
        in_specs=[
            pl.BlockSpec((None, th, W * C), lambda b, i: (b, i, 0)),
            pl.BlockSpec((None, th, (D + W) * C), lambda b, i: (b, i, 0)),
        ],
        out_specs=pl.BlockSpec((None, D, th, W * C),
                               lambda b, i: (b, 0, i, 0)),
        compiler_params=_cparams(("parallel", "parallel"), est),
    )(l2, rp)


# ----------------------------------------------------------------------------
# Shared residual 1x1x1-conv chain (bf16 MXU inputs, f32 elementwise).
# ----------------------------------------------------------------------------
def _apply_chain3d(x, w_ref, b_ref, n_blocks):
    """x: f32 [M, P]; w_ref: bf16 [2n, P, P] block-diag; b_ref: f32 [2n, 1, P]."""
    for k in range(n_blocks):
        h = jnp.dot(x.astype(jnp.bfloat16), w_ref[2 * k],
                    preferred_element_type=jnp.float32)
        h = jnp.maximum(h + b_ref[2 * k], 0.0)
        h = jnp.dot(h.astype(jnp.bfloat16), w_ref[2 * k + 1],
                    preferred_element_type=jnp.float32)
        h = h + b_ref[2 * k + 1]
        x = jnp.maximum(x + h, 0.0)
    return x


# ----------------------------------------------------------------------------
# Kernel 5: module_3d — whole chain of residual blocks fused into one
# streaming pass over the volume (rows of 256 lanes = 8 voxels); weights are
# 256x256 block-diagonal bf16 replicas of the 32x32 channel weights and stay
# VMEM-resident.  Optionally fuses the add of the upsampled coarser volume.
# ----------------------------------------------------------------------------
def _chain3d_kernel(x_ref, w_ref, b_ref, o_ref, *, n_blocks):
    x = x_ref[...].astype(jnp.float32)
    o_ref[...] = _apply_chain3d(x, w_ref, b_ref, n_blocks).astype(jnp.bfloat16)


def _chain3d_merge_kernel(x_ref, p_ref, w_ref, b_ref, o_ref, *, n_blocks):
    x = x_ref[...].astype(jnp.float32) + p_ref[...].astype(jnp.float32)
    o_ref[...] = _apply_chain3d(x, w_ref, b_ref, n_blocks).astype(jnp.bfloat16)


def res3d_chain(cur_flat, prev_flat, wbd, bbd):
    """cur/prev: [M, P] bf16; wbd: [2n, P, P] bf16; bbd: [2n, 1, P] f32."""
    m, pack = cur_flat.shape
    n_blocks = wbd.shape[0] // 2
    tm = _pick_tile(m, 1024)
    pad = 0
    if tm is None:
        tm = 256
        mp = ((m + tm - 1) // tm) * tm
        pad = mp - m
        cur_flat = jnp.pad(cur_flat, ((0, pad), (0, 0)))
        if prev_flat is not None:
            prev_flat = jnp.pad(prev_flat, ((0, pad), (0, 0)))
    mp = cur_flat.shape[0]
    n_in = 1 if prev_flat is None else 2
    est = (2 * (n_in + 1) * tm * pack * 2 + wbd.size * 2 + bbd.size * 4
           + 4 * tm * pack * 4)

    if prev_flat is None:
        kernel = functools.partial(_chain3d_kernel, n_blocks=n_blocks)
        args = (cur_flat, wbd, bbd)
        in_specs = [pl.BlockSpec((tm, pack), lambda i: (i, 0)),
                    pl.BlockSpec(wbd.shape, lambda i: (0, 0, 0)),
                    pl.BlockSpec(bbd.shape, lambda i: (0, 0, 0))]
    else:
        kernel = functools.partial(_chain3d_merge_kernel, n_blocks=n_blocks)
        args = (cur_flat, prev_flat, wbd, bbd)
        in_specs = [pl.BlockSpec((tm, pack), lambda i: (i, 0)),
                    pl.BlockSpec((tm, pack), lambda i: (i, 0)),
                    pl.BlockSpec(wbd.shape, lambda i: (0, 0, 0)),
                    pl.BlockSpec(bbd.shape, lambda i: (0, 0, 0))]

    out = pl.pallas_call(
        kernel,
        out_shape=jax.ShapeDtypeStruct((mp, pack), jnp.bfloat16),
        grid=(mp // tm,),
        in_specs=in_specs,
        out_specs=pl.BlockSpec((tm, pack), lambda i: (i, 0)),
        compiler_params=_cparams(("parallel",), est),
    )(*args)
    return out[:m] if pad else out


def module_3d(prev_vol, cur_vol, p):
    """cur_vol / prev_vol stored as bf16 [B, D, H, W*C]; returns same layout."""
    B, D, H, WC = cur_vol.shape
    C = CH1
    total = B * D * H * WC
    pack = PACK3D if total % PACK3D == 0 else LANES
    assert total % pack == 0
    wbd, bbd = p["wbd%d" % pack], p["bbd%d" % pack]
    cur_flat = cur_vol.reshape(-1, pack)
    if prev_vol is None:
        out = res3d_chain(cur_flat, None, wbd, bbd)
    else:
        Bp, Dp, Hp, WCp = prev_vol.shape
        prev5 = prev_vol.reshape(Bp, Dp, Hp, WCp // C, C)
        # TODO(synk): fuse this trilinear upsample into the merge kernel
        # (map fine blocks to /2 coarse blocks + halo) to remove the extra
        # full-volume HBM round trip.
        up = jax.image.resize(prev5, (B, D, H, WC // C, C),
                              method="trilinear")
        out = res3d_chain(cur_flat, up.reshape(-1, pack), wbd, bbd)
    return out.reshape(B, D, H, WC)


# ----------------------------------------------------------------------------
# Kernel 6: for_out_3d (f5 residual blocks, 128-lane packed, block-diag bf16
# weights) + final packed 32->1 conv + disparity soft-argmax, fused.  The
# single-channel score volume only hits HBM when inspection requests it.
# ----------------------------------------------------------------------------
def _forout_softargmax_kernel(v_ref, w_ref, b_ref, wf_ref, bf_ref, pred_ref,
                              *fo_refs, n_blocks):
    D, TR, L = v_ref.shape
    x = v_ref[...].astype(jnp.float32).reshape(D * TR, L)
    x = _apply_chain3d(x, w_ref, b_ref, n_blocks)
    # packed 32->1 conv: (128, 4) weight -> per-voxel scores off the MXU
    s = jnp.dot(x.astype(jnp.bfloat16), wf_ref[...],
                preferred_element_type=jnp.float32) + bf_ref[...]
    P = wf_ref.shape[-1]
    s3 = s.reshape(D, TR, P)
    if fo_refs:
        fo_refs[0][...] = s3
    mx = jnp.max(s3, axis=0, keepdims=True)
    e = jnp.exp(s3 - mx)
    denom = jnp.sum(e, axis=0)
    idx = jax.lax.broadcasted_iota(jnp.float32, s3.shape, 0)
    num = jnp.sum(idx * e, axis=0)
    pred_ref[...] = num / denom


def for_out_softargmax(vol, p, initial_scale, want_fo=False):
    """vol: bf16 [B, D, H, W*C] -> (full-res disparity [B, H0, W0],
                                    optional score volume [B, D, H, W])."""
    B, D, H, WC = vol.shape
    C = CH1
    W = WC // C
    P = LANES // C
    assert (H * W) % P == 0
    rows = H * W // P
    v = vol.reshape(B, D, rows, LANES)          # trivial contiguous reshape
    tr = _pick_tile(rows, 512) or rows
    n_blocks = NRES_F5
    est = (2 * D * tr * LANES * 2 + p["wbd"].size * 2 + p["bbd"].size * 4
           + 3 * D * tr * LANES * 4 + 2 * (1 + D) * tr * P * 4)

    pred_shape = jax.ShapeDtypeStruct((B, rows, P), jnp.float32)
    pred_spec = pl.BlockSpec((None, tr, P), lambda b, i: (b, i, 0))
    if want_fo:
        out_shape = (pred_shape,
                     jax.ShapeDtypeStruct((B, D, rows, P), jnp.float32))
        out_specs = (pred_spec,
                     pl.BlockSpec((None, D, tr, P), lambda b, i: (b, 0, i, 0)))
    else:
        out_shape = pred_shape
        out_specs = pred_spec

    res = pl.pallas_call(
        functools.partial(_forout_softargmax_kernel, n_blocks=n_blocks),
        out_shape=out_shape,
        grid=(B, rows // tr),
        in_specs=[
            pl.BlockSpec((None, D, tr, LANES), lambda b, i: (b, 0, i, 0)),
            pl.BlockSpec(p["wbd"].shape, lambda b, i: (0, 0, 0)),
            pl.BlockSpec(p["bbd"].shape, lambda b, i: (0, 0, 0)),
            pl.BlockSpec(p["wf"].shape, lambda b, i: (0, 0)),
            pl.BlockSpec((1, 1), lambda b, i: (0, 0)),
        ],
        out_specs=out_specs,
        compiler_params=_cparams(("parallel", "parallel"), est),
    )(v, p["wbd"], p["bbd"], p["wf"], p["bf"])

    if want_fo:
        pred, fo = res
        fo = fo.reshape(B, D, H, W)
    else:
        pred, fo = res, None
    pred = pred.reshape(B, H, W)
    # disparity measured in pixels scales with the width down-sampling factor
    pred = pred * (float(initial_scale[2]) / float(W))
    pred = jax.image.resize(
        pred, (B, initial_scale[1], initial_scale[2]), method="bilinear")
    return pred, fo


# ----------------------------------------------------------------------------
# Reconstructed submodules / orchestration.
# ----------------------------------------------------------------------------
def features_extraction_2d(im, p):
    x = conv2d_3x3_fused(im, p["stem_w"], p["stem_b"], relu=True)
    x = res2d_chain(x, p["f2_w"], p["f2_b"])
    d0 = x
    x = conv2d_3x3_s2(x, p["down_w"], p["down_b"])
    x = res2d_chain(x, p["f3_w"], p["f3_b"])
    d1 = x
    return [d0, d1]


def forward(imL, imR, scales, prediction_from_scales, initial_scale, params,
            inspection=False):
    assert imL.shape[1] == initial_scale[1]
    assert imR.shape[2] == initial_scale[2]
    B = imL.shape[0]

    # L & R share one pass through the 2-D extractor (concatenated on batch):
    # more grid steps per pallas_call, resident weights fetched once.
    feats = features_extraction_2d(jnp.concatenate([imL, imR], axis=0),
                                   params["fe"])
    imL_d = [f[:B] for f in feats]
    imR_d = [f[B:] for f in feats]

    volumes = []
    for i in range(len(imL_d)):
        volumes.append(
            patch_comparison_volume(imL_d[i], imR_d[i], scales[i][0]))

    tmp = [k for k in prediction_from_scales
           if "after" in prediction_from_scales[k]]
    min_sc = min(tmp) if tmp else 10000

    volumes_dict = {}
    last = len(scales) - 1
    volumes_dict[last] = {
        "before": volumes[-1],
        "after": module_3d(None, volumes[-1], params["m3d"]),
    }
    for i in range(len(scales) - 2, -1, -1):
        if i >= min_sc:
            volumes_dict[i] = {
                "before": volumes[i],
                "after": module_3d(volumes_dict[i + 1]["after"], volumes[i],
                                   params["m3d"]),
            }
        elif i >= min(prediction_from_scales.keys()):
            volumes_dict[i] = {"before": volumes[i]}

    for_out_dict = {}
    predictions_dict = {}
    for i in prediction_from_scales:
        for_out_dict[i] = {}
        predictions_dict[i] = {}
        for bef_af in prediction_from_scales[i]:
            pred, fo = for_out_softargmax(volumes_dict[i][bef_af],
                                          params["fo3d"], initial_scale,
                                          want_fo=inspection)
            for_out_dict[i][bef_af] = fo
            predictions_dict[i][bef_af] = pred

    if inspection:
        return (imL_d, imR_d, volumes, volumes_dict, for_out_dict,
                predictions_dict)
    return predictions_dict


# ----------------------------------------------------------------------------
# Deterministic parameter initialization.
# ----------------------------------------------------------------------------
def _block_diag(w, rep):
    c = w.shape[0]
    out = jnp.zeros((rep * c, rep * c), w.dtype)
    for i in range(rep):
        out = out.at[i * c:(i + 1) * c, i * c:(i + 1) * c].set(w)
    return out


def init_params(key):
    keys = iter(jax.random.split(key, 128))

    def conv2d_w(cin, cout):
        w = jax.random.normal(next(keys), (9, cin, cout), jnp.float32)
        return w * (1.0 / np.sqrt(9 * cin))

    def dense_w(cin, cout):
        w = jax.random.normal(next(keys), (cin, cout), jnp.float32)
        return w * (1.0 / np.sqrt(cin))

    fe = {
        "stem_w": conv2d_w(3, CH1),
        "stem_b": jnp.zeros((1, CH1), jnp.float32),
        "f2_w": jnp.stack([conv2d_w(CH1, CH1) for _ in range(2 * NRES_F2)]),
        "f2_b": jnp.zeros((2 * NRES_F2, 1, CH1), jnp.float32),
        "down_w": (jax.random.normal(next(keys), (3, 3, CH1, CH1),
                                     jnp.float32)
                   * (1.0 / np.sqrt(9 * CH1))),
        "down_b": jnp.zeros((CH1,), jnp.float32),
        "f3_w": jnp.stack([conv2d_w(CH1, CH1) for _ in range(2 * NRES_F3)]),
        "f3_b": jnp.zeros((2 * NRES_F3, 1, CH1), jnp.float32),
    }

    n3d = 2 * (NRES_F7 + NRES_F8)
    w3d = [dense_w(CH1, CH1) for _ in range(n3d)]
    m3d = {
        "wbd256": jnp.stack([_block_diag(w, 8) for w in w3d]
                            ).astype(jnp.bfloat16),
        "bbd256": jnp.zeros((n3d, 1, 8 * CH1), jnp.float32),
        "wbd128": jnp.stack([_block_diag(w, 4) for w in w3d]
                            ).astype(jnp.bfloat16),
        "bbd128": jnp.zeros((n3d, 1, 4 * CH1), jnp.float32),
    }

    nfo = 2 * NRES_F5
    wfo = [dense_w(CH1, CH1) for _ in range(nfo)]
    wf = dense_w(CH1, 1)                       # (32, 1)
    P = LANES // CH1                           # 4 voxels per 128-lane row
    wf_packed = jnp.zeros((LANES, P), jnp.float32)
    for j in range(P):
        wf_packed = wf_packed.at[j * CH1:(j + 1) * CH1, j].set(wf[:, 0])
    fo3d = {
        "wbd": jnp.stack([_block_diag(w, P) for w in wfo]
                         ).astype(jnp.bfloat16),
        "bbd": jnp.zeros((nfo, 1, LANES), jnp.float32),
        "wf": wf_packed.astype(jnp.bfloat16),
        "bf": jnp.zeros((1, 1), jnp.float32),
    }

    return {"fe": fe, "m3d": m3d, "fo3d": fo3d}


# ----------------------------------------------------------------------------
if __name__ == "__main__":
    key = jax.random.PRNGKey(0)
    k_params, k_l, k_r = jax.random.split(key, 3)
    params = init_params(k_params)

    B, H, W = 2, 16, 16
    imL = jax.random.normal(k_l, (B, H, W, 3), jnp.float32)
    imR = jax.random.normal(k_r, (B, H, W, 3), jnp.float32)

    # scales[i] = (max_disparity_i, H_i, W_i); initial_scale = full resolution
    scales = [[8, 16, 16], [4, 8, 8]]
    initial_scale = [8, 16, 16]
    prediction_from_scales = {0: ["after"], 1: ["after"]}

    preds = forward(imL, imR, scales, prediction_from_scales, initial_scale,
                    params, inspection=False)
    preds = jax.tree_util.tree_map(jax.block_until_ready, preds)

    for sc in preds:
        for k1 in preds[sc]:
            assert preds[sc][k1].shape == (B, initial_scale[1],
                                           initial_scale[2])
            assert bool(jnp.all(jnp.isfinite(preds[sc][k1])))
    print("KERNEL_OK")
</pallas_src>

<mosaic_0001>
module attributes {stable_mosaic.version = 11 : i64} {
  func.func @_conv3x3_stem_kernel(%arg0: i32, %arg1: memref<1x16x16x3xf32, #tpu.memory_space<vmem>>, %arg2: memref<9x3x32xf32, #tpu.memory_space<vmem>>, %arg3: memref<1x32xf32, #tpu.memory_space<vmem>>, %arg4: memref<1x16x16x32xf32, #tpu.memory_space<vmem>>, %arg5: memref<18x18x3xf32, #tpu.memory_space<vmem>>) attributes {dimension_semantics = [#tpu.dimension_semantics<parallel>], iteration_bounds = array<i64: 4>, scalar_prefetch = 0 : i64, scratch_operands = 1 : i64, tpu.core_type = #tpu.core_type<tc>, window_params = [{transform_indices = @transform_0, window_bounds = array<i64: 1, 16, 16, 3>}, {pipeline_mode = #tpu.pipeline_mode<synchronous>, transform_indices = @transform_1, window_bounds = array<i64: 9, 3, 32>}, {pipeline_mode = #tpu.pipeline_mode<synchronous>, transform_indices = @transform_2, window_bounds = array<i64: 1, 32>}, {transform_indices = @transform_3, window_bounds = array<i64: 1, 16, 16, 32>}]} {
    %cst = arith.constant 0.000000e+00 : f32
    %0 = vector.broadcast %cst : f32 to vector<18x18x3xf32>
    %c0 = arith.constant 0 : index
    %c0_0 = arith.constant 0 : index
    %c0_1 = arith.constant 0 : index
    %1 = vector.load %arg5[%c0, %c0_0, %c0_1] : memref<18x18x3xf32, #tpu.memory_space<vmem>>, vector<18x18x3xf32>
    tpu.vector_store %arg5[%c0, %c0_0, %c0_1], %0 {strides = array<i32>} : memref<18x18x3xf32, #tpu.memory_space<vmem>>, vector<18x18x3xf32>,
    %c0_2 = arith.constant 0 : index
    %c0_3 = arith.constant 0 : index
    %c0_4 = arith.constant 0 : index
    %c0_5 = arith.constant 0 : index
    %2 = vector.load %arg1[%c0_2, %c0_3, %c0_4, %c0_5] : memref<1x16x16x3xf32, #tpu.memory_space<vmem>>, vector<1x16x16x3xf32>
    %3 = vector.shape_cast %2 : vector<1x16x16x3xf32> to vector<16x16x3xf32>
    %c1 = arith.constant 1 : index
    %c1_6 = arith.constant 1 : index
    %c0_7 = arith.constant 0 : index
    %4 = vector.load %arg5[%c1, %c1_6, %c0_7] : memref<18x18x3xf32, #tpu.memory_space<vmem>>, vector<16x16x3xf32>
    tpu.vector_store %arg5[%c1, %c1_6, %c0_7], %3 {strides = array<i32>} : memref<18x18x3xf32, #tpu.memory_space<vmem>>, vector<16x16x3xf32>,
    %cst_8 = arith.constant 0.000000e+00 : f32
    %5 = vector.broadcast %cst_8 : f32 to vector<256x32xf32>
    %c0_9 = arith.constant 0 : index
    %c0_10 = arith.constant 0 : index
    %6 = vector.load %arg3[%c0_9, %c0_10] : memref<1x32xf32, #tpu.memory_space<vmem>>, vector<1x32xf32>
    %7 = vector.broadcast %6 : vector<1x32xf32> to vector<256x32xf32>
    %8 = arith.addf %5, %7 : vector<256x32xf32>
    %c0_11 = arith.constant 0 : index
    %c0_12 = arith.constant 0 : index
    %c0_13 = arith.constant 0 : index
    %9 = vector.load %arg5[%c0_11, %c0_12, %c0_13] : memref<18x18x3xf32, #tpu.memory_space<vmem>>, vector<16x16x3xf32>
    %10 = vector.shape_cast %9 : vector<16x16x3xf32> to vector<256x3xf32>
    %c0_14 = arith.constant 0 : index
    %c0_15 = arith.constant 0 : index
    %c0_16 = arith.constant 0 : index
    %11 = vector.load %arg2[%c0_14, %c0_15, %c0_16] : memref<9x3x32xf32, #tpu.memory_space<vmem>>, vector<1x3x32xf32>
    %12 = vector.shape_cast %11 : vector<1x3x32xf32> to vector<3x32xf32>
    %cst_17 = arith.constant dense<0.000000e+00> : vector<256x32xf32>
    %13 = tpu.matmul %10, %12, %cst_17 {dimension_numbers = #tpu.dot_dimension_numbers<[1], [0], [0], [1], [0, 0, 1, 1], [], []>} : vector<256x3xf32>, vector<3x32xf32>, vector<256x32xf32> -> vector<256x32xf32>
    %14 = arith.addf %8, %13 : vector<256x32xf32>
    %c0_18 = arith.constant 0 : index
    %c1_19 = arith.constant 1 : index
    %c0_20 = arith.constant 0 : index
    %15 = vector.load %arg5[%c0_18, %c1_19, %c0_20] : memref<18x18x3xf32, #tpu.memory_space<vmem>>, vector<16x16x3xf32>
    %16 = vector.shape_cast %15 : vector<16x16x3xf32> to vector<256x3xf32>
    %c1_21 = arith.constant 1 : index
    %c0_22 = arith.constant 0 : index
    %c0_23 = arith.constant 0 : index
    %17 = vector.load %arg2[%c1_21, %c0_22, %c0_23] : memref<9x3x32xf32, #tpu.memory_space<vmem>>, vector<1x3x32xf32>
    %18 = vector.shape_cast %17 : vector<1x3x32xf32> to vector<3x32xf32>
    %cst_24 = arith.constant dense<0.000000e+00> : vector<256x32xf32>
    %19 = tpu.matmul %16, %18, %cst_24 {dimension_numbers = #tpu.dot_dimension_numbers<[1], [0], [0], [1], [0, 0, 1, 1], [], []>} : vector<256x3xf32>, vector<3x32xf32>, vector<256x32xf32> -> vector<256x32xf32>
    %20 = arith.addf %14, %19 : vector<256x32xf32>
    %c0_25 = arith.constant 0 : index
    %c2 = arith.constant 2 : index
    %c0_26 = arith.constant 0 : index
    %21 = vector.load %arg5[%c0_25, %c2, %c0_26] : memref<18x18x3xf32, #tpu.memory_space<vmem>>, vector<16x16x3xf32>
    %22 = vector.shape_cast %21 : vector<16x16x3xf32> to vector<256x3xf32>
    %c2_27 = arith.constant 2 : index
    %c0_28 = arith.constant 0 : index
    %c0_29 = arith.constant 0 : index
    %23 = vector.load %arg2[%c2_27, %c0_28, %c0_29] : memref<9x3x32xf32, #tpu.memory_space<vmem>>, vector<1x3x32xf32>
    %24 = vector.shape_cast %23 : vector<1x3x32xf32> to vector<3x32xf32>
    %cst_30 = arith.constant dense<0.000000e+00> : vector<256x32xf32>
    %25 = tpu.matmul %22, %24, %cst_30 {dimension_numbers = #tpu.dot_dimension_numbers<[1], [0], [0], [1], [0, 0, 1, 1], [], []>} : vector<256x3xf32>, vector<3x32xf32>, vector<256x32xf32> -> vector<256x32xf32>
    %26 = arith.addf %20, %25 : vector<256x32xf32>
    %c1_31 = arith.constant 1 : index
    %c0_32 = arith.constant 0 : index
    %c0_33 = arith.constant 0 : index
    %27 = vector.load %arg5[%c1_31, %c0_32, %c0_33] : memref<18x18x3xf32, #tpu.memory_space<vmem>>, vector<16x16x3xf32>
    %28 = vector.shape_cast %27 : vector<16x16x3xf32> to vector<256x3xf32>
    %c3 = arith.constant 3 : index
    %c0_34 = arith.constant 0 : index
    %c0_35 = arith.constant 0 : index
    %29 = vector.load %arg2[%c3, %c0_34, %c0_35] : memref<9x3x32xf32, #tpu.memory_space<vmem>>, vector<1x3x32xf32>
    %30 = vector.shape_cast %29 : vector<1x3x32xf32> to vector<3x32xf32>
    %cst_36 = arith.constant dense<0.000000e+00> : vector<256x32xf32>
    %31 = tpu.matmul %28, %30, %cst_36 {dimension_numbers = #tpu.dot_dimension_numbers<[1], [0], [0], [1], [0, 0, 1, 1], [], []>} : vector<256x3xf32>, vector<3x32xf32>, vector<256x32xf32> -> vector<256x32xf32>
    %32 = arith.addf %26, %31 : vector<256x32xf32>
    %c1_37 = arith.constant 1 : index
    %c1_38 = arith.constant 1 : index
    %c0_39 = arith.constant 0 : index
    %33 = vector.load %arg5[%c1_37, %c1_38, %c0_39] : memref<18x18x3xf32, #tpu.memory_space<vmem>>, vector<16x16x3xf32>
    %34 = vector.shape_cast %33 : vector<16x16x3xf32> to vector<256x3xf32>
    %c4 = arith.constant 4 : index
    %c0_40 = arith.constant 0 : index
    %c0_41 = arith.constant 0 : index
    %35 = vector.load %arg2[%c4, %c0_40, %c0_41] : memref<9x3x32xf32, #tpu.memory_space<vmem>>, vector<1x3x32xf32>
    %36 = vector.shape_cast %35 : vector<1x3x32xf32> to vector<3x32xf32>
    %cst_42 = arith.constant dense<0.000000e+00> : vector<256x32xf32>
    %37 = tpu.matmul %34, %36, %cst_42 {dimension_numbers = #tpu.dot_dimension_numbers<[1], [0], [0], [1], [0, 0, 1, 1], [], []>} : vector<256x3xf32>, vector<3x32xf32>, vector<256x32xf32> -> vector<256x32xf32>
    %38 = arith.addf %32, %37 : vector<256x32xf32>
    %c1_43 = arith.constant 1 : index
    %c2_44 = arith.constant 2 : index
    %c0_45 = arith.constant 0 : index
    %39 = vector.load %arg5[%c1_43, %c2_44, %c0_45] : memref<18x18x3xf32, #tpu.memory_space<vmem>>, vector<16x16x3xf32>
    %40 = vector.shape_cast %39 : vector<16x16x3xf32> to vector<256x3xf32>
    %c5 = arith.constant 5 : index
    %c0_46 = arith.constant 0 : index
    %c0_47 = arith.constant 0 : index
    %41 = vector.load %arg2[%c5, %c0_46, %c0_47] : memref<9x3x32xf32, #tpu.memory_space<vmem>>, vector<1x3x32xf32>
    %42 = vector.shape_cast %41 : vector<1x3x32xf32> to vector<3x32xf32>
    %cst_48 = arith.constant dense<0.000000e+00> : vector<256x32xf32>
    %43 = tpu.matmul %40, %42, %cst_48 {dimension_numbers = #tpu.dot_dimension_numbers<[1], [0], [0], [1], [0, 0, 1, 1], [], []>} : vector<256x3xf32>, vector<3x32xf32>, vector<256x32xf32> -> vector<256x32xf32>
    %44 = arith.addf %38, %43 : vector<256x32xf32>
    %c2_49 = arith.constant 2 : index
    %c0_50 = arith.constant 0 : index
    %c0_51 = arith.constant 0 : index
    %45 = vector.load %arg5[%c2_49, %c0_50, %c0_51] : memref<18x18x3xf32, #tpu.memory_space<vmem>>, vector<16x16x3xf32>
    %46 = vector.shape_cast %45 : vector<16x16x3xf32> to vector<256x3xf32>
    %c6 = arith.constant 6 : index
    %c0_52 = arith.constant 0 : index
    %c0_53 = arith.constant 0 : index
    %47 = vector.load %arg2[%c6, %c0_52, %c0_53] : memref<9x3x32xf32, #tpu.memory_space<vmem>>, vector<1x3x32xf32>
    %48 = vector.shape_cast %47 : vector<1x3x32xf32> to vector<3x32xf32>
    %cst_54 = arith.constant dense<0.000000e+00> : vector<256x32xf32>
    %49 = tpu.matmul %46, %48, %cst_54 {dimension_numbers = #tpu.dot_dimension_numbers<[1], [0], [0], [1], [0, 0, 1, 1], [], []>} : vector<256x3xf32>, vector<3x32xf32>, vector<256x32xf32> -> vector<256x32xf32>
    %50 = arith.addf %44, %49 : vector<256x32xf32>
    %c2_55 = arith.constant 2 : index
    %c1_56 = arith.constant 1 : index
    %c0_57 = arith.constant 0 : index
    %51 = vector.load %arg5[%c2_55, %c1_56, %c0_57] : memref<18x18x3xf32, #tpu.memory_space<vmem>>, vector<16x16x3xf32>
    %52 = vector.shape_cast %51 : vector<16x16x3xf32> to vector<256x3xf32>
    %c7 = arith.constant 7 : index
    %c0_58 = arith.constant 0 : index
    %c0_59 = arith.constant 0 : index
    %53 = vector.load %arg2[%c7, %c0_58, %c0_59] : memref<9x3x32xf32, #tpu.memory_space<vmem>>, vector<1x3x32xf32>
    %54 = vector.shape_cast %53 : vector<1x3x32xf32> to vector<3x32xf32>
    %cst_60 = arith.constant dense<0.000000e+00> : vector<256x32xf32>
    %55 = tpu.matmul %52, %54, %cst_60 {dimension_numbers = #tpu.dot_dimension_numbers<[1], [0], [0], [1], [0, 0, 1, 1], [], []>} : vector<256x3xf32>, vector<3x32xf32>, vector<256x32xf32> -> vector<256x32xf32>
    %56 = arith.addf %50, %55 : vector<256x32xf32>
    %c2_61 = arith.constant 2 : index
    %c2_62 = arith.constant 2 : index
    %c0_63 = arith.constant 0 : index
    %57 = vector.load %arg5[%c2_61, %c2_62, %c0_63] : memref<18x18x3xf32, #tpu.memory_space<vmem>>, vector<16x16x3xf32>
    %58 = vector.shape_cast %57 : vector<16x16x3xf32> to vector<256x3xf32>
    %c8 = arith.constant 8 : index
    %c0_64 = arith.constant 0 : index
    %c0_65 = arith.constant 0 : index
    %59 = vector.load %arg2[%c8, %c0_64, %c0_65] : memref<9x3x32xf32, #tpu.memory_space<vmem>>, vector<1x3x32xf32>
    %60 = vector.shape_cast %59 : vector<1x3x32xf32> to vector<3x32xf32>
    %cst_66 = arith.constant dense<0.000000e+00> : vector<256x32xf32>
    %61 = tpu.matmul %58, %60, %cst_66 {dimension_numbers = #tpu.dot_dimension_numbers<[1], [0], [0], [1], [0, 0, 1, 1], [], []>} : vector<256x3xf32>, vector<3x32xf32>, vector<256x32xf32> -> vector<256x32xf32>
    %62 = arith.addf %56, %61 : vector<256x32xf32>
    %cst_67 = arith.constant 0.000000e+00 : f32
    %63 = vector.broadcast %cst_67 : f32 to vector<256x32xf32>
    %64 = arith.maximumf %62, %63 : vector<256x32xf32>
    %65 = vector.shape_cast %64 : vector<256x32xf32> to vector<16x16x32xf32>
    %c0_68 = arith.constant 0 : index
    %c0_69 = arith.constant 0 : index
    %c0_70 = arith.constant 0 : index
    %c0_71 = arith.constant 0 : index
    %66 = vector.load %arg4[%c0_68, %c0_69, %c0_70, %c0_71] : memref<1x16x16x32xf32, #tpu.memory_space<vmem>>, vector<1x16x16x32xf32>
    %67 = vector.shape_cast %66 : vector<1x16x16x32xf32> to vector<16x16x32xf32>
    %68 = vector.shape_cast %65 : vector<16x16x32xf32> to vector<1x16x16x32xf32>
    tpu.vector_store %arg4[%c0_68, %c0_69, %c0_70, %c0_71], %68 {strides = array<i32>} : memref<1x16x16x32xf32, #tpu.memory_space<vmem>>, vector<1x16x16x32xf32>,
    return
  }
  func.func @transform_0(%arg0: i32) -> (i32, i32, i32, i32) {
    %c0_i32 = arith.constant 0 : i32
    %c0_i32_0 = arith.constant 0 : i32
    %c0_i32_1 = arith.constant 0 : i32
    %c0_i32_2 = arith.constant 0 : i32
    return %arg0, %c0_i32, %c0_i32_0, %c0_i32_1 : i32, i32, i32, i32
  }
  func.func @transform_1(%arg0: i32) -> (i32, i32, i32) {
    %c0_i32 = arith.constant 0 : i32
    %c0_i32_0 = arith.constant 0 : i32
    %c0_i32_1 = arith.constant 0 : i32
    %c0_i32_2 = arith.constant 0 : i32
    return %c0_i32, %c0_i32_0, %c0_i32_1 : i32, i32, i32
  }
  func.func @transform_2(%arg0: i32) -> (i32, i32) {
    %c0_i32 = arith.constant 0 : i32
    %c0_i32_0 = arith.constant 0 : i32
    %c0_i32_1 = arith.constant 0 : i32
    return %c0_i32, %c0_i32_0 : i32, i32
  }
  func.func @transform_3(%arg0: i32) -> (i32, i32, i32, i32) {
    %c0_i32 = arith.constant 0 : i32
    %c0_i32_0 = arith.constant 0 : i32
    %c0_i32_1 = arith.constant 0 : i32
    %c0_i32_2 = arith.constant 0 : i32
    return %arg0, %c0_i32, %c0_i32_0, %c0_i32_1 : i32, i32, i32, i32
  }
}

</mosaic_0001>

<llo_original>
// kernel: tpu_custom_call.1
$region0: #{tpu_custom_call.1}
  #allocation0 [shape = 'u32[]', space=smem, size = 0x4, offset = 0x4, fixed_abs, tag = 'smem constant byte address 0x4 - core index']
  #allocation1 [shape = 'u32[144,128]{1,0:T(1,128)}', space=vmem, size = 0x12000, scoped, tag = 'internal scratch']
  #allocation2 [shape = 'f32[18,18,3]{2,1,0:T(8,128)}', space=vmem, size = 0x36000, scoped, tag = 'scratch operand']
  %s0 = inlined_call_operand.vmem [shape: f32[4,16,16,3], index: 0, kind: input, shape index: {}]
  %s1 = inlined_call_operand.vmem [shape: f32[9,3,32], index: 1, kind: input, shape index: {}]
  %s2 = inlined_call_operand.vmem [shape: f32[1,32], index: 2, kind: input, shape index: {}]
  %s3 = inlined_call_operand.hbm [shape: f32[4,16,16,32], index: 3, kind: output, shape index: {}]
  %s4 = sld [smem:[#allocation0]]
  $region45: #{tpu_custom_call.1} parent=0
    _
  %s6 = ssub.s32 1, %s4
  %s7 = scalar_select 0, %s6, %s4
  $region1: #{tpu_custom_call.1} parent=0
    #allocation3 [shape = 'u8[262144]{0}', space=vmem, size = 0x40000, scoped, tag = 'output window, operand 0']
    #allocation4 [shape = 's32[2]{0}', space=sflag, size = 0x8, scoped, tag = 'scoped memory for tpu_custom_call.1']
    %8 = vsyncpa [#allocation4], 0
    %s9 = scalar_lea.sflag [#allocation4], 1
    %10 = vsyncpa %s9, 0
    loop: start=0, step=1, limit=6
    $region2: #{tpu_custom_call.1} parent=1 // loop_pre_header
      _
    $region3: #{tpu_custom_call.1} parent=1 // loop_header
      %s12 = sphi 0, %s16
      %p13 = scmp.ge.s32.totalorder %s12, 6
      %s22 = sphi 0, %s24
      %s25 = sphi 0, %s22
      %s26 = sphi 0, %s25
      %s42 = sphi 0, %s26
      %s46 = sphi 0, %s46
      %s48 = sphi 0, %s46
      %s49 = sphi 0, %s48
      %s63 = sphi 0, %s49
      %s67 = sphi 0, %s67
      %s69 = sphi 0, %s67
      %s70 = sphi 0, %s69
      %s84 = sphi 0, %s70
      %s90 = sphi 0, %s92
      %s93 = sphi 0, %s90
      %s94 = sphi 0, %s93
      %s110 = sphi 0, %s94
    $region4: #{tpu_custom_call.1} parent=1 // loop_header_branch
      %15 = sbr.rel (%p13) target = $region8
    $region5: #{tpu_custom_call.1} parent=1 // loop_body
      %s17 = ssub.s32 %s12, 1
      %s18 = ssub.s32 %s12, 2
      %s19 = sadd.s32 %s12, 1
      %s20 = ssub.s32 %s12, %s19
      %p21 = scmp.eq.s32.totalorder %s20, 0
      %s23 = sadd.s32 %s22, 1
      %s24 = scalar_select %p21, %s22, %s23
      %p27 = pneg %p21
      %p28 = scmp.eq.s32.totalorder %s12, 3
      %p29 = por %p27, %p28
      %p30 = scmp.ne.s32.totalorder %s22, %s25
      %p31 = scmp.eq.s32.totalorder %s12, 0
      %p32 = por %p30, %p31
      %p33 = scmp.ne.s32.totalorder %s22, %s25
      %p34 = scmp.eq.s32.totalorder %s17, 3
      %p35 = por %p33, %p34
      %p36 = scmp.ne.s32.totalorder %s25, %s26
      %p37 = scmp.eq.s32.totalorder %s17, 0
      %p38 = por %p36, %p37
      %p39 = scmp.ne.s32.totalorder %s25, %s26
      %p40 = scmp.eq.s32.totalorder %s18, 3
      %p41 = por %p39, %p40
      %p43 = scmp.ne.s32.totalorder %s26, %s42
      %p44 = scmp.eq.s32.totalorder %s18, 0
      %p45 = por %p43, %p44
      %s47 = sadd.s32 %s46, 1
      %p50 = scmp.eq.s32.totalorder %s12, 3
      %p51 = scmp.ne.s32.totalorder %s46, %s48
      %p52 = scmp.eq.s32.totalorder %s12, 0
      %p53 = por %p51, %p52
      %p54 = scmp.ne.s32.totalorder %s46, %s48
      %p55 = scmp.eq.s32.totalorder %s17, 3
      %p56 = por %p54, %p55
      %p57 = scmp.ne.s32.totalorder %s48, %s49
      %p58 = scmp.eq.s32.totalorder %s17, 0
      %p59 = por %p57, %p58
      %p60 = scmp.ne.s32.totalorder %s48, %s49
      %p61 = scmp.eq.s32.totalorder %s18, 3
      %p62 = por %p60, %p61
      %p64 = scmp.ne.s32.totalorder %s49, %s63
      %p65 = scmp.eq.s32.totalorder %s18, 0
      %p66 = por %p64, %p65
      %s68 = sadd.s32 %s67, 1
      %p71 = scmp.eq.s32.totalorder %s12, 3
      %p72 = scmp.ne.s32.totalorder %s67, %s69
      %p73 = scmp.eq.s32.totalorder %s12, 0
      %p74 = por %p72, %p73
      %p75 = scmp.ne.s32.totalorder %s67, %s69
      %p76 = scmp.eq.s32.totalorder %s17, 3
      %p77 = por %p75, %p76
      %p78 = scmp.ne.s32.totalorder %s69, %s70
      %p79 = scmp.eq.s32.totalorder %s17, 0
      %p80 = por %p78, %p79
      %p81 = scmp.ne.s32.totalorder %s69, %s70
      %p82 = scmp.eq.s32.totalorder %s18, 3
      %p83 = por %p81, %p82
      %p85 = scmp.ne.s32.totalorder %s70, %s84
      %p86 = scmp.eq.s32.totalorder %s18, 0
      %p87 = por %p85, %p86
      %s88 = ssub.s32 %s12, %s19
      %p89 = scmp.eq.s32.totalorder %s88, 0
      %s91 = sadd.s32 %s90, 1
      %s92 = scalar_select %p89, %s90, %s91
      %p95 = pneg %p89
      %p96 = scmp.eq.s32.totalorder %s12, 3
      %p97 = por %p95, %p96
      %p98 = scmp.ne.s32.totalorder %s90, %s93
      %p99 = scmp.eq.s32.totalorder %s12, 0
      %p100 = por %p98, %p99
      %p101 = scmp.ne.s32.totalorder %s90, %s93
      %p102 = scmp.eq.s32.totalorder %s17, 3
      %p103 = por %p101, %p102
      %p104 = scmp.ne.s32.totalorder %s93, %s94
      %p105 = scmp.eq.s32.totalorder %s17, 0
      %p106 = por %p104, %p105
      %p107 = scmp.ne.s32.totalorder %s93, %s94
      %p108 = scmp.eq.s32.totalorder %s18, 3
      %p109 = por %p107, %p108
      %p111 = scmp.ne.s32.totalorder %s94, %s110
      %p112 = scmp.eq.s32.totalorder %s18, 0
      %p113 = por %p111, %p112
      %p114 = scmp.le.s32.totalorder 1, %s12
      %p115 = scmp.lt.s32.totalorder %s12, 5
      %p116 = pnand %p114, %p115
      %p117 = pneg %p116
      // Predicated region
      $region9: #{tpu_custom_call.1} parent=5 // pred_check
        _
      $region10: #{tpu_custom_call.1} parent=5 // pred_check_branch
        %119 = sbr.rel (%p116) target = $region12
      $region11: #{tpu_custom_call.1} parent=5 // pred_region
        %s120 = ssub.s32 %s12, 1
        // Predicated region
        $region13: #{tpu_custom_call.1} parent=11 // pred_check
          %p121 = pneg %p59
        $region14: #{tpu_custom_call.1} parent=11 // pred_check_branch
          %123 = sbr.rel (%p121) target = $region16
        $region15: #{tpu_custom_call.1} parent=11 // pred_region
          _
        $region16: #{tpu_custom_call.1} parent=11 // pred_fallthru
          _
        // Predicated region
        $region17: #{tpu_custom_call.1} parent=11 // pred_check
          %p124 = pneg %p80
        $region18: #{tpu_custom_call.1} parent=11 // pred_check_branch
          %126 = sbr.rel (%p124) target = $region20
        $region19: #{tpu_custom_call.1} parent=11 // pred_region
          _
        $region20: #{tpu_custom_call.1} parent=11 // pred_fallthru
          _
      $region12: #{tpu_custom_call.1} parent=5 // pred_fallthru
        _
      %p127 = scmp.lt.s32.totalorder %s12, 4
      // Predicated region
      $region21: #{tpu_custom_call.1} parent=5 // pred_check
        %p128 = pneg %p127
      $region22: #{tpu_custom_call.1} parent=5 // pred_check_branch
        %130 = sbr.rel (%p128) target = $region24
      $region23: #{tpu_custom_call.1} parent=5 // pred_region
        // Predicated region
        $region25: #{tpu_custom_call.1} parent=23 // pred_check
          %p131 = pneg %p32
        $region26: #{tpu_custom_call.1} parent=23 // pred_check_branch
          %133 = sbr.rel (%p131) target = $region28
        $region27: #{tpu_custom_call.1} parent=23 // pred_region
          %p134 = scmp.lt.s32.totalorder %s12, 3
          %s135 = scalar_select %p134, %s12, 3
          %s136 = smul.addr %s135, 32
          %s137 = smul.addr %s136, 8
          %s138 = scalar_lea.vmem %s0, %s137
        $region28: #{tpu_custom_call.1} parent=23 // pred_fallthru
          _
      $region24: #{tpu_custom_call.1} parent=5 // pred_fallthru
        _
      %p139 = scmp.le.s32.totalorder 1, %s12
      %p140 = scmp.lt.s32.totalorder %s12, 5
      %p141 = pnand %p139, %p140
      %p142 = pneg %p141
      // Predicated region
      $region29: #{tpu_custom_call.1} parent=5 // pred_check
        _
      $region30: #{tpu_custom_call.1} parent=5 // pred_check_branch
        %144 = sbr.rel (%p141) target = $region32
      $region31: #{tpu_custom_call.1} parent=5 // pred_region
        %s145 = ssub.s32 %s12, 1
        %p146 = scmp.lt.s32.totalorder %s17, 3
        %s147 = scalar_select %p146, %s17, 3
        %s148 = smul.addr %s147, 32
        %s149 = smul.addr %s148, 8
        %s150 = scalar_lea.vmem %s0, %s149
        %p151 = pneg %p38
        %p152 = pneg %p35
        %p153 = pneg %p59
        %p154 = pneg %p56
        %p155 = pneg %p80
        %p156 = pneg %p77
        %p157 = pneg %p106
        %p158 = pneg %p103
        %s159 = sand.u32 %s93, 1
        %s160 = scalar_lea.sflag [#allocation4], %s159
        %s161 = sand.u32 %s93, 1
        %s162 = smul.addr %s161, 256
        %s163 = scalar_lea.vmem [#allocation3], %s162
        %p164 = scmp.lt.s32.totalorder %s17, 3
        %s165 = scalar_select %p164, %s17, 3
        %s166 = smul.addr %s165, 32
        %s167 = smul.addr %s166, 8
        %s168 = scalar_lea.vmem %s0, %s167
        %vm169 = vcmask 23552
        %170 = vst.msk [vmem:[#allocation2] sm:$0xff] %vm169, 0.0
        %171 = vst.msk [vmem:[#allocation2 + $0x8] sm:$0xff] %vm169, 0.0
        %vm172 = vcmask 17408
        %173 = vst.msk [vmem:[#allocation2 + $0x10] sm:$0x3] %vm172, 0.0
        %174 = vst.msk [vmem:[#allocation2 + $0x18] sm:$0xff] %vm169, 0.0
        %175 = vst.msk [vmem:[#allocation2 + $0x20] sm:$0xff] %vm169, 0.0
        %176 = vst.msk [vmem:[#allocation2 + $0x28] sm:$0x3] %vm172, 0.0
        %177 = vst.msk [vmem:[#allocation2 + $0x30] sm:$0xff] %vm169, 0.0
        %178 = vst.msk [vmem:[#allocation2 + $0x38] sm:$0xff] %vm169, 0.0
        %179 = vst.msk [vmem:[#allocation2 + $0x40] sm:$0x3] %vm172, 0.0
        %180 = vst.msk [vmem:[#allocation2 + $0x48] sm:$0xff] %vm169, 0.0
        %181 = vst.msk [vmem:[#allocation2 + $0x50] sm:$0xff] %vm169, 0.0
        %182 = vst.msk [vmem:[#allocation2 + $0x58] sm:$0x3] %vm172, 0.0
        %183 = vst.msk [vmem:[#allocation2 + $0x60] sm:$0xff] %vm169, 0.0
        %184 = vst.msk [vmem:[#allocation2 + $0x68] sm:$0xff] %vm169, 0.0
        %185 = vst.msk [vmem:[#allocation2 + $0x70] sm:$0x3] %vm172, 0.0
        %186 = vst.msk [vmem:[#allocation2 + $0x78] sm:$0xff] %vm169, 0.0
        %187 = vst.msk [vmem:[#allocation2 + $0x80] sm:$0xff] %vm169, 0.0
        %188 = vst.msk [vmem:[#allocation2 + $0x88] sm:$0x3] %vm172, 0.0
        %189 = vst.msk [vmem:[#allocation2 + $0x90] sm:$0xff] %vm169, 0.0
        %190 = vst.msk [vmem:[#allocation2 + $0x98] sm:$0xff] %vm169, 0.0
        %191 = vst.msk [vmem:[#allocation2 + $0xa0] sm:$0x3] %vm172, 0.0
        %192 = vst.msk [vmem:[#allocation2 + $0xa8] sm:$0xff] %vm169, 0.0
        %193 = vst.msk [vmem:[#allocation2 + $0xb0] sm:$0xff] %vm169, 0.0
        %194 = vst.msk [vmem:[#allocation2 + $0xb8] sm:$0x3] %vm172, 0.0
        %195 = vst.msk [vmem:[#allocation2 + $0xc0] sm:$0xff] %vm169, 0.0
        %196 = vst.msk [vmem:[#allocation2 + $0xc8] sm:$0xff] %vm169, 0.0
        %197 = vst.msk [vmem:[#allocation2 + $0xd0] sm:$0x3] %vm172, 0.0
        %198 = vst.msk [vmem:[#allocation2 + $0xd8] sm:$0xff] %vm169, 0.0
        %199 = vst.msk [vmem:[#allocation2 + $0xe0] sm:$0xff] %vm169, 0.0
        %200 = vst.msk [vmem:[#allocation2 + $0xe8] sm:$0x3] %vm172, 0.0
        %201 = vst.msk [vmem:[#allocation2 + $0xf0] sm:$0xff] %vm169, 0.0
        %202 = vst.msk [vmem:[#allocation2 + $0xf8] sm:$0xff] %vm169, 0.0
        %203 = vst.msk [vmem:[#allocation2 + $0x100] sm:$0x3] %vm172, 0.0
        %204 = vst.msk [vmem:[#allocation2 + $0x108] sm:$0xff] %vm169, 0.0
        %205 = vst.msk [vmem:[#allocation2 + $0x110] sm:$0xff] %vm169, 0.0
        %206 = vst.msk [vmem:[#allocation2 + $0x118] sm:$0x3] %vm172, 0.0
        %207 = vst.msk [vmem:[#allocation2 + $0x120] sm:$0xff] %vm169, 0.0
        %208 = vst.msk [vmem:[#allocation2 + $0x128] sm:$0xff] %vm169, 0.0
        %209 = vst.msk [vmem:[#allocation2 + $0x130] sm:$0x3] %vm172, 0.0
        %210 = vst.msk [vmem:[#allocation2 + $0x138] sm:$0xff] %vm169, 0.0
        %211 = vst.msk [vmem:[#allocation2 + $0x140] sm:$0xff] %vm169, 0.0
        %212 = vst.msk [vmem:[#allocation2 + $0x148] sm:$0x3] %vm172, 0.0
        %213 = vst.msk [vmem:[#allocation2 + $0x150] sm:$0xff] %vm169, 0.0
        %214 = vst.msk [vmem:[#allocation2 + $0x158] sm:$0xff] %vm169, 0.0
        %215 = vst.msk [vmem:[#allocation2 + $0x160] sm:$0x3] %vm172, 0.0
        %216 = vst.msk [vmem:[#allocation2 + $0x168] sm:$0xff] %vm169, 0.0
        %217 = vst.msk [vmem:[#allocation2 + $0x170] sm:$0xff] %vm169, 0.0
        %218 = vst.msk [vmem:[#allocation2 + $0x178] sm:$0x3] %vm172, 0.0
        %219 = vst.msk [vmem:[#allocation2 + $0x180] sm:$0xff] %vm169, 0.0
        %220 = vst.msk [vmem:[#allocation2 + $0x188] sm:$0xff] %vm169, 0.0
        %221 = vst.msk [vmem:[#allocation2 + $0x190] sm:$0x3] %vm172, 0.0
        %222 = vst.msk [vmem:[#allocation2 + $0x198] sm:$0xff] %vm169, 0.0
        %223 = vst.msk [vmem:[#allocation2 + $0x1a0] sm:$0xff] %vm169, 0.0
        %224 = vst.msk [vmem:[#allocation2 + $0x1a8] sm:$0x3] %vm172, 0.0
        %v225 = vld [vmem:[%s168] sm:$0xff]
        %v226 = vld [vmem:[%s168 + $0x8] sm:$0xff]
        %v227 = vld [vmem:[%s168 + $0x10] sm:$0xff]
        %v228 = vld [vmem:[%s168 + $0x18] sm:$0xff]
        %v229 = vld [vmem:[%s168 + $0x20] sm:$0xff]
        %v230 = vld [vmem:[%s168 + $0x28] sm:$0xff]
        %v231 = vld [vmem:[%s168 + $0x30] sm:$0xff]
        %v232 = vld [vmem:[%s168 + $0x38] sm:$0xff]
        %v233 = vld [vmem:[%s168 + $0x40] sm:$0xff]
        %v234 = vld [vmem:[%s168 + $0x48] sm:$0xff]
        %v235 = vld [vmem:[%s168 + $0x50] sm:$0xff]
        %v236 = vld [vmem:[%s168 + $0x58] sm:$0xff]
        %v237 = vld [vmem:[%s168 + $0x60] sm:$0xff]
        %v238 = vld [vmem:[%s168 + $0x68] sm:$0xff]
        %v239 = vld [vmem:[%s168 + $0x70] sm:$0xff]
        %v240 = vld [vmem:[%s168 + $0x78] sm:$0xff]
        %v241 = vld [vmem:[%s168 + $0x80] sm:$0xff]
        %v242 = vld [vmem:[%s168 + $0x88] sm:$0xff]
        %v243 = vld [vmem:[%s168 + $0x90] sm:$0xff]
        %v244 = vld [vmem:[%s168 + $0x98] sm:$0xff]
        %v245 = vld [vmem:[%s168 + $0xa0] sm:$0xff]
        %v246 = vld [vmem:[%s168 + $0xa8] sm:$0xff]
        %v247 = vld [vmem:[%s168 + $0xb0] sm:$0xff]
        %v248 = vld [vmem:[%s168 + $0xb8] sm:$0xff]
        %v249 = vld [vmem:[%s168 + $0xc0] sm:$0xff]
        %v250 = vld [vmem:[%s168 + $0xc8] sm:$0xff]
        %v251 = vld [vmem:[%s168 + $0xd0] sm:$0xff]
        %v252 = vld [vmem:[%s168 + $0xd8] sm:$0xff]
        %v253 = vld [vmem:[%s168 + $0xe0] sm:$0xff]
        %v254 = vld [vmem:[%s168 + $0xe8] sm:$0xff]
        %v255 = vld [vmem:[%s168 + $0xf0] sm:$0xff]
        %v256 = vld [vmem:[%s168 + $0xf8] sm:$0xff]
        %s257 = scalar_lea.vmem [#allocation2], 24
        %258 = vst.msk [vmem:[%s257 + $0x1] sm:$0xff] %vm169, %v225
        %259 = vst.msk [vmem:[%s257 + $0x9] sm:$0xff] %vm169, %v226
        %260 = vst.msk [vmem:[%s257 + $0x19] sm:$0xff] %vm169, %v227
        %261 = vst.msk [vmem:[%s257 + $0x21] sm:$0xff] %vm169, %v228
        %262 = vst.msk [vmem:[%s257 + $0x31] sm:$0xff] %vm169, %v229
        %263 = vst.msk [vmem:[%s257 + $0x39] sm:$0xff] %vm169, %v230
        %264 = vst.msk [vmem:[%s257 + $0x49] sm:$0xff] %vm169, %v231
        %265 = vst.msk [vmem:[%s257 + $0x51] sm:$0xff] %vm169, %v232
        %266 = vst.msk [vmem:[%s257 + $0x61] sm:$0xff] %vm169, %v233
        %267 = vst.msk [vmem:[%s257 + $0x69] sm:$0xff] %vm169, %v234
        %268 = vst.msk [vmem:[%s257 + $0x79] sm:$0xff] %vm169, %v235
        %269 = vst.msk [vmem:[%s257 + $0x81] sm:$0xff] %vm169, %v236
        %270 = vst.msk [vmem:[%s257 + $0x91] sm:$0xff] %vm169, %v237
        %271 = vst.msk [vmem:[%s257 + $0x99] sm:$0xff] %vm169, %v238
        %272 = vst.msk [vmem:[%s257 + $0xa9] sm:$0xff] %vm169, %v239
        %273 = vst.msk [vmem:[%s257 + $0xb1] sm:$0xff] %vm169, %v240
        %274 = vst.msk [vmem:[%s257 + $0xc1] sm:$0xff] %vm169, %v241
        %275 = vst.msk [vmem:[%s257 + $0xc9] sm:$0xff] %vm169, %v242
        %276 = vst.msk [vmem:[%s257 + $0xd9] sm:$0xff] %vm169, %v243
        %277 = vst.msk [vmem:[%s257 + $0xe1] sm:$0xff] %vm169, %v244
        %278 = vst.msk [vmem:[%s257 + $0xf1] sm:$0xff] %vm169, %v245
        %279 = vst.msk [vmem:[%s257 + $0xf9] sm:$0xff] %vm169, %v246
        %280 = vst.msk [vmem:[%s257 + $0x109] sm:$0xff] %vm169, %v247
        %281 = vst.msk [vmem:[%s257 + $0x111] sm:$0xff] %vm169, %v248
        %282 = vst.msk [vmem:[%s257 + $0x121] sm:$0xff] %vm169, %v249
        %283 = vst.msk [vmem:[%s257 + $0x129] sm:$0xff] %vm169, %v250
        %284 = vst.msk [vmem:[%s257 + $0x139] sm:$0xff] %vm169, %v251
        %285 = vst.msk [vmem:[%s257 + $0x141] sm:$0xff] %vm169, %v252
        %286 = vst.msk [vmem:[%s257 + $0x151] sm:$0xff] %vm169, %v253
        %287 = vst.msk [vmem:[%s257 + $0x159] sm:$0xff] %vm169, %v254
        %288 = vst.msk [vmem:[%s257 + $0x169] sm:$0xff] %vm169, %v255
        %289 = vst.msk [vmem:[%s257 + $0x171] sm:$0xff] %vm169, %v256
        %v290 = vld [vmem:[%s2] sm:$0x1]
        %v292 = vlaneseq
        %v293 = vshrl.u32 %v292, 7
        %v294 = vsub.s32 0, %v293
        %v295 = vrot.slane %v290, %v294
        %v297 = vadd.f32 %v295, 0.0
        %v298 = vld [vmem:[#allocation2] sm:$0xff]
        %v299 = vld [vmem:[#allocation2 + $0x8] sm:$0xff]
        %v300 = vld [vmem:[#allocation2 + $0x18] sm:$0xff]
        %v301 = vld [vmem:[#allocation2 + $0x20] sm:$0xff]
        %v302 = vld [vmem:[#allocation2 + $0x30] sm:$0xff]
        %v303 = vld [vmem:[#allocation2 + $0x38] sm:$0xff]
        %v304 = vld [vmem:[#allocation2 + $0x48] sm:$0xff]
        %v305 = vld [vmem:[#allocation2 + $0x50] sm:$0xff]
        %v306 = vld [vmem:[#allocation2 + $0x60] sm:$0xff]
        %v307 = vld [vmem:[#allocation2 + $0x68] sm:$0xff]
        %v308 = vld [vmem:[#allocation2 + $0x78] sm:$0xff]
        %v309 = vld [vmem:[#allocation2 + $0x80] sm:$0xff]
        %v310 = vld [vmem:[#allocation2 + $0x90] sm:$0xff]
        %v311 = vld [vmem:[#allocation2 + $0x98] sm:$0xff]
        %v312 = vld [vmem:[#allocation2 + $0xa8] sm:$0xff]
        %v313 = vld [vmem:[#allocation2 + $0xb0] sm:$0xff]
        %v314 = vld [vmem:[#allocation2 + $0xc0] sm:$0xff]
        %v315 = vld [vmem:[#allocation2 + $0xc8] sm:$0xff]
        %v316 = vld [vmem:[#allocation2 + $0xd8] sm:$0xff]
        %v317 = vld [vmem:[#allocation2 + $0xe0] sm:$0xff]
        %v318 = vld [vmem:[#allocation2 + $0xf0] sm:$0xff]
        %v319 = vld [vmem:[#allocation2 + $0xf8] sm:$0xff]
        %v320 = vld [vmem:[#allocation2 + $0x108] sm:$0xff]
        %v321 = vld [vmem:[#allocation2 + $0x110] sm:$0xff]
        %v322 = vld [vmem:[#allocation2 + $0x120] sm:$0xff]
        %v323 = vld [vmem:[#allocation2 + $0x128] sm:$0xff]
        %v324 = vld [vmem:[#allocation2 + $0x138] sm:$0xff]
        %v325 = vld [vmem:[#allocation2 + $0x140] sm:$0xff]
        %v326 = vld [vmem:[#allocation2 + $0x150] sm:$0xff]
        %v327 = vld [vmem:[#allocation2 + $0x158] sm:$0xff]
        %v328 = vld [vmem:[#allocation2 + $0x168] sm:$0xff]
        %v329 = vld [vmem:[#allocation2 + $0x170] sm:$0xff]
        %v330 = vld [vmem:[%s1] sm:$0x7]
        %v332 = vsel %vm169, %v298, 0
        %v335 = vsel %vm169, %v299, 0
        %v338 = vsel %vm169, %v300, 0
        %v341 = vsel %vm169, %v301, 0
        %v344 = vsel %vm169, %v302, 0
        %v347 = vsel %vm169, %v303, 0
        %v350 = vsel %vm169, %v304, 0
        %v353 = vsel %vm169, %v305, 0
        %v356 = vsel %vm169, %v306, 0
        %v359 = vsel %vm169, %v307, 0
        %v362 = vsel %vm169, %v308, 0
        %v365 = vsel %vm169, %v309, 0
        %v368 = vsel %vm169, %v310, 0
        %v371 = vsel %vm169, %v311, 0
        %v374 = vsel %vm169, %v312, 0
        %v377 = vsel %vm169, %v313, 0
        %v380 = vsel %vm169, %v314, 0
        %v383 = vsel %vm169, %v315, 0
        %v386 = vsel %vm169, %v316, 0
        %v389 = vsel %vm169, %v317, 0
        %v392 = vsel %vm169, %v318, 0
        %v395 = vsel %vm169, %v319, 0
        %v398 = vsel %vm169, %v320, 0
        %v401 = vsel %vm169, %v321, 0
        %v404 = vsel %vm169, %v322, 0
        %v407 = vsel %vm169, %v323, 0
        %v410 = vsel %vm169, %v324, 0
        %v413 = vsel %vm169, %v325, 0
        %v416 = vsel %vm169, %v326, 0
        %v419 = vsel %vm169, %v327, 0
        %v422 = vsel %vm169, %v328, 0
        %v425 = vsel %vm169, %v329, 0
        %vm427 = vcmask 1042432
        %v429 = vsel %vm427, %v330, 0
        %431 = vmatprep.subr.mxu0 0.0
        %432 = vmatpush1.msra.mxu0 0.0
        %433 = vmatprep.subr.mxu0 0.0
        %434 = vmatpush1.msra.mxu0 0.0
        %435 = vmatprep.subr.mxu0 0.0
        %436 = vmatpush1.msra.mxu0 0.0
        %437 = vmatprep.subr.mxu0 0.0
        %438 = vmatpush1.msra.mxu0 0.0
        %439 = vmatprep.subr.mxu0 0.0
        %440 = vmatpush1.msra.mxu0 0.0
        %441 = vmatprep.subr.mxu0 0.0
        %442 = vmatpush1.msra.mxu0 0.0
        %443 = vmatprep.subr.mxu0 0.0
        %444 = vmatpush1.msra.mxu0 0.0
        %445 = vmatprep.subr.mxu0 0.0
        %446 = vmatpush1.msra.mxu0 0.0
        %447 = vmatprep.subr.mxu0 0.0
        %448 = vmatpush1.msra.mxu0 0.0
        %449 = vmatprep.subr.mxu0 0.0
        %450 = vmatpush1.msra.mxu0 0.0
        %451 = vmatprep.subr.mxu0 0.0
        %452 = vmatpush1.msra.mxu0 0.0
        %453 = vmatprep.subr.mxu0 0.0
        %454 = vmatpush1.msra.mxu0 0.0
        %455 = vmatprep.subr.mxu0 0.0
        %456 = vmatpush1.msra.mxu0 0.0
        %457 = vmatprep.subr.mxu0 0.0
        %458 = vmatpush1.msra.mxu0 0.0
        %459 = vmatprep.subr.mxu0 0.0
        %460 = vmatpush1.msra.mxu0 0.0
        %461 = vmatprep.subr.mxu0 0.0
        %462 = vmatpush1.msra.mxu0 %v429
        %463 = vmatprep.subr.mxu0 0.0
        %464 = vmatpush2.msra.mxu0 0.0
        %465 = vmatprep.subr.mxu0 0.0
        %466 = vmatpush2.msra.mxu0 0.0
        %467 = vmatprep.subr.mxu0 0.0
        %468 = vmatpush2.msra.mxu0 0.0
        %469 = vmatprep.subr.mxu0 0.0
        %470 = vmatpush2.msra.mxu0 0.0
        %471 = vmatprep.subr.mxu0 0.0
        %472 = vmatpush2.msra.mxu0 0.0
        %473 = vmatprep.subr.mxu0 0.0
        %474 = vmatpush2.msra.mxu0 0.0
        %475 = vmatprep.subr.mxu0 0.0
        %476 = vmatpush2.msra.mxu0 0.0
        %477 = vmatprep.subr.mxu0 0.0
        %478 = vmatpush2.msra.mxu0 0.0
        %479 = vmatprep.subr.mxu0 0.0
        %480 = vmatpush2.msra.mxu0 0.0
        %481 = vmatprep.subr.mxu0 0.0
        %482 = vmatpush2.msra.mxu0 0.0
        %483 = vmatprep.subr.mxu0 0.0
        %484 = vmatpush2.msra.mxu0 0.0
        %485 = vmatprep.subr.mxu0 0.0
        %486 = vmatpush2.msra.mxu0 0.0
        %487 = vmatprep.subr.mxu0 0.0
        %488 = vmatpush2.msra.mxu0 0.0
        %489 = vmatprep.subr.mxu0 0.0
        %490 = vmatpush2.msra.mxu0 0.0
        %491 = vmatprep.subr.mxu0 0.0
        %492 = vmatpush2.msra.mxu0 0.0
        %493 = vmatprep.subr.mxu0 0.0
        %494 = vmatpush2.msra.mxu0 0.0
        %495 = vmatprep.mubr.f32.mxu0 0.0
        %496 = vmatmul.mubr.f32.gmra.mxu0 %v332
        %v497 = vpop.f32.mrf.mxu0
        %v498 = vadd.f32 0.0, %v497
        %v499 = vpop.f32.mrf.mxu0
        %500 = vmatprep.mubr.f32.mxu0 0.0
        %501 = vmatmul.mubr.f32.gmra.mxu0 %v335
        %v502 = vpop.f32.mrf.mxu0
        %v503 = vadd.f32 0.0, %v502
        %v504 = vpop.f32.mrf.mxu0
        %505 = vmatprep.mubr.f32.mxu0 0.0
        %506 = vmatmul.mubr.f32.gmra.mxu0 %v338
        %v507 = vpop.f32.mrf.mxu0
        %v508 = vadd.f32 0.0, %v507
        %v509 = vpop.f32.mrf.mxu0
        %510 = vmatprep.mubr.f32.mxu0 0.0
        %511 = vmatmul.mubr.f32.gmra.mxu0 %v341
        %v512 = vpop.f32.mrf.mxu0
        %v513 = vadd.f32 0.0, %v512
        %v514 = vpop.f32.mrf.mxu0
        %515 = vmatprep.mubr.f32.mxu0 0.0
        %516 = vmatmul.mubr.f32.gmra.mxu0 %v344
        %v517 = vpop.f32.mrf.mxu0
        %v518 = vadd.f32 0.0, %v517
        %v519 = vpop.f32.mrf.mxu0
        %520 = vmatprep.mubr.f32.mxu0 0.0
        %521 = vmatmul.mubr.f32.gmra.mxu0 %v347
        %v522 = vpop.f32.mrf.mxu0
        %v523 = vadd.f32 0.0, %v522
        %v524 = vpop.f32.mrf.mxu0
        %525 = vmatprep.mubr.f32.mxu0 0.0
        %526 = vmatmul.mubr.f32.gmra.mxu0 %v350
        %v527 = vpop.f32.mrf.mxu0
        %v528 = vadd.f32 0.0, %v527
        %v529 = vpop.f32.mrf.mxu0
        %530 = vmatprep.mubr.f32.mxu0 0.0
        %531 = vmatmul.mubr.f32.gmra.mxu0 %v353
        %v532 = vpop.f32.mrf.mxu0
        %v533 = vadd.f32 0.0, %v532
        %v534 = vpop.f32.mrf.mxu0
        %535 = vmatprep.mubr.f32.mxu0 0.0
        %536 = vmatmul.mubr.f32.gmra.mxu0 %v356
        %v537 = vpop.f32.mrf.mxu0
        %v538 = vadd.f32 0.0, %v537
        %v539 = vpop.f32.mrf.mxu0
        %540 = vmatprep.mubr.f32.mxu0 0.0
        %541 = vmatmul.mubr.f32.gmra.mxu0 %v359
        %v542 = vpop.f32.mrf.mxu0
        %v543 = vadd.f32 0.0, %v542
        %v544 = vpop.f32.mrf.mxu0
        %545 = vmatprep.mubr.f32.mxu0 0.0
        %546 = vmatmul.mubr.f32.gmra.mxu0 %v362
        %v547 = vpop.f32.mrf.mxu0
        %v548 = vadd.f32 0.0, %v547
        %v549 = vpop.f32.mrf.mxu0
        %550 = vmatprep.mubr.f32.mxu0 0.0
        %551 = vmatmul.mubr.f32.gmra.mxu0 %v365
        %v552 = vpop.f32.mrf.mxu0
        %v553 = vadd.f32 0.0, %v552
        %v554 = vpop.f32.mrf.mxu0
        %555 = vmatprep.mubr.f32.mxu0 0.0
        %556 = vmatmul.mubr.f32.gmra.mxu0 %v368
        %v557 = vpop.f32.mrf.mxu0
        %v558 = vadd.f32 0.0, %v557
        %v559 = vpop.f32.mrf.mxu0
        %560 = vmatprep.mubr.f32.mxu0 0.0
        %561 = vmatmul.mubr.f32.gmra.mxu0 %v371
        %v562 = vpop.f32.mrf.mxu0
        %v563 = vadd.f32 0.0, %v562
        %v564 = vpop.f32.mrf.mxu0
        %565 = vmatprep.mubr.f32.mxu0 0.0
        %566 = vmatmul.mubr.f32.gmra.mxu0 %v374
        %v567 = vpop.f32.mrf.mxu0
        %v568 = vadd.f32 0.0, %v567
        %v569 = vpop.f32.mrf.mxu0
        %570 = vmatprep.mubr.f32.mxu0 0.0
        %571 = vmatmul.mubr.f32.gmra.mxu0 %v377
        %v572 = vpop.f32.mrf.mxu0
        %v573 = vadd.f32 0.0, %v572
        %v574 = vpop.f32.mrf.mxu0
        %575 = vmatprep.mubr.f32.mxu0 0.0
        %576 = vmatmul.mubr.f32.gmra.mxu0 %v380
        %v577 = vpop.f32.mrf.mxu0
        %v578 = vadd.f32 0.0, %v577
        %v579 = vpop.f32.mrf.mxu0
        %580 = vmatprep.mubr.f32.mxu0 0.0
        %581 = vmatmul.mubr.f32.gmra.mxu0 %v383
        %v582 = vpop.f32.mrf.mxu0
        %v583 = vadd.f32 0.0, %v582
        %v584 = vpop.f32.mrf.mxu0
        %585 = vmatprep.mubr.f32.mxu0 0.0
        %586 = vmatmul.mubr.f32.gmra.mxu0 %v386
        %v587 = vpop.f32.mrf.mxu0
        %v588 = vadd.f32 0.0, %v587
        %v589 = vpop.f32.mrf.mxu0
        %590 = vmatprep.mubr.f32.mxu0 0.0
        %591 = vmatmul.mubr.f32.gmra.mxu0 %v389
        %v592 = vpop.f32.mrf.mxu0
        %v593 = vadd.f32 0.0, %v592
        %v594 = vpop.f32.mrf.mxu0
        %595 = vmatprep.mubr.f32.mxu0 0.0
        %596 = vmatmul.mubr.f32.gmra.mxu0 %v392
        %v597 = vpop.f32.mrf.mxu0
        %v598 = vadd.f32 0.0, %v597
        %v599 = vpop.f32.mrf.mxu0
        %600 = vmatprep.mubr.f32.mxu0 0.0
        %601 = vmatmul.mubr.f32.gmra.mxu0 %v395
        %v602 = vpop.f32.mrf.mxu0
        %v603 = vadd.f32 0.0, %v602
        %v604 = vpop.f32.mrf.mxu0
        %605 = vmatprep.mubr.f32.mxu0 0.0
        %606 = vmatmul.mubr.f32.gmra.mxu0 %v398
        %v607 = vpop.f32.mrf.mxu0
        %v608 = vadd.f32 0.0, %v607
        %v609 = vpop.f32.mrf.mxu0
        %610 = vmatprep.mubr.f32.mxu0 0.0
        %611 = vmatmul.mubr.f32.gmra.mxu0 %v401
        %v612 = vpop.f32.mrf.mxu0
        %v613 = vadd.f32 0.0, %v612
        %v614 = vpop.f32.mrf.mxu0
        %615 = vmatprep.mubr.f32.mxu0 0.0
        %616 = vmatmul.mubr.f32.gmra.mxu0 %v404
        %v617 = vpop.f32.mrf.mxu0
        %v618 = vadd.f32 0.0, %v617
        %v619 = vpop.f32.mrf.mxu0
        %620 = vmatprep.mubr.f32.mxu0 0.0
        %621 = vmatmul.mubr.f32.gmra.mxu0 %v407
        %v622 = vpop.f32.mrf.mxu0
        %v623 = vadd.f32 0.0, %v622
        %v624 = vpop.f32.mrf.mxu0
        %625 = vmatprep.mubr.f32.mxu0 0.0
        %626 = vmatmul.mubr.f32.gmra.mxu0 %v410
        %v627 = vpop.f32.mrf.mxu0
        %v628 = vadd.f32 0.0, %v627
        %v629 = vpop.f32.mrf.mxu0
        %630 = vmatprep.mubr.f32.mxu0 0.0
        %631 = vmatmul.mubr.f32.gmra.mxu0 %v413
        %v632 = vpop.f32.mrf.mxu0
        %v633 = vadd.f32 0.0, %v632
        %v634 = vpop.f32.mrf.mxu0
        %635 = vmatprep.mubr.f32.mxu0 0.0
        %636 = vmatmul.mubr.f32.gmra.mxu0 %v416
        %v637 = vpop.f32.mrf.mxu0
        %v638 = vadd.f32 0.0, %v637
        %v639 = vpop.f32.mrf.mxu0
        %640 = vmatprep.mubr.f32.mxu0 0.0
        %641 = vmatmul.mubr.f32.gmra.mxu0 %v419
        %v642 = vpop.f32.mrf.mxu0
        %v643 = vadd.f32 0.0, %v642
        %v644 = vpop.f32.mrf.mxu0
        %645 = vmatprep.mubr.f32.mxu0 0.0
        %646 = vmatmul.mubr.f32.gmra.mxu0 %v422
        %v647 = vpop.f32.mrf.mxu0
        %v648 = vadd.f32 0.0, %v647
        %v649 = vpop.f32.mrf.mxu0
        %650 = vmatprep.mubr.f32.mxu0 0.0
        %651 = vmatmul.mubr.f32.gmra.mxu0 %v425
        %v652 = vpop.f32.mrf.mxu0
        %v653 = vadd.f32 0.0, %v652
        %v654 = vpop.f32.mrf.mxu0
        %655 = vdwg.mxu0
        %v656 = vadd.f32 %v297, %v498
        %v657 = vadd.f32 %v297, %v503
        %v658 = vadd.f32 %v297, %v508
        %v659 = vadd.f32 %v297, %v513
        %v660 = vadd.f32 %v297, %v518
        %v661 = vadd.f32 %v297, %v523
        %v662 = vadd.f32 %v297, %v528
        %v663 = vadd.f32 %v297, %v533
        %v664 = vadd.f32 %v297, %v538
        %v665 = vadd.f32 %v297, %v543
        %v666 = vadd.f32 %v297, %v548
        %v667 = vadd.f32 %v297, %v553
        %v668 = vadd.f32 %v297, %v558
        %v669 = vadd.f32 %v297, %v563
        %v670 = vadd.f32 %v297, %v568
        %v671 = vadd.f32 %v297, %v573
        %v672 = vadd.f32 %v297, %v578
        %v673 = vadd.f32 %v297, %v583
        %v674 = vadd.f32 %v297, %v588
        %v675 = vadd.f32 %v297, %v593
        %v676 = vadd.f32 %v297, %v598
        %v677 = vadd.f32 %v297, %v603
        %v678 = vadd.f32 %v297, %v608
        %v679 = vadd.f32 %v297, %v613
        %v680 = vadd.f32 %v297, %v618
        %v681 = vadd.f32 %v297, %v623
        %v682 = vadd.f32 %v297, %v628
        %v683 = vadd.f32 %v297, %v633
        %v684 = vadd.f32 %v297, %v638
        %v685 = vadd.f32 %v297, %v643
        %v686 = vadd.f32 %v297, %v648
        %v687 = vadd.f32 %v297, %v653
        %v688 = vld [vmem:[#allocation2 + $0x1] sm:$0xff]
        %v689 = vld [vmem:[#allocation2 + $0x9] sm:$0xff]
        %v690 = vld [vmem:[#allocation2 + $0x19] sm:$0xff]
        %v691 = vld [vmem:[#allocation2 + $0x21] sm:$0xff]
        %v692 = vld [vmem:[#allocation2 + $0x31] sm:$0xff]
        %v693 = vld [vmem:[#allocation2 + $0x39] sm:$0xff]
        %v694 = vld [vmem:[#allocation2 + $0x49] sm:$0xff]
        %v695 = vld [vmem:[#allocation2 + $0x51] sm:$0xff]
        %v696 = vld [vmem:[#allocation2 + $0x61] sm:$0xff]
        %v697 = vld [vmem:[#allocation2 + $0x69] sm:$0xff]
        %v698 = vld [vmem:[#allocation2 + $0x79] sm:$0xff]
        %v699 = vld [vmem:[#allocation2 + $0x81] sm:$0xff]
        %v700 = vld [vmem:[#allocation2 + $0x91] sm:$0xff]
        %v701 = vld [vmem:[#allocation2 + $0x99] sm:$0xff]
        %v702 = vld [vmem:[#allocation2 + $0xa9] sm:$0xff]
        %v703 = vld [vmem:[#allocation2 + $0xb1] sm:$0xff]
        %v704 = vld [vmem:[#allocation2 + $0xc1] sm:$0xff]
        %v705 = vld [vmem:[#allocation2 + $0xc9] sm:$0xff]
        %v706 = vld [vmem:[#allocation2 + $0xd9] sm:$0xff]
        %v707 = vld [vmem:[#allocation2 + $0xe1] sm:$0xff]
        %v708 = vld [vmem:[#allocation2 + $0xf1] sm:$0xff]
        %v709 = vld [vmem:[#allocation2 + $0xf9] sm:$0xff]
        %v710 = vld [vmem:[#allocation2 + $0x109] sm:$0xff]
        %v711 = vld [vmem:[#allocation2 + $0x111] sm:$0xff]
        %v712 = vld [vmem:[#allocation2 + $0x121] sm:$0xff]
        %v713 = vld [vmem:[#allocation2 + $0x129] sm:$0xff]
        %v714 = vld [vmem:[#allocation2 + $0x139] sm:$0xff]
        %v715 = vld [vmem:[#allocation2 + $0x141] sm:$0xff]
        %v716 = vld [vmem:[#allocation2 + $0x151] sm:$0xff]
        %v717 = vld [vmem:[#allocation2 + $0x159] sm:$0xff]
        %v718 = vld [vmem:[#allocation2 + $0x169] sm:$0xff]
        %v719 = vld [vmem:[#allocation2 + $0x171] sm:$0xff]
        %s720 = scalar_lea.vmem %s1, 4
        %v721 = vld [vmem:[%s720] sm:$0x7]
        %v723 = vsel %vm169, %v688, 0
        %v726 = vsel %vm169, %v689, 0
        %v729 = vsel %vm169, %v690, 0
        %v732 = vsel %vm169, %v691, 0
        %v735 = vsel %vm169, %v692, 0
        %v738 = vsel %vm169, %v693, 0
        %v741 = vsel %vm169, %v694, 0
        %v744 = vsel %vm169, %v695, 0
        %v747 = vsel %vm169, %v696, 0
        %v750 = vsel %vm169, %v697, 0
        %v753 = vsel %vm169, %v698, 0
        %v756 = vsel %vm169, %v699, 0
        %v759 = vsel %vm169, %v700, 0
        %v762 = vsel %vm169, %v701, 0
        %v765 = vsel %vm169, %v702, 0
        %v768 = vsel %vm169, %v703, 0
        %v771 = vsel %vm169, %v704, 0
        %v774 = vsel %vm169, %v705, 0
        %v777 = vsel %vm169, %v706, 0
        %v780 = vsel %vm169, %v707, 0
        %v783 = vsel %vm169, %v708, 0
        %v786 = vsel %vm169, %v709, 0
        %v789 = vsel %vm169, %v710, 0
        %v792 = vsel %vm169, %v711, 0
        %v795 = vsel %vm169, %v712, 0
        %v798 = vsel %vm169, %v713, 0
        %v801 = vsel %vm169, %v714, 0
        %v804 = vsel %vm169, %v715, 0
        %v807 = vsel %vm169, %v716, 0
        %v810 = vsel %vm169, %v717, 0
        %v813 = vsel %vm169, %v718, 0
        %v816 = vsel %vm169, %v719, 0
        %v819 = vsel %vm427, %v721, 0
        %821 = vmatprep.subr.mxu0 0.0
        %822 = vmatpush1.msra.mxu0 0.0
        %823 = vmatprep.subr.mxu0 0.0
        %824 = vmatpush1.msra.mxu0 0.0
        %825 = vmatprep.subr.mxu0 0.0
        %826 = vmatpush1.msra.mxu0 0.0
        %827 = vmatprep.subr.mxu0 0.0
        %828 = vmatpush1.msra.mxu0 0.0
        %829 = vmatprep.subr.mxu0 0.0
        %830 = vmatpush1.msra.mxu0 0.0
        %831 = vmatprep.subr.mxu0 0.0
        %832 = vmatpush1.msra.mxu0 0.0
        %833 = vmatprep.subr.mxu0 0.0
        %834 = vmatpush1.msra.mxu0 0.0
        %835 = vmatprep.subr.mxu0 0.0
        %836 = vmatpush1.msra.mxu0 0.0
        %837 = vmatprep.subr.mxu0 0.0
        %838 = vmatpush1.msra.mxu0 0.0
        %839 = vmatprep.subr.mxu0 0.0
        %840 = vmatpush1.msra.mxu0 0.0
        %841 = vmatprep.subr.mxu0 0.0
        %842 = vmatpush1.msra.mxu0 0.0
        %843 = vmatprep.subr.mxu0 0.0
        %844 = vmatpush1.msra.mxu0 0.0
        %845 = vmatprep.subr.mxu0 0.0
        %846 = vmatpush1.msra.mxu0 0.0
        %847 = vmatprep.subr.mxu0 0.0
        %848 = vmatpush1.msra.mxu0 0.0
        %849 = vmatprep.subr.mxu0 0.0
        %850 = vmatpush1.msra.mxu0 0.0
        %851 = vmatprep.subr.mxu0 0.0
        %852 = vmatpush1.msra.mxu0 %v819
        %853 = vmatprep.subr.mxu0 0.0
        %854 = vmatpush2.msra.mxu0 0.0
        %855 = vmatprep.subr.mxu0 0.0
        %856 = vmatpush2.msra.mxu0 0.0
        %857 = vmatprep.subr.mxu0 0.0
        %858 = vmatpush2.msra.mxu0 0.0
        %859 = vmatprep.subr.mxu0 0.0
        %860 = vmatpush2.msra.mxu0 0.0
        %861 = vmatprep.subr.mxu0 0.0
        %862 = vmatpush2.msra.mxu0 0.0
        %863 = vmatprep.subr.mxu0 0.0
        %864 = vmatpush2.msra.mxu0 0.0
        %865 = vmatprep.subr.mxu0 0.0
        %866 = vmatpush2.msra.mxu0 0.0
        %867 = vmatprep.subr.mxu0 0.0
        %868 = vmatpush2.msra.mxu0 0.0
        %869 = vmatprep.subr.mxu0 0.0
        %870 = vmatpush2.msra.mxu0 0.0
        %871 = vmatprep.subr.mxu0 0.0
        %872 = vmatpush2.msra.mxu0 0.0
        %873 = vmatprep.subr.mxu0 0.0
        %874 = vmatpush2.msra.mxu0 0.0
        %875 = vmatprep.subr.mxu0 0.0
        %876 = vmatpush2.msra.mxu0 0.0
        %877 = vmatprep.subr.mxu0 0.0
        %878 = vmatpush2.msra.mxu0 0.0
        %879 = vmatprep.subr.mxu0 0.0
        %880 = vmatpush2.msra.mxu0 0.0
        %881 = vmatprep.subr.mxu0 0.0
        %882 = vmatpush2.msra.mxu0 0.0
        %883 = vmatprep.subr.mxu0 0.0
        %884 = vmatpush2.msra.mxu0 0.0
        %885 = vmatprep.mubr.f32.mxu0 0.0
        %886 = vmatmul.mubr.f32.gmra.mxu0 %v723
        %v887 = vpop.f32.mrf.mxu0
        %v888 = vadd.f32 0.0, %v887
        %v889 = vpop.f32.mrf.mxu0
        %890 = vmatprep.mubr.f32.mxu0 0.0
        %891 = vmatmul.mubr.f32.gmra.mxu0 %v726
        %v892 = vpop.f32.mrf.mxu0
        %v893 = vadd.f32 0.0, %v892
        %v894 = vpop.f32.mrf.mxu0
        %895 = vmatprep.mubr.f32.mxu0 0.0
        %896 = vmatmul.mubr.f32.gmra.mxu0 %v729
        %v897 = vpop.f32.mrf.mxu0
        %v898 = vadd.f32 0.0, %v897
        %v899 = vpop.f32.mrf.mxu0
        %900 = vmatprep.mubr.f32.mxu0 0.0
        %901 = vmatmul.mubr.f32.gmra.mxu0 %v732
        %v902 = vpop.f32.mrf.mxu0
        %v903 = vadd.f32 0.0, %v902
        %v904 = vpop.f32.mrf.mxu0
        %905 = vmatprep.mubr.f32.mxu0 0.0
        %906 = vmatmul.mubr.f32.gmra.mxu0 %v735
        %v907 = vpop.f32.mrf.mxu0
        %v908 = vadd.f32 0.0, %v907
        %v909 = vpop.f32.mrf.mxu0
        %910 = vmatprep.mubr.f32.mxu0 0.0
        %911 = vmatmul.mubr.f32.gmra.mxu0 %v738
        %v912 = vpop.f32.mrf.mxu0
        %v913 = vadd.f32 0.0, %v912
        %v914 = vpop.f32.mrf.mxu0
        %915 = vmatprep.mubr.f32.mxu0 0.0
        %916 = vmatmul.mubr.f32.gmra.mxu0 %v741
        %v917 = vpop.f32.mrf.mxu0
        %v918 = vadd.f32 0.0, %v917
        %v919 = vpop.f32.mrf.mxu0
        %920 = vmatprep.mubr.f32.mxu0 0.0
        %921 = vmatmul.mubr.f32.gmra.mxu0 %v744
        %v922 = vpop.f32.mrf.mxu0
        %v923 = vadd.f32 0.0, %v922
        %v924 = vpop.f32.mrf.mxu0
        %925 = vmatprep.mubr.f32.mxu0 0.0
        %926 = vmatmul.mubr.f32.gmra.mxu0 %v747
        %v927 = vpop.f32.mrf.mxu0
        %v928 = vadd.f32 0.0, %v927
        %v929 = vpop.f32.mrf.mxu0
        %930 = vmatprep.mubr.f32.mxu0 0.0
        %931 = vmatmul.mubr.f32.gmra.mxu0 %v750
        %v932 = vpop.f32.mrf.mxu0
        %v933 = vadd.f32 0.0, %v932
        %v934 = vpop.f32.mrf.mxu0
        %935 = vmatprep.mubr.f32.mxu0 0.0
        %936 = vmatmul.mubr.f32.gmra.mxu0 %v753
        %v937 = vpop.f32.mrf.mxu0
        %v938 = vadd.f32 0.0, %v937
        %v939 = vpop.f32.mrf.mxu0
        %940 = vmatprep.mubr.f32.mxu0 0.0
        %941 = vmatmul.mubr.f32.gmra.mxu0 %v756
        %v942 = vpop.f32.mrf.mxu0
        %v943 = vadd.f32 0.0, %v942
        %v944 = vpop.f32.mrf.mxu0
        %945 = vmatprep.mubr.f32.mxu0 0.0
        %946 = vmatmul.mubr.f32.gmra.mxu0 %v759
        %v947 = vpop.f32.mrf.mxu0
        %v948 = vadd.f32 0.0, %v947
        %v949 = vpop.f32.mrf.mxu0
        %950 = vmatprep.mubr.f32.mxu0 0.0
        %951 = vmatmul.mubr.f32.gmra.mxu0 %v762
        %v952 = vpop.f32.mrf.mxu0
        %v953 = vadd.f32 0.0, %v952
        %v954 = vpop.f32.mrf.mxu0
        %955 = vmatprep.mubr.f32.mxu0 0.0
        %956 = vmatmul.mubr.f32.gmra.mxu0 %v765
        %v957 = vpop.f32.mrf.mxu0
        %v958 = vadd.f32 0.0, %v957
        %v959 = vpop.f32.mrf.mxu0
        %960 = vmatprep.mubr.f32.mxu0 0.0
        %961 = vmatmul.mubr.f32.gmra.mxu0 %v768
        %v962 = vpop.f32.mrf.mxu0
        %v963 = vadd.f32 0.0, %v962
        %v964 = vpop.f32.mrf.mxu0
        %965 = vmatprep.mubr.f32.mxu0 0.0
        %966 = vmatmul.mubr.f32.gmra.mxu0 %v771
        %v967 = vpop.f32.mrf.mxu0
        %v968 = vadd.f32 0.0, %v967
        %v969 = vpop.f32.mrf.mxu0
        %970 = vmatprep.mubr.f32.mxu0 0.0
        %971 = vmatmul.mubr.f32.gmra.mxu0 %v774
        %v972 = vpop.f32.mrf.mxu0
        %v973 = vadd.f32 0.0, %v972
        %v974 = vpop.f32.mrf.mxu0
        %975 = vmatprep.mubr.f32.mxu0 0.0
        %976 = vmatmul.mubr.f32.gmra.mxu0 %v777
        %v977 = vpop.f32.mrf.mxu0
        %v978 = vadd.f32 0.0, %v977
        %v979 = vpop.f32.mrf.mxu0
        %980 = vmatprep.mubr.f32.mxu0 0.0
        %981 = vmatmul.mubr.f32.gmra.mxu0 %v780
        %v982 = vpop.f32.mrf.mxu0
        %v983 = vadd.f32 0.0, %v982
        %v984 = vpop.f32.mrf.mxu0
        %985 = vmatprep.mubr.f32.mxu0 0.0
        %986 = vmatmul.mubr.f32.gmra.mxu0 %v783
        %v987 = vpop.f32.mrf.mxu0
        %v988 = vadd.f32 0.0, %v987
        %v989 = vpop.f32.mrf.mxu0
        %990 = vmatprep.mubr.f32.mxu0 0.0
        %991 = vmatmul.mubr.f32.gmra.mxu0 %v786
        %v992 = vpop.f32.mrf.mxu0
        %v993 = vadd.f32 0.0, %v992
        %v994 = vpop.f32.mrf.mxu0
        %995 = vmatprep.mubr.f32.mxu0 0.0
        %996 = vmatmul.mubr.f32.gmra.mxu0 %v789
        %v997 = vpop.f32.mrf.mxu0
        %v998 = vadd.f32 0.0, %v997
        %v999 = vpop.f32.mrf.mxu0
        %1000 = vmatprep.mubr.f32.mxu0 0.0
        %1001 = vmatmul.mubr.f32.gmra.mxu0 %v792
        %v1002 = vpop.f32.mrf.mxu0
        %v1003 = vadd.f32 0.0, %v1002
        %v1004 = vpop.f32.mrf.mxu0
        %1005 = vmatprep.mubr.f32.mxu0 0.0
        %1006 = vmatmul.mubr.f32.gmra.mxu0 %v795
        %v1007 = vpop.f32.mrf.mxu0
        %v1008 = vadd.f32 0.0, %v1007
        %v1009 = vpop.f32.mrf.mxu0
        %1010 = vmatprep.mubr.f32.mxu0 0.0
        %1011 = vmatmul.mubr.f32.gmra.mxu0 %v798
        %v1012 = vpop.f32.mrf.mxu0
        %v1013 = vadd.f32 0.0, %v1012
        %v1014 = vpop.f32.mrf.mxu0
        %1015 = vmatprep.mubr.f32.mxu0 0.0
        %1016 = vmatmul.mubr.f32.gmra.mxu0 %v801
        %v1017 = vpop.f32.mrf.mxu0
        %v1018 = vadd.f32 0.0, %v1017
        %v1019 = vpop.f32.mrf.mxu0
        %1020 = vmatprep.mubr.f32.mxu0 0.0
        %1021 = vmatmul.mubr.f32.gmra.mxu0 %v804
        %v1022 = vpop.f32.mrf.mxu0
        %v1023 = vadd.f32 0.0, %v1022
        %v1024 = vpop.f32.mrf.mxu0
        %1025 = vmatprep.mubr.f32.mxu0 0.0
        %1026 = vmatmul.mubr.f32.gmra.mxu0 %v807
        %v1027 = vpop.f32.mrf.mxu0
        %v1028 = vadd.f32 0.0, %v1027
        %v1029 = vpop.f32.mrf.mxu0
        %1030 = vmatprep.mubr.f32.mxu0 0.0
        %1031 = vmatmul.mubr.f32.gmra.mxu0 %v810
        %v1032 = vpop.f32.mrf.mxu0
        %v1033 = vadd.f32 0.0, %v1032
        %v1034 = vpop.f32.mrf.mxu0
        %1035 = vmatprep.mubr.f32.mxu0 0.0
        %1036 = vmatmul.mubr.f32.gmra.mxu0 %v813
        %v1037 = vpop.f32.mrf.mxu0
        %v1038 = vadd.f32 0.0, %v1037
        %v1039 = vpop.f32.mrf.mxu0
        %1040 = vmatprep.mubr.f32.mxu0 0.0
        %1041 = vmatmul.mubr.f32.gmra.mxu0 %v816
        %v1042 = vpop.f32.mrf.mxu0
        %v1043 = vadd.f32 0.0, %v1042
        %v1044 = vpop.f32.mrf.mxu0
        %1045 = vdwg.mxu0
        %v1046 = vadd.f32 %v656, %v888
        %v1047 = vadd.f32 %v657, %v893
        %v1048 = vadd.f32 %v658, %v898
        %v1049 = vadd.f32 %v659, %v903
        %v1050 = vadd.f32 %v660, %v908
        %v1051 = vadd.f32 %v661, %v913
        %v1052 = vadd.f32 %v662, %v918
        %v1053 = vadd.f32 %v663, %v923
        %v1054 = vadd.f32 %v664, %v928
        %v1055 = vadd.f32 %v665, %v933
        %v1056 = vadd.f32 %v666, %v938
        %v1057 = vadd.f32 %v667, %v943
        %v1058 = vadd.f32 %v668, %v948
        %v1059 = vadd.f32 %v669, %v953
        %v1060 = vadd.f32 %v670, %v958
        %v1061 = vadd.f32 %v671, %v963
        %v1062 = vadd.f32 %v672, %v968
        %v1063 = vadd.f32 %v673, %v973
        %v1064 = vadd.f32 %v674, %v978
        %v1065 = vadd.f32 %v675, %v983
        %v1066 = vadd.f32 %v676, %v988
        %v1067 = vadd.f32 %v677, %v993
        %v1068 = vadd.f32 %v678, %v998
        %v1069 = vadd.f32 %v679, %v1003
        %v1070 = vadd.f32 %v680, %v1008
        %v1071 = vadd.f32 %v681, %v1013
        %v1072 = vadd.f32 %v682, %v1018
        %v1073 = vadd.f32 %v683, %v1023
        %v1074 = vadd.f32 %v684, %v1028
        %v1075 = vadd.f32 %v685, %v1033
        %v1076 = vadd.f32 %v686, %v1038
        %v1077 = vadd.f32 %v687, %v1043
        %v1078 = vld [vmem:[#allocation2 + $0x2] sm:$0xff]
        %v1079 = vld [vmem:[#allocation2 + $0xa] sm:$0xff]
        %v1080 = vld [vmem:[#allocation2 + $0x1a] sm:$0xff]
        %v1081 = vld [vmem:[#allocation2 + $0x22] sm:$0xff]
        %v1082 = vld [vmem:[#allocation2 + $0x32] sm:$0xff]
        %v1083 = vld [vmem:[#allocation2 + $0x3a] sm:$0xff]
        %v1084 = vld [vmem:[#allocation2 + $0x4a] sm:$0xff]
        %v1085 = vld [vmem:[#allocation2 + $0x52] sm:$0xff]
        %v1086 = vld [vmem:[#allocation2 + $0x62] sm:$0xff]
        %v1087 = vld [vmem:[#allocation2 + $0x6a] sm:$0xff]
        %v1088 = vld [vmem:[#allocation2 + $0x7a] sm:$0xff]
        %v1089 = vld [vmem:[#allocation2 + $0x82] sm:$0xff]
        %v1090 = vld [vmem:[#allocation2 + $0x92] sm:$0xff]
        %v1091 = vld [vmem:[#allocation2 + $0x9a] sm:$0xff]
        %v1092 = vld [vmem:[#allocation2 + $0xaa] sm:$0xff]
        %v1093 = vld [vmem:[#allocation2 + $0xb2] sm:$0xff]
        %v1094 = vld [vmem:[#allocation2 + $0xc2] sm:$0xff]
        %v1095 = vld [vmem:[#allocation2 + $0xca] sm:$0xff]
        %v1096 = vld [vmem:[#allocation2 + $0xda] sm:$0xff]
        %v1097 = vld [vmem:[#allocation2 + $0xe2] sm:$0xff]
        %v1098 = vld [vmem:[#allocation2 + $0xf2] sm:$0xff]
        %v1099 = vld [vmem:[#allocation2 + $0xfa] sm:$0xff]
        %v1100 = vld [vmem:[#allocation2 + $0x10a] sm:$0xff]
        %v1101 = vld [vmem:[#allocation2 + $0x112] sm:$0xff]
        %v1102 = vld [vmem:[#allocation2 + $0x122] sm:$0xff]
        %v1103 = vld [vmem:[#allocation2 + $0x12a] sm:$0xff]
        %v1104 = vld [vmem:[#allocation2 + $0x13a] sm:$0xff]
        %v1105 = vld [vmem:[#allocation2 + $0x142] sm:$0xff]
        %v1106 = vld [vmem:[#allocation2 + $0x152] sm:$0xff]
        %v1107 = vld [vmem:[#allocation2 + $0x15a] sm:$0xff]
        %v1108 = vld [vmem:[#allocation2 + $0x16a] sm:$0xff]
        %v1109 = vld [vmem:[#allocation2 + $0x172] sm:$0xff]
        %s1110 = scalar_lea.vmem %s1, 8
        %v1111 = vld [vmem:[%s1110] sm:$0x7]
        %v1113 = vsel %vm169, %v1078, 0
        %v1116 = vsel %vm169, %v1079, 0
        %v1119 = vsel %vm169, %v1080, 0
        %v1122 = vsel %vm169, %v1081, 0
        %v1125 = vsel %vm169, %v1082, 0
        %v1128 = vsel %vm169, %v1083, 0
        %v1131 = vsel %vm169, %v1084, 0
        %v1134 = vsel %vm169, %v1085, 0
        %v1137 = vsel %vm169, %v1086, 0
        %v1140 = vsel %vm169, %v1087, 0
        %v1143 = vsel %vm169, %v1088, 0
        %v1146 = vsel %vm169, %v1089, 0
        %v1149 = vsel %vm169, %v1090, 0
        %v1152 = vsel %vm169, %v1091, 0
        %v1155 = vsel %vm169, %v1092, 0
        %v1158 = vsel %vm169, %v1093, 0
        %v1161 = vsel %vm169, %v1094, 0
        %v1164 = vsel %vm169, %v1095, 0
        %v1167 = vsel %vm169, %v1096, 0
        %v1170 = vsel %vm169, %v1097, 0
        %v1173 = vsel %vm169, %v1098, 0
        %v1176 = vsel %vm169, %v1099, 0
        %v1179 = vsel %vm169, %v1100, 0
        %v1182 = vsel %vm169, %v1101, 0
        %v1185 = vsel %vm169, %v1102, 0
        %v1188 = vsel %vm169, %v1103, 0
        %v1191 = vsel %vm169, %v1104, 0
        %v1194 = vsel %vm169, %v1105, 0
        %v1197 = vsel %vm169, %v1106, 0
        %v1200 = vsel %vm169, %v1107, 0
        %v1203 = vsel %vm169, %v1108, 0
        %v1206 = vsel %vm169, %v1109, 0
        %v1209 = vsel %vm427, %v1111, 0
        %1211 = vmatprep.subr.mxu0 0.0
        %1212 = vmatpush1.msra.mxu0 0.0
        %1213 = vmatprep.subr.mxu0 0.0
        %1214 = vmatpush1.msra.mxu0 0.0
        %1215 = vmatprep.subr.mxu0 0.0
        %1216 = vmatpush1.msra.mxu0 0.0
        %1217 = vmatprep.subr.mxu0 0.0
        %1218 = vmatpush1.msra.mxu0 0.0
        %1219 = vmatprep.subr.mxu0 0.0
        %1220 = vmatpush1.msra.mxu0 0.0
        %1221 = vmatprep.subr.mxu0 0.0
        %1222 = vmatpush1.msra.mxu0 0.0
        %1223 = vmatprep.subr.mxu0 0.0
        %1224 = vmatpush1.msra.mxu0 0.0
        %1225 = vmatprep.subr.mxu0 0.0
        %1226 = vmatpush1.msra.mxu0 0.0
        %1227 = vmatprep.subr.mxu0 0.0
        %1228 = vmatpush1.msra.mxu0 0.0
        %1229 = vmatprep.subr.mxu0 0.0
        %1230 = vmatpush1.msra.mxu0 0.0
        %1231 = vmatprep.subr.mxu0 0.0
        %1232 = vmatpush1.msra.mxu0 0.0
        %1233 = vmatprep.subr.mxu0 0.0
        %1234 = vmatpush1.msra.mxu0 0.0
        %1235 = vmatprep.subr.mxu0 0.0
        %1236 = vmatpush1.msra.mxu0 0.0
        %1237 = vmatprep.subr.mxu0 0.0
        %1238 = vmatpush1.msra.mxu0 0.0
        %1239 = vmatprep.subr.mxu0 0.0
        %1240 = vmatpush1.msra.mxu0 0.0
        %1241 = vmatprep.subr.mxu0 0.0
        %1242 = vmatpush1.msra.mxu0 %v1209
        %1243 = vmatprep.subr.mxu0 0.0
        %1244 = vmatpush2.msra.mxu0 0.0
        %1245 = vmatprep.subr.mxu0 0.0
        %1246 = vmatpush2.msra.mxu0 0.0
        %1247 = vmatprep.subr.mxu0 0.0
        %1248 = vmatpush2.msra.mxu0 0.0
        %1249 = vmatprep.subr.mxu0 0.0
        %1250 = vmatpush2.msra.mxu0 0.0
        %1251 = vmatprep.subr.mxu0 0.0
        %1252 = vmatpush2.msra.mxu0 0.0
        %1253 = vmatprep.subr.mxu0 0.0
        %1254 = vmatpush2.msra.mxu0 0.0
        %1255 = vmatprep.subr.mxu0 0.0
        %1256 = vmatpush2.msra.mxu0 0.0
        %1257 = vmatprep.subr.mxu0 0.0
        %1258 = vmatpush2.msra.mxu0 0.0
        %1259 = vmatprep.subr.mxu0 0.0
        %1260 = vmatpush2.msra.mxu0 0.0
        %1261 = vmatprep.subr.mxu0 0.0
        %1262 = vmatpush2.msra.mxu0 0.0
        %1263 = vmatprep.subr.mxu0 0.0
        %1264 = vmatpush2.msra.mxu0 0.0
        %1265 = vmatprep.subr.mxu0 0.0
        %1266 = vmatpush2.msra.mxu0 0.0
        %1267 = vmatprep.subr.mxu0 0.0
        %1268 = vmatpush2.msra.mxu0 0.0
        %1269 = vmatprep.subr.mxu0 0.0
        %1270 = vmatpush2.msra.mxu0 0.0
        %1271 = vmatprep.subr.mxu0 0.0
        %1272 = vmatpush2.msra.mxu0 0.0
        %1273 = vmatprep.subr.mxu0 0.0
        %1274 = vmatpush2.msra.mxu0 0.0
        %1275 = vmatprep.mubr.f32.mxu0 0.0
        %1276 = vmatmul.mubr.f32.gmra.mxu0 %v1113
        %v1277 = vpop.f32.mrf.mxu0
        %v1278 = vadd.f32 0.0, %v1277
        %v1279 = vpop.f32.mrf.mxu0
        %1280 = vmatprep.mubr.f32.mxu0 0.0
        %1281 = vmatmul.mubr.f32.gmra.mxu0 %v1116
        %v1282 = vpop.f32.mrf.mxu0
        %v1283 = vadd.f32 0.0, %v1282
        %v1284 = vpop.f32.mrf.mxu0
        %1285 = vmatprep.mubr.f32.mxu0 0.0
        %1286 = vmatmul.mubr.f32.gmra.mxu0 %v1119
        %v1287 = vpop.f32.mrf.mxu0
        %v1288 = vadd.f32 0.0, %v1287
        %v1289 = vpop.f32.mrf.mxu0
        %1290 = vmatprep.mubr.f32.mxu0 0.0
        %1291 = vmatmul.mubr.f32.gmra.mxu0 %v1122
        %v1292 = vpop.f32.mrf.mxu0
        %v1293 = vadd.f32 0.0, %v1292
        %v1294 = vpop.f32.mrf.mxu0
        %1295 = vmatprep.mubr.f32.mxu0 0.0
        %1296 = vmatmul.mubr.f32.gmra.mxu0 %v1125
        %v1297 = vpop.f32.mrf.mxu0
        %v1298 = vadd.f32 0.0, %v1297
        %v1299 = vpop.f32.mrf.mxu0
        %1300 = vmatprep.mubr.f32.mxu0 0.0
        %1301 = vmatmul.mubr.f32.gmra.mxu0 %v1128
        %v1302 = vpop.f32.mrf.mxu0
        %v1303 = vadd.f32 0.0, %v1302
        %v1304 = vpop.f32.mrf.mxu0
        %1305 = vmatprep.mubr.f32.mxu0 0.0
        %1306 = vmatmul.mubr.f32.gmra.mxu0 %v1131
        %v1307 = vpop.f32.mrf.mxu0
        %v1308 = vadd.f32 0.0, %v1307
        %v1309 = vpop.f32.mrf.mxu0
        %1310 = vmatprep.mubr.f32.mxu0 0.0
        %1311 = vmatmul.mubr.f32.gmra.mxu0 %v1134
        %v1312 = vpop.f32.mrf.mxu0
        %v1313 = vadd.f32 0.0, %v1312
        %v1314 = vpop.f32.mrf.mxu0
        %1315 = vmatprep.mubr.f32.mxu0 0.0
        %1316 = vmatmul.mubr.f32.gmra.mxu0 %v1137
        %v1317 = vpop.f32.mrf.mxu0
        %v1318 = vadd.f32 0.0, %v1317
        %v1319 = vpop.f32.mrf.mxu0
        %1320 = vmatprep.mubr.f32.mxu0 0.0
        %1321 = vmatmul.mubr.f32.gmra.mxu0 %v1140
        %v1322 = vpop.f32.mrf.mxu0
        %v1323 = vadd.f32 0.0, %v1322
        %v1324 = vpop.f32.mrf.mxu0
        %1325 = vmatprep.mubr.f32.mxu0 0.0
        %1326 = vmatmul.mubr.f32.gmra.mxu0 %v1143
        %v1327 = vpop.f32.mrf.mxu0
        %v1328 = vadd.f32 0.0, %v1327
        %v1329 = vpop.f32.mrf.mxu0
        %1330 = vmatprep.mubr.f32.mxu0 0.0
        %1331 = vmatmul.mubr.f32.gmra.mxu0 %v1146
        %v1332 = vpop.f32.mrf.mxu0
        %v1333 = vadd.f32 0.0, %v1332
        %v1334 = vpop.f32.mrf.mxu0
        %1335 = vmatprep.mubr.f32.mxu0 0.0
        %1336 = vmatmul.mubr.f32.gmra.mxu0 %v1149
        %v1337 = vpop.f32.mrf.mxu0
        %v1338 = vadd.f32 0.0, %v1337
        %v1339 = vpop.f32.mrf.mxu0
        %1340 = vmatprep.mubr.f32.mxu0 0.0
        %1341 = vmatmul.mubr.f32.gmra.mxu0 %v1152
        %v1342 = vpop.f32.mrf.mxu0
        %v1343 = vadd.f32 0.0, %v1342
        %v1344 = vpop.f32.mrf.mxu0
        %1345 = vmatprep.mubr.f32.mxu0 0.0
        %1346 = vmatmul.mubr.f32.gmra.mxu0 %v1155
        %v1347 = vpop.f32.mrf.mxu0
        %v1348 = vadd.f32 0.0, %v1347
        %v1349 = vpop.f32.mrf.mxu0
        %1350 = vmatprep.mubr.f32.mxu0 0.0
        %1351 = vmatmul.mubr.f32.gmra.mxu0 %v1158
        %v1352 = vpop.f32.mrf.mxu0
        %v1353 = vadd.f32 0.0, %v1352
        %v1354 = vpop.f32.mrf.mxu0
        %1355 = vmatprep.mubr.f32.mxu0 0.0
        %1356 = vmatmul.mubr.f32.gmra.mxu0 %v1161
        %v1357 = vpop.f32.mrf.mxu0
        %v1358 = vadd.f32 0.0, %v1357
        %v1359 = vpop.f32.mrf.mxu0
        %1360 = vmatprep.mubr.f32.mxu0 0.0
        %1361 = vmatmul.mubr.f32.gmra.mxu0 %v1164
        %v1362 = vpop.f32.mrf.mxu0
        %v1363 = vadd.f32 0.0, %v1362
        %v1364 = vpop.f32.mrf.mxu0
        %1365 = vmatprep.mubr.f32.mxu0 0.0
        %1366 = vmatmul.mubr.f32.gmra.mxu0 %v1167
        %v1367 = vpop.f32.mrf.mxu0
        %v1368 = vadd.f32 0.0, %v1367
        %v1369 = vpop.f32.mrf.mxu0
        %1370 = vmatprep.mubr.f32.mxu0 0.0
        %1371 = vmatmul.mubr.f32.gmra.mxu0 %v1170
        %v1372 = vpop.f32.mrf.mxu0
        %v1373 = vadd.f32 0.0, %v1372
        %v1374 = vpop.f32.mrf.mxu0
        %1375 = vmatprep.mubr.f32.mxu0 0.0
        %1376 = vmatmul.mubr.f32.gmra.mxu0 %v1173
        %v1377 = vpop.f32.mrf.mxu0
        %v1378 = vadd.f32 0.0, %v1377
        %v1379 = vpop.f32.mrf.mxu0
        %1380 = vmatprep.mubr.f32.mxu0 0.0
        %1381 = vmatmul.mubr.f32.gmra.mxu0 %v1176
        %v1382 = vpop.f32.mrf.mxu0
        %v1383 = vadd.f32 0.0, %v1382
        %v1384 = vpop.f32.mrf.mxu0
        %1385 = vmatprep.mubr.f32.mxu0 0.0
        %1386 = vmatmul.mubr.f32.gmra.mxu0 %v1179
        %v1387 = vpop.f32.mrf.mxu0
        %v1388 = vadd.f32 0.0, %v1387
        %v1389 = vpop.f32.mrf.mxu0
        %1390 = vmatprep.mubr.f32.mxu0 0.0
        %1391 = vmatmul.mubr.f32.gmra.mxu0 %v1182
        %v1392 = vpop.f32.mrf.mxu0
        %v1393 = vadd.f32 0.0, %v1392
        %v1394 = vpop.f32.mrf.mxu0
        %1395 = vmatprep.mubr.f32.mxu0 0.0
        %1396 = vmatmul.mubr.f32.gmra.mxu0 %v1185
        %v1397 = vpop.f32.mrf.mxu0
        %v1398 = vadd.f32 0.0, %v1397
        %v1399 = vpop.f32.mrf.mxu0
        %1400 = vmatprep.mubr.f32.mxu0 0.0
        %1401 = vmatmul.mubr.f32.gmra.mxu0 %v1188
        %v1402 = vpop.f32.mrf.mxu0
        %v1403 = vadd.f32 0.0, %v1402
        %v1404 = vpop.f32.mrf.mxu0
        %1405 = vmatprep.mubr.f32.mxu0 0.0
        %1406 = vmatmul.mubr.f32.gmra.mxu0 %v1191
        %v1407 = vpop.f32.mrf.mxu0
        %v1408 = vadd.f32 0.0, %v1407
        %v1409 = vpop.f32.mrf.mxu0
        %1410 = vmatprep.mubr.f32.mxu0 0.0
        %1411 = vmatmul.mubr.f32.gmra.mxu0 %v1194
        %v1412 = vpop.f32.mrf.mxu0
        %v1413 = vadd.f32 0.0, %v1412
        %v1414 = vpop.f32.mrf.mxu0
        %1415 = vmatprep.mubr.f32.mxu0 0.0
        %1416 = vmatmul.mubr.f32.gmra.mxu0 %v1197
        %v1417 = vpop.f32.mrf.mxu0
        %v1418 = vadd.f32 0.0, %v1417
        %v1419 = vpop.f32.mrf.mxu0
        %1420 = vmatprep.mubr.f32.mxu0 0.0
        %1421 = vmatmul.mubr.f32.gmra.mxu0 %v1200
        %v1422 = vpop.f32.mrf.mxu0
        %v1423 = vadd.f32 0.0, %v1422
        %v1424 = vpop.f32.mrf.mxu0
        %1425 = vmatprep.mubr.f32.mxu0 0.0
        %1426 = vmatmul.mubr.f32.gmra.mxu0 %v1203
        %v1427 = vpop.f32.mrf.mxu0
        %v1428 = vadd.f32 0.0, %v1427
        %v1429 = vpop.f32.mrf.mxu0
        %1430 = vmatprep.mubr.f32.mxu0 0.0
        %1431 = vmatmul.mubr.f32.gmra.mxu0 %v1206
        %v1432 = vpop.f32.mrf.mxu0
        %v1433 = vadd.f32 0.0, %v1432
        %v1434 = vpop.f32.mrf.mxu0
        %1435 = vdwg.mxu0
        %v1436 = vadd.f32 %v1046, %v1278
        %v1437 = vadd.f32 %v1047, %v1283
        %v1438 = vadd.f32 %v1048, %v1288
        %v1439 = vadd.f32 %v1049, %v1293
        %v1440 = vadd.f32 %v1050, %v1298
        %v1441 = vadd.f32 %v1051, %v1303
        %v1442 = vadd.f32 %v1052, %v1308
        %v1443 = vadd.f32 %v1053, %v1313
        %v1444 = vadd.f32 %v1054, %v1318
        %v1445 = vadd.f32 %v1055, %v1323
        %v1446 = vadd.f32 %v1056, %v1328
        %v1447 = vadd.f32 %v1057, %v1333
        %v1448 = vadd.f32 %v1058, %v1338
        %v1449 = vadd.f32 %v1059, %v1343
        %v1450 = vadd.f32 %v1060, %v1348
        %v1451 = vadd.f32 %v1061, %v1353
        %v1452 = vadd.f32 %v1062, %v1358
        %v1453 = vadd.f32 %v1063, %v1363
        %v1454 = vadd.f32 %v1064, %v1368
        %v1455 = vadd.f32 %v1065, %v1373
        %v1456 = vadd.f32 %v1066, %v1378
        %v1457 = vadd.f32 %v1067, %v1383
        %v1458 = vadd.f32 %v1068, %v1388
        %v1459 = vadd.f32 %v1069, %v1393
        %v1460 = vadd.f32 %v1070, %v1398
        %v1461 = vadd.f32 %v1071, %v1403
        %v1462 = vadd.f32 %v1072, %v1408
        %v1463 = vadd.f32 %v1073, %v1413
        %v1464 = vadd.f32 %v1074, %v1418
        %v1465 = vadd.f32 %v1075, %v1423
        %v1466 = vadd.f32 %v1076, %v1428
        %v1467 = vadd.f32 %v1077, %v1433
        %v1468 = vld [vmem:[%s257] sm:$0xff]
        %v1469 = vld [vmem:[%s257 + $0x8] sm:$0xff]
        %v1470 = vld [vmem:[%s257 + $0x18] sm:$0xff]
        %v1471 = vld [vmem:[%s257 + $0x20] sm:$0xff]
        %v1472 = vld [vmem:[%s257 + $0x30] sm:$0xff]
        %v1473 = vld [vmem:[%s257 + $0x38] sm:$0xff]
        %v1474 = vld [vmem:[%s257 + $0x48] sm:$0xff]
        %v1475 = vld [vmem:[%s257 + $0x50] sm:$0xff]
        %v1476 = vld [vmem:[%s257 + $0x60] sm:$0xff]
        %v1477 = vld [vmem:[%s257 + $0x68] sm:$0xff]
        %v1478 = vld [vmem:[%s257 + $0x78] sm:$0xff]
        %v1479 = vld [vmem:[%s257 + $0x80] sm:$0xff]
        %v1480 = vld [vmem:[%s257 + $0x90] sm:$0xff]
        %v1481 = vld [vmem:[%s257 + $0x98] sm:$0xff]
        %v1482 = vld [vmem:[%s257 + $0xa8] sm:$0xff]
        %v1483 = vld [vmem:[%s257 + $0xb0] sm:$0xff]
        %v1484 = vld [vmem:[%s257 + $0xc0] sm:$0xff]
        %v1485 = vld [vmem:[%s257 + $0xc8] sm:$0xff]
        %v1486 = vld [vmem:[%s257 + $0xd8] sm:$0xff]
        %v1487 = vld [vmem:[%s257 + $0xe0] sm:$0xff]
        %v1488 = vld [vmem:[%s257 + $0xf0] sm:$0xff]
        %v1489 = vld [vmem:[%s257 + $0xf8] sm:$0xff]
        %v1490 = vld [vmem:[%s257 + $0x108] sm:$0xff]
        %v1491 = vld [vmem:[%s257 + $0x110] sm:$0xff]
        %v1492 = vld [vmem:[%s257 + $0x120] sm:$0xff]
        %v1493 = vld [vmem:[%s257 + $0x128] sm:$0xff]
        %v1494 = vld [vmem:[%s257 + $0x138] sm:$0xff]
        %v1495 = vld [vmem:[%s257 + $0x140] sm:$0xff]
        %v1496 = vld [vmem:[%s257 + $0x150] sm:$0xff]
        %v1497 = vld [vmem:[%s257 + $0x158] sm:$0xff]
        %v1498 = vld [vmem:[%s257 + $0x168] sm:$0xff]
        %v1499 = vld [vmem:[%s257 + $0x170] sm:$0xff]
        %s1500 = scalar_lea.vmem %s1, 12
        %v1501 = vld [vmem:[%s1500] sm:$0x7]
        %v1503 = vsel %vm169, %v1468, 0
        %v1506 = vsel %vm169, %v1469, 0
        %v1509 = vsel %vm169, %v1470, 0
        %v1512 = vsel %vm169, %v1471, 0
        %v1515 = vsel %vm169, %v1472, 0
        %v1518 = vsel %vm169, %v1473, 0
        %v1521 = vsel %vm169, %v1474, 0
        %v1524 = vsel %vm169, %v1475, 0
        %v1527 = vsel %vm169, %v1476, 0
        %v1530 = vsel %vm169, %v1477, 0
        %v1533 = vsel %vm169, %v1478, 0
        %v1536 = vsel %vm169, %v1479, 0
        %v1539 = vsel %vm169, %v1480, 0
        %v1542 = vsel %vm169, %v1481, 0
        %v1545 = vsel %vm169, %v1482, 0
        %v1548 = vsel %vm169, %v1483, 0
        %v1551 = vsel %vm169, %v1484, 0
        %v1554 = vsel %vm169, %v1485, 0
        %v1557 = vsel %vm169, %v1486, 0
        %v1560 = vsel %vm169, %v1487, 0
        %v1563 = vsel %vm169, %v1488, 0
        %v1566 = vsel %vm169, %v1489, 0
        %v1569 = vsel %vm169, %v1490, 0
        %v1572 = vsel %vm169, %v1491, 0
        %v1575 = vsel %vm169, %v1492, 0
        %v1578 = vsel %vm169, %v1493, 0
        %v1581 = vsel %vm169, %v1494, 0
        %v1584 = vsel %vm169, %v1495, 0
        %v1587 = vsel %vm169, %v1496, 0
        %v1590 = vsel %vm169, %v1497, 0
        %v1593 = vsel %vm169, %v1498, 0
        %v1596 = vsel %vm169, %v1499, 0
        %v1599 = vsel %vm427, %v1501, 0
        %1601 = vmatprep.subr.mxu0 0.0
        %1602 = vmatpush1.msra.mxu0 0.0
        %1603 = vmatprep.subr.mxu0 0.0
        %1604 = vmatpush1.msra.mxu0 0.0
        %1605 = vmatprep.subr.mxu0 0.0
        %1606 = vmatpush1.msra.mxu0 0.0
        %1607 = vmatprep.subr.mxu0 0.0
        %1608 = vmatpush1.msra.mxu0 0.0
        %1609 = vmatprep.subr.mxu0 0.0
        %1610 = vmatpush1.msra.mxu0 0.0
        %1611 = vmatprep.subr.mxu0 0.0
        %1612 = vmatpush1.msra.mxu0 0.0
        %1613 = vmatprep.subr.mxu0 0.0
        %1614 = vmatpush1.msra.mxu0 0.0
        %1615 = vmatprep.subr.mxu0 0.0
        %1616 = vmatpush1.msra.mxu0 0.0
        %1617 = vmatprep.subr.mxu0 0.0
        %1618 = vmatpush1.msra.mxu0 0.0
        %1619 = vmatprep.subr.mxu0 0.0
        %1620 = vmatpush1.msra.mxu0 0.0
        %1621 = vmatprep.subr.mxu0 0.0
        %1622 = vmatpush1.msra.mxu0 0.0
        %1623 = vmatprep.subr.mxu0 0.0
        %1624 = vmatpush1.msra.mxu0 0.0
        %1625 = vmatprep.subr.mxu0 0.0
        %1626 = vmatpush1.msra.mxu0 0.0
        %1627 = vmatprep.subr.mxu0 0.0
        %1628 = vmatpush1.msra.mxu0 0.0
        %1629 = vmatprep.subr.mxu0 0.0
        %1630 = vmatpush1.msra.mxu0 0.0
        %1631 = vmatprep.subr.mxu0 0.0
        %1632 = vmatpush1.msra.mxu0 %v1599
        %1633 = vmatprep.subr.mxu0 0.0
        %1634 = vmatpush2.msra.mxu0 0.0
        %1635 = vmatprep.subr.mxu0 0.0
        %1636 = vmatpush2.msra.mxu0 0.0
        %1637 = vmatprep.subr.mxu0 0.0
        %1638 = vmatpush2.msra.mxu0 0.0
        %1639 = vmatprep.subr.mxu0 0.0
        %1640 = vmatpush2.msra.mxu0 0.0
        %1641 = vmatprep.subr.mxu0 0.0
        %1642 = vmatpush2.msra.mxu0 0.0
        %1643 = vmatprep.subr.mxu0 0.0
        %1644 = vmatpush2.msra.mxu0 0.0
        %1645 = vmatprep.subr.mxu0 0.0
        %1646 = vmatpush2.msra.mxu0 0.0
        %1647 = vmatprep.subr.mxu0 0.0
        %1648 = vmatpush2.msra.mxu0 0.0
        %1649 = vmatprep.subr.mxu0 0.0
        %1650 = vmatpush2.msra.mxu0 0.0
        %1651 = vmatprep.subr.mxu0 0.0
        %1652 = vmatpush2.msra.mxu0 0.0
        %1653 = vmatprep.subr.mxu0 0.0
        %1654 = vmatpush2.msra.mxu0 0.0
        %1655 = vmatprep.subr.mxu0 0.0
        %1656 = vmatpush2.msra.mxu0 0.0
        %1657 = vmatprep.subr.mxu0 0.0
        %1658 = vmatpush2.msra.mxu0 0.0
        %1659 = vmatprep.subr.mxu0 0.0
        %1660 = vmatpush2.msra.mxu0 0.0
        %1661 = vmatprep.subr.mxu0 0.0
        %1662 = vmatpush2.msra.mxu0 0.0
        %1663 = vmatprep.subr.mxu0 0.0
        %1664 = vmatpush2.msra.mxu0 0.0
        %1665 = vmatprep.mubr.f32.mxu0 0.0
        %1666 = vmatmul.mubr.f32.gmra.mxu0 %v1503
        %v1667 = vpop.f32.mrf.mxu0
        %v1668 = vadd.f32 0.0, %v1667
        %v1669 = vpop.f32.mrf.mxu0
        %1670 = vmatprep.mubr.f32.mxu0 0.0
        %1671 = vmatmul.mubr.f32.gmra.mxu0 %v1506
        %v1672 = vpop.f32.mrf.mxu0
        %v1673 = vadd.f32 0.0, %v1672
        %v1674 = vpop.f32.mrf.mxu0
        %1675 = vmatprep.mubr.f32.mxu0 0.0
        %1676 = vmatmul.mubr.f32.gmra.mxu0 %v1509
        %v1677 = vpop.f32.mrf.mxu0
        %v1678 = vadd.f32 0.0, %v1677
        %v1679 = vpop.f32.mrf.mxu0
        %1680 = vmatprep.mubr.f32.mxu0 0.0
        %1681 = vmatmul.mubr.f32.gmra.mxu0 %v1512
        %v1682 = vpop.f32.mrf.mxu0
        %v1683 = vadd.f32 0.0, %v1682
        %v1684 = vpop.f32.mrf.mxu0
        %1685 = vmatprep.mubr.f32.mxu0 0.0
        %1686 = vmatmul.mubr.f32.gmra.mxu0 %v1515
        %v1687 = vpop.f32.mrf.mxu0
        %v1688 = vadd.f32 0.0, %v1687
        %v1689 = vpop.f32.mrf.mxu0
        %1690 = vmatprep.mubr.f32.mxu0 0.0
        %1691 = vmatmul.mubr.f32.gmra.mxu0 %v1518
        %v1692 = vpop.f32.mrf.mxu0
        %v1693 = vadd.f32 0.0, %v1692
        %v1694 = vpop.f32.mrf.mxu0
        %1695 = vmatprep.mubr.f32.mxu0 0.0
        %1696 = vmatmul.mubr.f32.gmra.mxu0 %v1521
        %v1697 = vpop.f32.mrf.mxu0
        %v1698 = vadd.f32 0.0, %v1697
        %v1699 = vpop.f32.mrf.mxu0
        %1700 = vmatprep.mubr.f32.mxu0 0.0
        %1701 = vmatmul.mubr.f32.gmra.mxu0 %v1524
        %v1702 = vpop.f32.mrf.mxu0
        %v1703 = vadd.f32 0.0, %v1702
        %v1704 = vpop.f32.mrf.mxu0
        %1705 = vmatprep.mubr.f32.mxu0 0.0
        %1706 = vmatmul.mubr.f32.gmra.mxu0 %v1527
        %v1707 = vpop.f32.mrf.mxu0
        %v1708 = vadd.f32 0.0, %v1707
        %v1709 = vpop.f32.mrf.mxu0
        %1710 = vmatprep.mubr.f32.mxu0 0.0
        %1711 = vmatmul.mubr.f32.gmra.mxu0 %v1530
        %v1712 = vpop.f32.mrf.mxu0
        %v1713 = vadd.f32 0.0, %v1712
        %v1714 = vpop.f32.mrf.mxu0
        %1715 = vmatprep.mubr.f32.mxu0 0.0
        %1716 = vmatmul.mubr.f32.gmra.mxu0 %v1533
        %v1717 = vpop.f32.mrf.mxu0
        %v1718 = vadd.f32 0.0, %v1717
        %v1719 = vpop.f32.mrf.mxu0
        %1720 = vmatprep.mubr.f32.mxu0 0.0
        %1721 = vmatmul.mubr.f32.gmra.mxu0 %v1536
        %v1722 = vpop.f32.mrf.mxu0
        %v1723 = vadd.f32 0.0, %v1722
        %v1724 = vpop.f32.mrf.mxu0
        %1725 = vmatprep.mubr.f32.mxu0 0.0
        %1726 = vmatmul.mubr.f32.gmra.mxu0 %v1539
        %v1727 = vpop.f32.mrf.mxu0
        %v1728 = vadd.f32 0.0, %v1727
        %v1729 = vpop.f32.mrf.mxu0
        %1730 = vmatprep.mubr.f32.mxu0 0.0
        %1731 = vmatmul.mubr.f32.gmra.mxu0 %v1542
        %v1732 = vpop.f32.mrf.mxu0
        %v1733 = vadd.f32 0.0, %v1732
        %v1734 = vpop.f32.mrf.mxu0
        %1735 = vmatprep.mubr.f32.mxu0 0.0
        %1736 = vmatmul.mubr.f32.gmra.mxu0 %v1545
        %v1737 = vpop.f32.mrf.mxu0
        %v1738 = vadd.f32 0.0, %v1737
        %v1739 = vpop.f32.mrf.mxu0
        %1740 = vmatprep.mubr.f32.mxu0 0.0
        %1741 = vmatmul.mubr.f32.gmra.mxu0 %v1548
        %v1742 = vpop.f32.mrf.mxu0
        %v1743 = vadd.f32 0.0, %v1742
        %v1744 = vpop.f32.mrf.mxu0
        %1745 = vmatprep.mubr.f32.mxu0 0.0
        %1746 = vmatmul.mubr.f32.gmra.mxu0 %v1551
        %v1747 = vpop.f32.mrf.mxu0
        %v1748 = vadd.f32 0.0, %v1747
        %v1749 = vpop.f32.mrf.mxu0
        %1750 = vmatprep.mubr.f32.mxu0 0.0
        %1751 = vmatmul.mubr.f32.gmra.mxu0 %v1554
        %v1752 = vpop.f32.mrf.mxu0
        %v1753 = vadd.f32 0.0, %v1752
        %v1754 = vpop.f32.mrf.mxu0
        %1755 = vmatprep.mubr.f32.mxu0 0.0
        %1756 = vmatmul.mubr.f32.gmra.mxu0 %v1557
        %v1757 = vpop.f32.mrf.mxu0
        %v1758 = vadd.f32 0.0, %v1757
        %v1759 = vpop.f32.mrf.mxu0
        %1760 = vmatprep.mubr.f32.mxu0 0.0
        %1761 = vmatmul.mubr.f32.gmra.mxu0 %v1560
        %v1762 = vpop.f32.mrf.mxu0
        %v1763 = vadd.f32 0.0, %v1762
        %v1764 = vpop.f32.mrf.mxu0
        %1765 = vmatprep.mubr.f32.mxu0 0.0
        %1766 = vmatmul.mubr.f32.gmra.mxu0 %v1563
        %v1767 = vpop.f32.mrf.mxu0
        %v1768 = vadd.f32 0.0, %v1767
        %v1769 = vpop.f32.mrf.mxu0
        %1770 = vmatprep.mubr.f32.mxu0 0.0
        %1771 = vmatmul.mubr.f32.gmra.mxu0 %v1566
        %v1772 = vpop.f32.mrf.mxu0
        %v1773 = vadd.f32 0.0, %v1772
        %v1774 = vpop.f32.mrf.mxu0
        %1775 = vmatprep.mubr.f32.mxu0 0.0
        %1776 = vmatmul.mubr.f32.gmra.mxu0 %v1569
        %v1777 = vpop.f32.mrf.mxu0
        %v1778 = vadd.f32 0.0, %v1777
        %v1779 = vpop.f32.mrf.mxu0
        %1780 = vmatprep.mubr.f32.mxu0 0.0
        %1781 = vmatmul.mubr.f32.gmra.mxu0 %v1572
        %v1782 = vpop.f32.mrf.mxu0
        %v1783 = vadd.f32 0.0, %v1782
        %v1784 = vpop.f32.mrf.mxu0
        %1785 = vmatprep.mubr.f32.mxu0 0.0
        %1786 = vmatmul.mubr.f32.gmra.mxu0 %v1575
        %v1787 = vpop.f32.mrf.mxu0
        %v1788 = vadd.f32 0.0, %v1787
        %v1789 = vpop.f32.mrf.mxu0
        %1790 = vmatprep.mubr.f32.mxu0 0.0
        %1791 = vmatmul.mubr.f32.gmra.mxu0 %v1578
        %v1792 = vpop.f32.mrf.mxu0
        %v1793 = vadd.f32 0.0, %v1792
        %v1794 = vpop.f32.mrf.mxu0
        %1795 = vmatprep.mubr.f32.mxu0 0.0
        %1796 = vmatmul.mubr.f32.gmra.mxu0 %v1581
        %v1797 = vpop.f32.mrf.mxu0
        %v1798 = vadd.f32 0.0, %v1797
        %v1799 = vpop.f32.mrf.mxu0
        %1800 = vmatprep.mubr.f32.mxu0 0.0
        %1801 = vmatmul.mubr.f32.gmra.mxu0 %v1584
        %v1802 = vpop.f32.mrf.mxu0
        %v1803 = vadd.f32 0.0, %v1802
        %v1804 = vpop.f32.mrf.mxu0
        %1805 = vmatprep.mubr.f32.mxu0 0.0
        %1806 = vmatmul.mubr.f32.gmra.mxu0 %v1587
        %v1807 = vpop.f32.mrf.mxu0
        %v1808 = vadd.f32 0.0, %v1807
        %v1809 = vpop.f32.mrf.mxu0
        %1810 = vmatprep.mubr.f32.mxu0 0.0
        %1811 = vmatmul.mubr.f32.gmra.mxu0 %v1590
        %v1812 = vpop.f32.mrf.mxu0
        %v1813 = vadd.f32 0.0, %v1812
        %v1814 = vpop.f32.mrf.mxu0
        %1815 = vmatprep.mubr.f32.mxu0 0.0
        %1816 = vmatmul.mubr.f32.gmra.mxu0 %v1593
        %v1817 = vpop.f32.mrf.mxu0
        %v1818 = vadd.f32 0.0, %v1817
        %v1819 = vpop.f32.mrf.mxu0
        %1820 = vmatprep.mubr.f32.mxu0 0.0
        %1821 = vmatmul.mubr.f32.gmra.mxu0 %v1596
        %v1822 = vpop.f32.mrf.mxu0
        %v1823 = vadd.f32 0.0, %v1822
        %v1824 = vpop.f32.mrf.mxu0
        %1825 = vdwg.mxu0
        %v1826 = vadd.f32 %v1436, %v1668
        %v1827 = vadd.f32 %v1437, %v1673
        %v1828 = vadd.f32 %v1438, %v1678
        %v1829 = vadd.f32 %v1439, %v1683
        %v1830 = vadd.f32 %v1440, %v1688
        %v1831 = vadd.f32 %v1441, %v1693
        %v1832 = vadd.f32 %v1442, %v1698
        %v1833 = vadd.f32 %v1443, %v1703
        %v1834 = vadd.f32 %v1444, %v1708
        %v1835 = vadd.f32 %v1445, %v1713
        %v1836 = vadd.f32 %v1446, %v1718
        %v1837 = vadd.f32 %v1447, %v1723
        %v1838 = vadd.f32 %v1448, %v1728
        %v1839 = vadd.f32 %v1449, %v1733
        %v1840 = vadd.f32 %v1450, %v1738
        %v1841 = vadd.f32 %v1451, %v1743
        %v1842 = vadd.f32 %v1452, %v1748
        %v1843 = vadd.f32 %v1453, %v1753
        %v1844 = vadd.f32 %v1454, %v1758
        %v1845 = vadd.f32 %v1455, %v1763
        %v1846 = vadd.f32 %v1456, %v1768
        %v1847 = vadd.f32 %v1457, %v1773
        %v1848 = vadd.f32 %v1458, %v1778
        %v1849 = vadd.f32 %v1459, %v1783
        %v1850 = vadd.f32 %v1460, %v1788
        %v1851 = vadd.f32 %v1461, %v1793
        %v1852 = vadd.f32 %v1462, %v1798
        %v1853 = vadd.f32 %v1463, %v1803
        %v1854 = vadd.f32 %v1464, %v1808
        %v1855 = vadd.f32 %v1465, %v1813
        %v1856 = vadd.f32 %v1466, %v1818
        %v1857 = vadd.f32 %v1467, %v1823
        %v1858 = vld [vmem:[%s257 + $0x1] sm:$0xff]
        %v1859 = vld [vmem:[%s257 + $0x9] sm:$0xff]
        %v1860 = vld [vmem:[%s257 + $0x19] sm:$0xff]
        %v1861 = vld [vmem:[%s257 + $0x21] sm:$0xff]
        %v1862 = vld [vmem:[%s257 + $0x31] sm:$0xff]
        %v1863 = vld [vmem:[%s257 + $0x39] sm:$0xff]
        %v1864 = vld [vmem:[%s257 + $0x49] sm:$0xff]
        %v1865 = vld [vmem:[%s257 + $0x51] sm:$0xff]
        %v1866 = vld [vmem:[%s257 + $0x61] sm:$0xff]
        %v1867 = vld [vmem:[%s257 + $0x69] sm:$0xff]
        %v1868 = vld [vmem:[%s257 + $0x79] sm:$0xff]
        %v1869 = vld [vmem:[%s257 + $0x81] sm:$0xff]
        %v1870 = vld [vmem:[%s257 + $0x91] sm:$0xff]
        %v1871 = vld [vmem:[%s257 + $0x99] sm:$0xff]
        %v1872 = vld [vmem:[%s257 + $0xa9] sm:$0xff]
        %v1873 = vld [vmem:[%s257 + $0xb1] sm:$0xff]
        %v1874 = vld [vmem:[%s257 + $0xc1] sm:$0xff]
        %v1875 = vld [vmem:[%s257 + $0xc9] sm:$0xff]
        %v1876 = vld [vmem:[%s257 + $0xd9] sm:$0xff]
        %v1877 = vld [vmem:[%s257 + $0xe1] sm:$0xff]
        %v1878 = vld [vmem:[%s257 + $0xf1] sm:$0xff]
        %v1879 = vld [vmem:[%s257 + $0xf9] sm:$0xff]
        %v1880 = vld [vmem:[%s257 + $0x109] sm:$0xff]
        %v1881 = vld [vmem:[%s257 + $0x111] sm:$0xff]
        %v1882 = vld [vmem:[%s257 + $0x121] sm:$0xff]
        %v1883 = vld [vmem:[%s257 + $0x129] sm:$0xff]
        %v1884 = vld [vmem:[%s257 + $0x139] sm:$0xff]
        %v1885 = vld [vmem:[%s257 + $0x141] sm:$0xff]
        %v1886 = vld [vmem:[%s257 + $0x151] sm:$0xff]
        %v1887 = vld [vmem:[%s257 + $0x159] sm:$0xff]
        %v1888 = vld [vmem:[%s257 + $0x169] sm:$0xff]
        %v1889 = vld [vmem:[%s257 + $0x171] sm:$0xff]
        %s1890 = scalar_lea.vmem %s1, 16
        %v1891 = vld [vmem:[%s1890] sm:$0x7]
        %v1893 = vsel %vm169, %v1858, 0
        %v1896 = vsel %vm169, %v1859, 0
        %v1899 = vsel %vm169, %v1860, 0
        %v1902 = vsel %vm169, %v1861, 0
        %v1905 = vsel %vm169, %v1862, 0
        %v1908 = vsel %vm169, %v1863, 0
        %v1911 = vsel %vm169, %v1864, 0
        %v1914 = vsel %vm169, %v1865, 0
        %v1917 = vsel %vm169, %v1866, 0
        %v1920 = vsel %vm169, %v1867, 0
        %v1923 = vsel %vm169, %v1868, 0
        %v1926 = vsel %vm169, %v1869, 0
        %v1929 = vsel %vm169, %v1870, 0
        %v1932 = vsel %vm169, %v1871, 0
        %v1935 = vsel %vm169, %v1872, 0
        %v1938 = vsel %vm169, %v1873, 0
        %v1941 = vsel %vm169, %v1874, 0
        %v1944 = vsel %vm169, %v1875, 0
        %v1947 = vsel %vm169, %v1876, 0
        %v1950 = vsel %vm169, %v1877, 0
        %v1953 = vsel %vm169, %v1878, 0
        %v1956 = vsel %vm169, %v1879, 0
        %v1959 = vsel %vm169, %v1880, 0
        %v1962 = vsel %vm169, %v1881, 0
        %v1965 = vsel %vm169, %v1882, 0
        %v1968 = vsel %vm169, %v1883, 0
        %v1971 = vsel %vm169, %v1884, 0
        %v1974 = vsel %vm169, %v1885, 0
        %v1977 = vsel %vm169, %v1886, 0
        %v1980 = vsel %vm169, %v1887, 0
        %v1983 = vsel %vm169, %v1888, 0
        %v1986 = vsel %vm169, %v1889, 0
        %v1989 = vsel %vm427, %v1891, 0
        %1991 = vmatprep.subr.mxu0 0.0
        %1992 = vmatpush1.msra.mxu0 0.0
        %1993 = vmatprep.subr.mxu0 0.0
        %1994 = vmatpush1.msra.mxu0 0.0
        %1995 = vmatprep.subr.mxu0 0.0
        %1996 = vmatpush1.msra.mxu0 0.0
        %1997 = vmatprep.subr.mxu0 0.0
        %1998 = vmatpush1.msra.mxu0 0.0
        %1999 = vmatprep.subr.mxu0 0.0
        %2000 = vmatpush1.msra.mxu0 0.0
        %2001 = vmatprep.subr.mxu0 0.0
        %2002 = vmatpush1.msra.mxu0 0.0
        %2003 = vmatprep.subr.mxu0 0.0
        %2004 = vmatpush1.msra.mxu0 0.0
        %2005 = vmatprep.subr.mxu0 0.0
        %2006 = vmatpush1.msra.mxu0 0.0
        %2007 = vmatprep.subr.mxu0 0.0
        %2008 = vmatpush1.msra.mxu0 0.0
        %2009 = vmatprep.subr.mxu0 0.0
        %2010 = vmatpush1.msra.mxu0 0.0
        %2011 = vmatprep.subr.mxu0 0.0
        %2012 = vmatpush1.msra.mxu0 0.0
        %2013 = vmatprep.subr.mxu0 0.0
        %2014 = vmatpush1.msra.mxu0 0.0
        %2015 = vmatprep.subr.mxu0 0.0
        %2016 = vmatpush1.msra.mxu0 0.0
        %2017 = vmatprep.subr.mxu0 0.0
        %2018 = vmatpush1.msra.mxu0 0.0
        %2019 = vmatprep.subr.mxu0 0.0
        %2020 = vmatpush1.msra.mxu0 0.0
        %2021 = vmatprep.subr.mxu0 0.0
        %2022 = vmatpush1.msra.mxu0 %v1989
        %2023 = vmatprep.subr.mxu0 0.0
        %2024 = vmatpush2.msra.mxu0 0.0
        %2025 = vmatprep.subr.mxu0 0.0
        %2026 = vmatpush2.msra.mxu0 0.0
        %2027 = vmatprep.subr.mxu0 0.0
        %2028 = vmatpush2.msra.mxu0 0.0
        %2029 = vmatprep.subr.mxu0 0.0
        %2030 = vmatpush2.msra.mxu0 0.0
        %2031 = vmatprep.subr.mxu0 0.0
        %2032 = vmatpush2.msra.mxu0 0.0
        %2033 = vmatprep.subr.mxu0 0.0
        %2034 = vmatpush2.msra.mxu0 0.0
        %2035 = vmatprep.subr.mxu0 0.0
        %2036 = vmatpush2.msra.mxu0 0.0
        %2037 = vmatprep.subr.mxu0 0.0
        %2038 = vmatpush2.msra.mxu0 0.0
        %2039 = vmatprep.subr.mxu0 0.0
        %2040 = vmatpush2.msra.mxu0 0.0
        %2041 = vmatprep.subr.mxu0 0.0
        %2042 = vmatpush2.msra.mxu0 0.0
        %2043 = vmatprep.subr.mxu0 0.0
        %2044 = vmatpush2.msra.mxu0 0.0
        %2045 = vmatprep.subr.mxu0 0.0
        %2046 = vmatpush2.msra.mxu0 0.0
        %2047 = vmatprep.subr.mxu0 0.0
        %2048 = vmatpush2.msra.mxu0 0.0
        %2049 = vmatprep.subr.mxu0 0.0
        %2050 = vmatpush2.msra.mxu0 0.0
        %2051 = vmatprep.subr.mxu0 0.0
        %2052 = vmatpush2.msra.mxu0 0.0
        %2053 = vmatprep.subr.mxu0 0.0
        %2054 = vmatpush2.msra.mxu0 0.0
        %2055 = vmatprep.mubr.f32.mxu0 0.0
        %2056 = vmatmul.mubr.f32.gmra.mxu0 %v1893
        %v2057 = vpop.f32.mrf.mxu0
        %v2058 = vadd.f32 0.0, %v2057
        %v2059 = vpop.f32.mrf.mxu0
        %2060 = vmatprep.mubr.f32.mxu0 0.0
        %2061 = vmatmul.mubr.f32.gmra.mxu0 %v1896
        %v2062 = vpop.f32.mrf.mxu0
        %v2063 = vadd.f32 0.0, %v2062
        %v2064 = vpop.f32.mrf.mxu0
        %2065 = vmatprep.mubr.f32.mxu0 0.0
        %2066 = vmatmul.mubr.f32.gmra.mxu0 %v1899
        %v2067 = vpop.f32.mrf.mxu0
        %v2068 = vadd.f32 0.0, %v2067
        %v2069 = vpop.f32.mrf.mxu0
        %2070 = vmatprep.mubr.f32.mxu0 0.0
        %2071 = vmatmul.mubr.f32.gmra.mxu0 %v1902
        %v2072 = vpop.f32.mrf.mxu0
        %v2073 = vadd.f32 0.0, %v2072
        %v2074 = vpop.f32.mrf.mxu0
        %2075 = vmatprep.mubr.f32.mxu0 0.0
        %2076 = vmatmul.mubr.f32.gmra.mxu0 %v1905
        %v2077 = vpop.f32.mrf.mxu0
        %v2078 = vadd.f32 0.0, %v2077
        %v2079 = vpop.f32.mrf.mxu0
        %2080 = vmatprep.mubr.f32.mxu0 0.0
        %2081 = vmatmul.mubr.f32.gmra.mxu0 %v1908
        %v2082 = vpop.f32.mrf.mxu0
        %v2083 = vadd.f32 0.0, %v2082
        %v2084 = vpop.f32.mrf.mxu0
        %2085 = vmatprep.mubr.f32.mxu0 0.0
        %2086 = vmatmul.mubr.f32.gmra.mxu0 %v1911
        %v2087 = vpop.f32.mrf.mxu0
        %v2088 = vadd.f32 0.0, %v2087
        %v2089 = vpop.f32.mrf.mxu0
        %2090 = vmatprep.mubr.f32.mxu0 0.0
        %2091 = vmatmul.mubr.f32.gmra.mxu0 %v1914
        %v2092 = vpop.f32.mrf.mxu0
        %v2093 = vadd.f32 0.0, %v2092
        %v2094 = vpop.f32.mrf.mxu0
        %2095 = vmatprep.mubr.f32.mxu0 0.0
        %2096 = vmatmul.mubr.f32.gmra.mxu0 %v1917
        %v2097 = vpop.f32.mrf.mxu0
        %v2098 = vadd.f32 0.0, %v2097
        %v2099 = vpop.f32.mrf.mxu0
        %2100 = vmatprep.mubr.f32.mxu0 0.0
        %2101 = vmatmul.mubr.f32.gmra.mxu0 %v1920
        %v2102 = vpop.f32.mrf.mxu0
        %v2103 = vadd.f32 0.0, %v2102
        %v2104 = vpop.f32.mrf.mxu0
        %2105 = vmatprep.mubr.f32.mxu0 0.0
        %2106 = vmatmul.mubr.f32.gmra.mxu0 %v1923
        %v2107 = vpop.f32.mrf.mxu0
        %v2108 = vadd.f32 0.0, %v2107
        %v2109 = vpop.f32.mrf.mxu0
        %2110 = vmatprep.mubr.f32.mxu0 0.0
        %2111 = vmatmul.mubr.f32.gmra.mxu0 %v1926
        %v2112 = vpop.f32.mrf.mxu0
        %v2113 = vadd.f32 0.0, %v2112
        %v2114 = vpop.f32.mrf.mxu0
        %2115 = vmatprep.mubr.f32.mxu0 0.0
        %2116 = vmatmul.mubr.f32.gmra.mxu0 %v1929
        %v2117 = vpop.f32.mrf.mxu0
        %v2118 = vadd.f32 0.0, %v2117
        %v2119 = vpop.f32.mrf.mxu0
        %2120 = vmatprep.mubr.f32.mxu0 0.0
        %2121 = vmatmul.mubr.f32.gmra.mxu0 %v1932
        %v2122 = vpop.f32.mrf.mxu0
        %v2123 = vadd.f32 0.0, %v2122
        %v2124 = vpop.f32.mrf.mxu0
        %2125 = vmatprep.mubr.f32.mxu0 0.0
        %2126 = vmatmul.mubr.f32.gmra.mxu0 %v1935
        %v2127 = vpop.f32.mrf.mxu0
        %v2128 = vadd.f32 0.0, %v2127
        %v2129 = vpop.f32.mrf.mxu0
        %2130 = vmatprep.mubr.f32.mxu0 0.0
        %2131 = vmatmul.mubr.f32.gmra.mxu0 %v1938
        %v2132 = vpop.f32.mrf.mxu0
        %v2133 = vadd.f32 0.0, %v2132
        %v2134 = vpop.f32.mrf.mxu0
        %2135 = vmatprep.mubr.f32.mxu0 0.0
        %2136 = vmatmul.mubr.f32.gmra.mxu0 %v1941
        %v2137 = vpop.f32.mrf.mxu0
        %v2138 = vadd.f32 0.0, %v2137
        %v2139 = vpop.f32.mrf.mxu0
        %2140 = vmatprep.mubr.f32.mxu0 0.0
        %2141 = vmatmul.mubr.f32.gmra.mxu0 %v1944
        %v2142 = vpop.f32.mrf.mxu0
        %v2143 = vadd.f32 0.0, %v2142
        %v2144 = vpop.f32.mrf.mxu0
        %2145 = vmatprep.mubr.f32.mxu0 0.0
        %2146 = vmatmul.mubr.f32.gmra.mxu0 %v1947
        %v2147 = vpop.f32.mrf.mxu0
        %v2148 = vadd.f32 0.0, %v2147
        %v2149 = vpop.f32.mrf.mxu0
        %2150 = vmatprep.mubr.f32.mxu0 0.0
        %2151 = vmatmul.mubr.f32.gmra.mxu0 %v1950
        %v2152 = vpop.f32.mrf.mxu0
        %v2153 = vadd.f32 0.0, %v2152
        %v2154 = vpop.f32.mrf.mxu0
        %2155 = vmatprep.mubr.f32.mxu0 0.0
        %2156 = vmatmul.mubr.f32.gmra.mxu0 %v1953
        %v2157 = vpop.f32.mrf.mxu0
        %v2158 = vadd.f32 0.0, %v2157
        %v2159 = vpop.f32.mrf.mxu0
        %2160 = vmatprep.mubr.f32.mxu0 0.0
        %2161 = vmatmul.mubr.f32.gmra.mxu0 %v1956
        %v2162 = vpop.f32.mrf.mxu0
        %v2163 = vadd.f32 0.0, %v2162
        %v2164 = vpop.f32.mrf.mxu0
        %2165 = vmatprep.mubr.f32.mxu0 0.0
        %2166 = vmatmul.mubr.f32.gmra.mxu0 %v1959
        %v2167 = vpop.f32.mrf.mxu0
        %v2168 = vadd.f32 0.0, %v2167
        %v2169 = vpop.f32.mrf.mxu0
        %2170 = vmatprep.mubr.f32.mxu0 0.0
        %2171 = vmatmul.mubr.f32.gmra.mxu0 %v1962
        %v2172 = vpop.f32.mrf.mxu0
        %v2173 = vadd.f32 0.0, %v2172
        %v2174 = vpop.f32.mrf.mxu0
        %2175 = vmatprep.mubr.f32.mxu0 0.0
        %2176 = vmatmul.mubr.f32.gmra.mxu0 %v1965
        %v2177 = vpop.f32.mrf.mxu0
        %v2178 = vadd.f32 0.0, %v2177
        %v2179 = vpop.f32.mrf.mxu0
        %2180 = vmatprep.mubr.f32.mxu0 0.0
        %2181 = vmatmul.mubr.f32.gmra.mxu0 %v1968
        %v2182 = vpop.f32.mrf.mxu0
        %v2183 = vadd.f32 0.0, %v2182
        %v2184 = vpop.f32.mrf.mxu0
        %2185 = vmatprep.mubr.f32.mxu0 0.0
        %2186 = vmatmul.mubr.f32.gmra.mxu0 %v1971
        %v2187 = vpop.f32.mrf.mxu0
        %v2188 = vadd.f32 0.0, %v2187
        %v2189 = vpop.f32.mrf.mxu0
        %2190 = vmatprep.mubr.f32.mxu0 0.0
        %2191 = vmatmul.mubr.f32.gmra.mxu0 %v1974
        %v2192 = vpop.f32.mrf.mxu0
        %v2193 = vadd.f32 0.0, %v2192
        %v2194 = vpop.f32.mrf.mxu0
        %2195 = vmatprep.mubr.f32.mxu0 0.0
        %2196 = vmatmul.mubr.f32.gmra.mxu0 %v1977
        %v2197 = vpop.f32.mrf.mxu0
        %v2198 = vadd.f32 0.0, %v2197
        %v2199 = vpop.f32.mrf.mxu0
        %2200 = vmatprep.mubr.f32.mxu0 0.0
        %2201 = vmatmul.mubr.f32.gmra.mxu0 %v1980
        %v2202 = vpop.f32.mrf.mxu0
        %v2203 = vadd.f32 0.0, %v2202
        %v2204 = vpop.f32.mrf.mxu0
        %2205 = vmatprep.mubr.f32.mxu0 0.0
        %2206 = vmatmul.mubr.f32.gmra.mxu0 %v1983
        %v2207 = vpop.f32.mrf.mxu0
        %v2208 = vadd.f32 0.0, %v2207
        %v2209 = vpop.f32.mrf.mxu0
        %2210 = vmatprep.mubr.f32.mxu0 0.0
        %2211 = vmatmul.mubr.f32.gmra.mxu0 %v1986
        %v2212 = vpop.f32.mrf.mxu0
        %v2213 = vadd.f32 0.0, %v2212
        %v2214 = vpop.f32.mrf.mxu0
        %2215 = vdwg.mxu0
        %v2216 = vadd.f32 %v1826, %v2058
        %v2217 = vadd.f32 %v1827, %v2063
        %v2218 = vadd.f32 %v1828, %v2068
        %v2219 = vadd.f32 %v1829, %v2073
        %v2220 = vadd.f32 %v1830, %v2078
        %v2221 = vadd.f32 %v1831, %v2083
        %v2222 = vadd.f32 %v1832, %v2088
        %v2223 = vadd.f32 %v1833, %v2093
        %v2224 = vadd.f32 %v1834, %v2098
        %v2225 = vadd.f32 %v1835, %v2103
        %v2226 = vadd.f32 %v1836, %v2108
        %v2227 = vadd.f32 %v1837, %v2113
        %v2228 = vadd.f32 %v1838, %v2118
        %v2229 = vadd.f32 %v1839, %v2123
        %v2230 = vadd.f32 %v1840, %v2128
        %v2231 = vadd.f32 %v1841, %v2133
        %v2232 = vadd.f32 %v1842, %v2138
        %v2233 = vadd.f32 %v1843, %v2143
        %v2234 = vadd.f32 %v1844, %v2148
        %v2235 = vadd.f32 %v1845, %v2153
        %v2236 = vadd.f32 %v1846, %v2158
        %v2237 = vadd.f32 %v1847, %v2163
        %v2238 = vadd.f32 %v1848, %v2168
        %v2239 = vadd.f32 %v1849, %v2173
        %v2240 = vadd.f32 %v1850, %v2178
        %v2241 = vadd.f32 %v1851, %v2183
        %v2242 = vadd.f32 %v1852, %v2188
        %v2243 = vadd.f32 %v1853, %v2193
        %v2244 = vadd.f32 %v1854, %v2198
        %v2245 = vadd.f32 %v1855, %v2203
        %v2246 = vadd.f32 %v1856, %v2208
        %v2247 = vadd.f32 %v1857, %v2213
        %v2248 = vld [vmem:[%s257 + $0x2] sm:$0xff]
        %v2249 = vld [vmem:[%s257 + $0xa] sm:$0xff]
        %v2250 = vld [vmem:[%s257 + $0x1a] sm:$0xff]
        %v2251 = vld [vmem:[%s257 + $0x22] sm:$0xff]
        %v2252 = vld [vmem:[%s257 + $0x32] sm:$0xff]
        %v2253 = vld [vmem:[%s257 + $0x3a] sm:$0xff]
        %v2254 = vld [vmem:[%s257 + $0x4a] sm:$0xff]
        %v2255 = vld [vmem:[%s257 + $0x52] sm:$0xff]
        %v2256 = vld [vmem:[%s257 + $0x62] sm:$0xff]
        %v2257 = vld [vmem:[%s257 + $0x6a] sm:$0xff]
        %v2258 = vld [vmem:[%s257 + $0x7a] sm:$0xff]
        %v2259 = vld [vmem:[%s257 + $0x82] sm:$0xff]
        %v2260 = vld [vmem:[%s257 + $0x92] sm:$0xff]
        %v2261 = vld [vmem:[%s257 + $0x9a] sm:$0xff]
        %v2262 = vld [vmem:[%s257 + $0xaa] sm:$0xff]
        %v2263 = vld [vmem:[%s257 + $0xb2] sm:$0xff]
        %v2264 = vld [vmem:[%s257 + $0xc2] sm:$0xff]
        %v2265 = vld [vmem:[%s257 + $0xca] sm:$0xff]
        %v2266 = vld [vmem:[%s257 + $0xda] sm:$0xff]
        %v2267 = vld [vmem:[%s257 + $0xe2] sm:$0xff]
        %v2268 = vld [vmem:[%s257 + $0xf2] sm:$0xff]
        %v2269 = vld [vmem:[%s257 + $0xfa] sm:$0xff]
        %v2270 = vld [vmem:[%s257 + $0x10a] sm:$0xff]
        %v2271 = vld [vmem:[%s257 + $0x112] sm:$0xff]
        %v2272 = vld [vmem:[%s257 + $0x122] sm:$0xff]
        %v2273 = vld [vmem:[%s257 + $0x12a] sm:$0xff]
        %v2274 = vld [vmem:[%s257 + $0x13a] sm:$0xff]
        %v2275 = vld [vmem:[%s257 + $0x142] sm:$0xff]
        %v2276 = vld [vmem:[%s257 + $0x152] sm:$0xff]
        %v2277 = vld [vmem:[%s257 + $0x15a] sm:$0xff]
        %v2278 = vld [vmem:[%s257 + $0x16a] sm:$0xff]
        %v2279 = vld [vmem:[%s257 + $0x172] sm:$0xff]
        %s2280 = scalar_lea.vmem %s1, 20
        %v2281 = vld [vmem:[%s2280] sm:$0x7]
        %v2283 = vsel %vm169, %v2248, 0
        %v2286 = vsel %vm169, %v2249, 0
        %v2289 = vsel %vm169, %v2250, 0
        %v2292 = vsel %vm169, %v2251, 0
        %v2295 = vsel %vm169, %v2252, 0
        %v2298 = vsel %vm169, %v2253, 0
        %v2301 = vsel %vm169, %v2254, 0
        %v2304 = vsel %vm169, %v2255, 0
        %v2307 = vsel %vm169, %v2256, 0
        %v2310 = vsel %vm169, %v2257, 0
        %v2313 = vsel %vm169, %v2258, 0
        %v2316 = vsel %vm169, %v2259, 0
        %v2319 = vsel %vm169, %v2260, 0
        %v2322 = vsel %vm169, %v2261, 0
        %v2325 = vsel %vm169, %v2262, 0
        %v2328 = vsel %vm169, %v2263, 0
        %v2331 = vsel %vm169, %v2264, 0
        %v2334 = vsel %vm169, %v2265, 0
        %v2337 = vsel %vm169, %v2266, 0
        %v2340 = vsel %vm169, %v2267, 0
        %v2343 = vsel %vm169, %v2268, 0
        %v2346 = vsel %vm169, %v2269, 0
        %v2349 = vsel %vm169, %v2270, 0
        %v2352 = vsel %vm169, %v2271, 0
        %v2355 = vsel %vm169, %v2272, 0
        %v2358 = vsel %vm169, %v2273, 0
        %v2361 = vsel %vm169, %v2274, 0
        %v2364 = vsel %vm169, %v2275, 0
        %v2367 = vsel %vm169, %v2276, 0
        %v2370 = vsel %vm169, %v2277, 0
        %v2373 = vsel %vm169, %v2278, 0
        %v2376 = vsel %vm169, %v2279, 0
        %v2379 = vsel %vm427, %v2281, 0
        %2381 = vmatprep.subr.mxu0 0.0
        %2382 = vmatpush1.msra.mxu0 0.0
        %2383 = vmatprep.subr.mxu0 0.0
        %2384 = vmatpush1.msra.mxu0 0.0
        %2385 = vmatprep.subr.mxu0 0.0
        %2386 = vmatpush1.msra.mxu0 0.0
        %2387 = vmatprep.subr.mxu0 0.0
        %2388 = vmatpush1.msra.mxu0 0.0
        %2389 = vmatprep.subr.mxu0 0.0
        %2390 = vmatpush1.msra.mxu0 0.0
        %2391 = vmatprep.subr.mxu0 0.0
        %2392 = vmatpush1.msra.mxu0 0.0
        %2393 = vmatprep.subr.mxu0 0.0
        %2394 = vmatpush1.msra.mxu0 0.0
        %2395 = vmatprep.subr.mxu0 0.0
        %2396 = vmatpush1.msra.mxu0 0.0
        %2397 = vmatprep.subr.mxu0 0.0
        %2398 = vmatpush1.msra.mxu0 0.0
        %2399 = vmatprep.subr.mxu0 0.0
        %2400 = vmatpush1.msra.mxu0 0.0
        %2401 = vmatprep.subr.mxu0 0.0
        %2402 = vmatpush1.msra.mxu0 0.0
        %2403 = vmatprep.subr.mxu0 0.0
        %2404 = vmatpush1.msra.mxu0 0.0
        %2405 = vmatprep.subr.mxu0 0.0
        %2406 = vmatpush1.msra.mxu0 0.0
        %2407 = vmatprep.subr.mxu0 0.0
        %2408 = vmatpush1.msra.mxu0 0.0
        %2409 = vmatprep.subr.mxu0 0.0
        %2410 = vmatpush1.msra.mxu0 0.0
        %2411 = vmatprep.subr.mxu0 0.0
        %2412 = vmatpush1.msra.mxu0 %v2379
        %2413 = vmatprep.subr.mxu0 0.0
        %2414 = vmatpush2.msra.mxu0 0.0
        %2415 = vmatprep.subr.mxu0 0.0
        %2416 = vmatpush2.msra.mxu0 0.0
        %2417 = vmatprep.subr.mxu0 0.0
        %2418 = vmatpush2.msra.mxu0 0.0
        %2419 = vmatprep.subr.mxu0 0.0
        %2420 = vmatpush2.msra.mxu0 0.0
        %2421 = vmatprep.subr.mxu0 0.0
        %2422 = vmatpush2.msra.mxu0 0.0
        %2423 = vmatprep.subr.mxu0 0.0
        %2424 = vmatpush2.msra.mxu0 0.0
        %2425 = vmatprep.subr.mxu0 0.0
        %2426 = vmatpush2.msra.mxu0 0.0
        %2427 = vmatprep.subr.mxu0 0.0
        %2428 = vmatpush2.msra.mxu0 0.0
        %2429 = vmatprep.subr.mxu0 0.0
        %2430 = vmatpush2.msra.mxu0 0.0
        %2431 = vmatprep.subr.mxu0 0.0
        %2432 = vmatpush2.msra.mxu0 0.0
        %2433 = vmatprep.subr.mxu0 0.0
        %2434 = vmatpush2.msra.mxu0 0.0
        %2435 = vmatprep.subr.mxu0 0.0
        %2436 = vmatpush2.msra.mxu0 0.0
        %2437 = vmatprep.subr.mxu0 0.0
        %2438 = vmatpush2.msra.mxu0 0.0
        %2439 = vmatprep.subr.mxu0 0.0
        %2440 = vmatpush2.msra.mxu0 0.0
        %2441 = vmatprep.subr.mxu0 0.0
        %2442 = vmatpush2.msra.mxu0 0.0
        %2443 = vmatprep.subr.mxu0 0.0
        %2444 = vmatpush2.msra.mxu0 0.0
        %2445 = vmatprep.mubr.f32.mxu0 0.0
        %2446 = vmatmul.mubr.f32.gmra.mxu0 %v2283
        %v2447 = vpop.f32.mrf.mxu0
        %v2448 = vadd.f32 0.0, %v2447
        %v2449 = vpop.f32.mrf.mxu0
        %2450 = vmatprep.mubr.f32.mxu0 0.0
        %2451 = vmatmul.mubr.f32.gmra.mxu0 %v2286
        %v2452 = vpop.f32.mrf.mxu0
        %v2453 = vadd.f32 0.0, %v2452
        %v2454 = vpop.f32.mrf.mxu0
        %2455 = vmatprep.mubr.f32.mxu0 0.0
        %2456 = vmatmul.mubr.f32.gmra.mxu0 %v2289
        %v2457 = vpop.f32.mrf.mxu0
        %v2458 = vadd.f32 0.0, %v2457
        %v2459 = vpop.f32.mrf.mxu0
        %2460 = vmatprep.mubr.f32.mxu0 0.0
        %2461 = vmatmul.mubr.f32.gmra.mxu0 %v2292
        %v2462 = vpop.f32.mrf.mxu0
        %v2463 = vadd.f32 0.0, %v2462
        %v2464 = vpop.f32.mrf.mxu0
        %2465 = vmatprep.mubr.f32.mxu0 0.0
        %2466 = vmatmul.mubr.f32.gmra.mxu0 %v2295
        %v2467 = vpop.f32.mrf.mxu0
        %v2468 = vadd.f32 0.0, %v2467
        %v2469 = vpop.f32.mrf.mxu0
        %2470 = vmatprep.mubr.f32.mxu0 0.0
        %2471 = vmatmul.mubr.f32.gmra.mxu0 %v2298
        %v2472 = vpop.f32.mrf.mxu0
        %v2473 = vadd.f32 0.0, %v2472
        %v2474 = vpop.f32.mrf.mxu0
        %2475 = vmatprep.mubr.f32.mxu0 0.0
        %2476 = vmatmul.mubr.f32.gmra.mxu0 %v2301
        %v2477 = vpop.f32.mrf.mxu0
        %v2478 = vadd.f32 0.0, %v2477
        %v2479 = vpop.f32.mrf.mxu0
        %2480 = vmatprep.mubr.f32.mxu0 0.0
        %2481 = vmatmul.mubr.f32.gmra.mxu0 %v2304
        %v2482 = vpop.f32.mrf.mxu0
        %v2483 = vadd.f32 0.0, %v2482
        %v2484 = vpop.f32.mrf.mxu0
        %2485 = vmatprep.mubr.f32.mxu0 0.0
        %2486 = vmatmul.mubr.f32.gmra.mxu0 %v2307
        %v2487 = vpop.f32.mrf.mxu0
        %v2488 = vadd.f32 0.0, %v2487
        %v2489 = vpop.f32.mrf.mxu0
        %2490 = vmatprep.mubr.f32.mxu0 0.0
        %2491 = vmatmul.mubr.f32.gmra.mxu0 %v2310
        %v2492 = vpop.f32.mrf.mxu0
        %v2493 = vadd.f32 0.0, %v2492
        %v2494 = vpop.f32.mrf.mxu0
        %2495 = vmatprep.mubr.f32.mxu0 0.0
        %2496 = vmatmul.mubr.f32.gmra.mxu0 %v2313
        %v2497 = vpop.f32.mrf.mxu0
        %v2498 = vadd.f32 0.0, %v2497
        %v2499 = vpop.f32.mrf.mxu0
        %2500 = vmatprep.mubr.f32.mxu0 0.0
        %2501 = vmatmul.mubr.f32.gmra.mxu0 %v2316
        %v2502 = vpop.f32.mrf.mxu0
        %v2503 = vadd.f32 0.0, %v2502
        %v2504 = vpop.f32.mrf.mxu0
        %2505 = vmatprep.mubr.f32.mxu0 0.0
        %2506 = vmatmul.mubr.f32.gmra.mxu0 %v2319
        %v2507 = vpop.f32.mrf.mxu0
        %v2508 = vadd.f32 0.0, %v2507
        %v2509 = vpop.f32.mrf.mxu0
        %2510 = vmatprep.mubr.f32.mxu0 0.0
        %2511 = vmatmul.mubr.f32.gmra.mxu0 %v2322
        %v2512 = vpop.f32.mrf.mxu0
        %v2513 = vadd.f32 0.0, %v2512
        %v2514 = vpop.f32.mrf.mxu0
        %2515 = vmatprep.mubr.f32.mxu0 0.0
        %2516 = vmatmul.mubr.f32.gmra.mxu0 %v2325
        %v2517 = vpop.f32.mrf.mxu0
        %v2518 = vadd.f32 0.0, %v2517
        %v2519 = vpop.f32.mrf.mxu0
        %2520 = vmatprep.mubr.f32.mxu0 0.0
        %2521 = vmatmul.mubr.f32.gmra.mxu0 %v2328
        %v2522 = vpop.f32.mrf.mxu0
        %v2523 = vadd.f32 0.0, %v2522
        %v2524 = vpop.f32.mrf.mxu0
        %2525 = vmatprep.mubr.f32.mxu0 0.0
        %2526 = vmatmul.mubr.f32.gmra.mxu0 %v2331
        %v2527 = vpop.f32.mrf.mxu0
        %v2528 = vadd.f32 0.0, %v2527
        %v2529 = vpop.f32.mrf.mxu0
        %2530 = vmatprep.mubr.f32.mxu0 0.0
        %2531 = vmatmul.mubr.f32.gmra.mxu0 %v2334
        %v2532 = vpop.f32.mrf.mxu0
        %v2533 = vadd.f32 0.0, %v2532
        %v2534 = vpop.f32.mrf.mxu0
        %2535 = vmatprep.mubr.f32.mxu0 0.0
        %2536 = vmatmul.mubr.f32.gmra.mxu0 %v2337
        %v2537 = vpop.f32.mrf.mxu0
        %v2538 = vadd.f32 0.0, %v2537
        %v2539 = vpop.f32.mrf.mxu0
        %2540 = vmatprep.mubr.f32.mxu0 0.0
        %2541 = vmatmul.mubr.f32.gmra.mxu0 %v2340
        %v2542 = vpop.f32.mrf.mxu0
        %v2543 = vadd.f32 0.0, %v2542
        %v2544 = vpop.f32.mrf.mxu0
        %2545 = vmatprep.mubr.f32.mxu0 0.0
        %2546 = vmatmul.mubr.f32.gmra.mxu0 %v2343
        %v2547 = vpop.f32.mrf.mxu0
        %v2548 = vadd.f32 0.0, %v2547
        %v2549 = vpop.f32.mrf.mxu0
        %2550 = vmatprep.mubr.f32.mxu0 0.0
        %2551 = vmatmul.mubr.f32.gmra.mxu0 %v2346
        %v2552 = vpop.f32.mrf.mxu0
        %v2553 = vadd.f32 0.0, %v2552
        %v2554 = vpop.f32.mrf.mxu0
        %2555 = vmatprep.mubr.f32.mxu0 0.0
        %2556 = vmatmul.mubr.f32.gmra.mxu0 %v2349
        %v2557 = vpop.f32.mrf.mxu0
        %v2558 = vadd.f32 0.0, %v2557
        %v2559 = vpop.f32.mrf.mxu0
        %2560 = vmatprep.mubr.f32.mxu0 0.0
        %2561 = vmatmul.mubr.f32.gmra.mxu0 %v2352
        %v2562 = vpop.f32.mrf.mxu0
        %v2563 = vadd.f32 0.0, %v2562
        %v2564 = vpop.f32.mrf.mxu0
        %2565 = vmatprep.mubr.f32.mxu0 0.0
        %2566 = vmatmul.mubr.f32.gmra.mxu0 %v2355
        %v2567 = vpop.f32.mrf.mxu0
        %v2568 = vadd.f32 0.0, %v2567
        %v2569 = vpop.f32.mrf.mxu0
        %2570 = vmatprep.mubr.f32.mxu0 0.0
        %2571 = vmatmul.mubr.f32.gmra.mxu0 %v2358
        %v2572 = vpop.f32.mrf.mxu0
        %v2573 = vadd.f32 0.0, %v2572
        %v2574 = vpop.f32.mrf.mxu0
        %2575 = vmatprep.mubr.f32.mxu0 0.0
        %2576 = vmatmul.mubr.f32.gmra.mxu0 %v2361
        %v2577 = vpop.f32.mrf.mxu0
        %v2578 = vadd.f32 0.0, %v2577
        %v2579 = vpop.f32.mrf.mxu0
        %2580 = vmatprep.mubr.f32.mxu0 0.0
        %2581 = vmatmul.mubr.f32.gmra.mxu0 %v2364
        %v2582 = vpop.f32.mrf.mxu0
        %v2583 = vadd.f32 0.0, %v2582
        %v2584 = vpop.f32.mrf.mxu0
        %2585 = vmatprep.mubr.f32.mxu0 0.0
        %2586 = vmatmul.mubr.f32.gmra.mxu0 %v2367
        %v2587 = vpop.f32.mrf.mxu0
        %v2588 = vadd.f32 0.0, %v2587
        %v2589 = vpop.f32.mrf.mxu0
        %2590 = vmatprep.mubr.f32.mxu0 0.0
        %2591 = vmatmul.mubr.f32.gmra.mxu0 %v2370
        %v2592 = vpop.f32.mrf.mxu0
        %v2593 = vadd.f32 0.0, %v2592
        %v2594 = vpop.f32.mrf.mxu0
        %2595 = vmatprep.mubr.f32.mxu0 0.0
        %2596 = vmatmul.mubr.f32.gmra.mxu0 %v2373
        %v2597 = vpop.f32.mrf.mxu0
        %v2598 = vadd.f32 0.0, %v2597
        %v2599 = vpop.f32.mrf.mxu0
        %2600 = vmatprep.mubr.f32.mxu0 0.0
        %2601 = vmatmul.mubr.f32.gmra.mxu0 %v2376
        %v2602 = vpop.f32.mrf.mxu0
        %v2603 = vadd.f32 0.0, %v2602
        %v2604 = vpop.f32.mrf.mxu0
        %2605 = vdwg.mxu0
        %v2606 = vadd.f32 %v2216, %v2448
        %v2607 = vadd.f32 %v2217, %v2453
        %v2608 = vadd.f32 %v2218, %v2458
        %v2609 = vadd.f32 %v2219, %v2463
        %v2610 = vadd.f32 %v2220, %v2468
        %v2611 = vadd.f32 %v2221, %v2473
        %v2612 = vadd.f32 %v2222, %v2478
        %v2613 = vadd.f32 %v2223, %v2483
        %v2614 = vadd.f32 %v2224, %v2488
        %v2615 = vadd.f32 %v2225, %v2493
        %v2616 = vadd.f32 %v2226, %v2498
        %v2617 = vadd.f32 %v2227, %v2503
        %v2618 = vadd.f32 %v2228, %v2508
        %v2619 = vadd.f32 %v2229, %v2513
        %v2620 = vadd.f32 %v2230, %v2518
        %v2621 = vadd.f32 %v2231, %v2523
        %v2622 = vadd.f32 %v2232, %v2528
        %v2623 = vadd.f32 %v2233, %v2533
        %v2624 = vadd.f32 %v2234, %v2538
        %v2625 = vadd.f32 %v2235, %v2543
        %v2626 = vadd.f32 %v2236, %v2548
        %v2627 = vadd.f32 %v2237, %v2553
        %v2628 = vadd.f32 %v2238, %v2558
        %v2629 = vadd.f32 %v2239, %v2563
        %v2630 = vadd.f32 %v2240, %v2568
        %v2631 = vadd.f32 %v2241, %v2573
        %v2632 = vadd.f32 %v2242, %v2578
        %v2633 = vadd.f32 %v2243, %v2583
        %v2634 = vadd.f32 %v2244, %v2588
        %v2635 = vadd.f32 %v2245, %v2593
        %v2636 = vadd.f32 %v2246, %v2598
        %v2637 = vadd.f32 %v2247, %v2603
        %s2638 = scalar_lea.vmem [#allocation2], 48
        %v2639 = vld [vmem:[%s2638] sm:$0xff]
        %v2640 = vld [vmem:[%s2638 + $0x8] sm:$0xff]
        %v2641 = vld [vmem:[%s2638 + $0x18] sm:$0xff]
        %v2642 = vld [vmem:[%s2638 + $0x20] sm:$0xff]
        %v2643 = vld [vmem:[%s2638 + $0x30] sm:$0xff]
        %v2644 = vld [vmem:[%s2638 + $0x38] sm:$0xff]
        %v2645 = vld [vmem:[%s2638 + $0x48] sm:$0xff]
        %v2646 = vld [vmem:[%s2638 + $0x50] sm:$0xff]
        %v2647 = vld [vmem:[%s2638 + $0x60] sm:$0xff]
        %v2648 = vld [vmem:[%s2638 + $0x68] sm:$0xff]
        %v2649 = vld [vmem:[%s2638 + $0x78] sm:$0xff]
        %v2650 = vld [vmem:[%s2638 + $0x80] sm:$0xff]
        %v2651 = vld [vmem:[%s2638 + $0x90] sm:$0xff]
        %v2652 = vld [vmem:[%s2638 + $0x98] sm:$0xff]
        %v2653 = vld [vmem:[%s2638 + $0xa8] sm:$0xff]
        %v2654 = vld [vmem:[%s2638 + $0xb0] sm:$0xff]
        %v2655 = vld [vmem:[%s2638 + $0xc0] sm:$0xff]
        %v2656 = vld [vmem:[%s2638 + $0xc8] sm:$0xff]
        %v2657 = vld [vmem:[%s2638 + $0xd8] sm:$0xff]
        %v2658 = vld [vmem:[%s2638 + $0xe0] sm:$0xff]
        %v2659 = vld [vmem:[%s2638 + $0xf0] sm:$0xff]
        %v2660 = vld [vmem:[%s2638 + $0xf8] sm:$0xff]
        %v2661 = vld [vmem:[%s2638 + $0x108] sm:$0xff]
        %v2662 = vld [vmem:[%s2638 + $0x110] sm:$0xff]
        %v2663 = vld [vmem:[%s2638 + $0x120] sm:$0xff]
        %v2664 = vld [vmem:[%s2638 + $0x128] sm:$0xff]
        %v2665 = vld [vmem:[%s2638 + $0x138] sm:$0xff]
        %v2666 = vld [vmem:[%s2638 + $0x140] sm:$0xff]
        %v2667 = vld [vmem:[%s2638 + $0x150] sm:$0xff]
        %v2668 = vld [vmem:[%s2638 + $0x158] sm:$0xff]
        %v2669 = vld [vmem:[%s2638 + $0x168] sm:$0xff]
        %v2670 = vld [vmem:[%s2638 + $0x170] sm:$0xff]
        %s2671 = scalar_lea.vmem %s1, 24
        %v2672 = vld [vmem:[%s2671] sm:$0x7]
        %v2674 = vsel %vm169, %v2639, 0
        %v2677 = vsel %vm169, %v2640, 0
        %v2680 = vsel %vm169, %v2641, 0
        %v2683 = vsel %vm169, %v2642, 0
        %v2686 = vsel %vm169, %v2643, 0
        %v2689 = vsel %vm169, %v2644, 0
        %v2692 = vsel %vm169, %v2645, 0
        %v2695 = vsel %vm169, %v2646, 0
        %v2698 = vsel %vm169, %v2647, 0
        %v2701 = vsel %vm169, %v2648, 0
        %v2704 = vsel %vm169, %v2649, 0
        %v2707 = vsel %vm169, %v2650, 0
        %v2710 = vsel %vm169, %v2651, 0
        %v2713 = vsel %vm169, %v2652, 0
        %v2716 = vsel %vm169, %v2653, 0
        %v2719 = vsel %vm169, %v2654, 0
        %v2722 = vsel %vm169, %v2655, 0
        %v2725 = vsel %vm169, %v2656, 0
        %v2728 = vsel %vm169, %v2657, 0
        %v2731 = vsel %vm169, %v2658, 0
        %v2734 = vsel %vm169, %v2659, 0
        %v2737 = vsel %vm169, %v2660, 0
        %v2740 = vsel %vm169, %v2661, 0
        %v2743 = vsel %vm169, %v2662, 0
        %v2746 = vsel %vm169, %v2663, 0
        %v2749 = vsel %vm169, %v2664, 0
        %v2752 = vsel %vm169, %v2665, 0
        %v2755 = vsel %vm169, %v2666, 0
        %v2758 = vsel %vm169, %v2667, 0
        %v2761 = vsel %vm169, %v2668, 0
        %v2764 = vsel %vm169, %v2669, 0
        %v2767 = vsel %vm169, %v2670, 0
        %v2770 = vsel %vm427, %v2672, 0
        %2772 = vmatprep.subr.mxu0 0.0
        %2773 = vmatpush1.msra.mxu0 0.0
        %2774 = vmatprep.subr.mxu0 0.0
        %2775 = vmatpush1.msra.mxu0 0.0
        %2776 = vmatprep.subr.mxu0 0.0
        %2777 = vmatpush1.msra.mxu0 0.0
        %2778 = vmatprep.subr.mxu0 0.0
        %2779 = vmatpush1.msra.mxu0 0.0
        %2780 = vmatprep.subr.mxu0 0.0
        %2781 = vmatpush1.msra.mxu0 0.0
        %2782 = vmatprep.subr.mxu0 0.0
        %2783 = vmatpush1.msra.mxu0 0.0
        %2784 = vmatprep.subr.mxu0 0.0
        %2785 = vmatpush1.msra.mxu0 0.0
        %2786 = vmatprep.subr.mxu0 0.0
        %2787 = vmatpush1.msra.mxu0 0.0
        %2788 = vmatprep.subr.mxu0 0.0
        %2789 = vmatpush1.msra.mxu0 0.0
        %2790 = vmatprep.subr.mxu0 0.0
        %2791 = vmatpush1.msra.mxu0 0.0
        %2792 = vmatprep.subr.mxu0 0.0
        %2793 = vmatpush1.msra.mxu0 0.0
        %2794 = vmatprep.subr.mxu0 0.0
        %2795 = vmatpush1.msra.mxu0 0.0
        %2796 = vmatprep.subr.mxu0 0.0
        %2797 = vmatpush1.msra.mxu0 0.0
        %2798 = vmatprep.subr.mxu0 0.0
        %2799 = vmatpush1.msra.mxu0 0.0
        %2800 = vmatprep.subr.mxu0 0.0
        %2801 = vmatpush1.msra.mxu0 0.0
        %2802 = vmatprep.subr.mxu0 0.0
        %2803 = vmatpush1.msra.mxu0 %v2770
        %2804 = vmatprep.subr.mxu0 0.0
        %2805 = vmatpush2.msra.mxu0 0.0
        %2806 = vmatprep.subr.mxu0 0.0
        %2807 = vmatpush2.msra.mxu0 0.0
        %2808 = vmatprep.subr.mxu0 0.0
        %2809 = vmatpush2.msra.mxu0 0.0
        %2810 = vmatprep.subr.mxu0 0.0
        %2811 = vmatpush2.msra.mxu0 0.0
        %2812 = vmatprep.subr.mxu0 0.0
        %2813 = vmatpush2.msra.mxu0 0.0
        %2814 = vmatprep.subr.mxu0 0.0
        %2815 = vmatpush2.msra.mxu0 0.0
        %2816 = vmatprep.subr.mxu0 0.0
        %2817 = vmatpush2.msra.mxu0 0.0
        %2818 = vmatprep.subr.mxu0 0.0
        %2819 = vmatpush2.msra.mxu0 0.0
        %2820 = vmatprep.subr.mxu0 0.0
        %2821 = vmatpush2.msra.mxu0 0.0
        %2822 = vmatprep.subr.mxu0 0.0
        %2823 = vmatpush2.msra.mxu0 0.0
        %2824 = vmatprep.subr.mxu0 0.0
        %2825 = vmatpush2.msra.mxu0 0.0
        %2826 = vmatprep.subr.mxu0 0.0
        %2827 = vmatpush2.msra.mxu0 0.0
        %2828 = vmatprep.subr.mxu0 0.0
        %2829 = vmatpush2.msra.mxu0 0.0
        %2830 = vmatprep.subr.mxu0 0.0
        %2831 = vmatpush2.msra.mxu0 0.0
        %2832 = vmatprep.subr.mxu0 0.0
        %2833 = vmatpush2.msra.mxu0 0.0
        %2834 = vmatprep.subr.mxu0 0.0
        %2835 = vmatpush2.msra.mxu0 0.0
        %2836 = vmatprep.mubr.f32.mxu0 0.0
        %2837 = vmatmul.mubr.f32.gmra.mxu0 %v2674
        %v2838 = vpop.f32.mrf.mxu0
        %v2839 = vadd.f32 0.0, %v2838
        %v2840 = vpop.f32.mrf.mxu0
        %2841 = vmatprep.mubr.f32.mxu0 0.0
        %2842 = vmatmul.mubr.f32.gmra.mxu0 %v2677
        %v2843 = vpop.f32.mrf.mxu0
        %v2844 = vadd.f32 0.0, %v2843
        %v2845 = vpop.f32.mrf.mxu0
        %2846 = vmatprep.mubr.f32.mxu0 0.0
        %2847 = vmatmul.mubr.f32.gmra.mxu0 %v2680
        %v2848 = vpop.f32.mrf.mxu0
        %v2849 = vadd.f32 0.0, %v2848
        %v2850 = vpop.f32.mrf.mxu0
        %2851 = vmatprep.mubr.f32.mxu0 0.0
        %2852 = vmatmul.mubr.f32.gmra.mxu0 %v2683
        %v2853 = vpop.f32.mrf.mxu0
        %v2854 = vadd.f32 0.0, %v2853
        %v2855 = vpop.f32.mrf.mxu0
        %2856 = vmatprep.mubr.f32.mxu0 0.0
        %2857 = vmatmul.mubr.f32.gmra.mxu0 %v2686
        %v2858 = vpop.f32.mrf.mxu0
        %v2859 = vadd.f32 0.0, %v2858
        %v2860 = vpop.f32.mrf.mxu0
        %2861 = vmatprep.mubr.f32.mxu0 0.0
        %2862 = vmatmul.mubr.f32.gmra.mxu0 %v2689
        %v2863 = vpop.f32.mrf.mxu0
        %v2864 = vadd.f32 0.0, %v2863
        %v2865 = vpop.f32.mrf.mxu0
        %2866 = vmatprep.mubr.f32.mxu0 0.0
        %2867 = vmatmul.mubr.f32.gmra.mxu0 %v2692
        %v2868 = vpop.f32.mrf.mxu0
        %v2869 = vadd.f32 0.0, %v2868
        %v2870 = vpop.f32.mrf.mxu0
        %2871 = vmatprep.mubr.f32.mxu0 0.0
        %2872 = vmatmul.mubr.f32.gmra.mxu0 %v2695
        %v2873 = vpop.f32.mrf.mxu0
        %v2874 = vadd.f32 0.0, %v2873
        %v2875 = vpop.f32.mrf.mxu0
        %2876 = vmatprep.mubr.f32.mxu0 0.0
        %2877 = vmatmul.mubr.f32.gmra.mxu0 %v2698
        %v2878 = vpop.f32.mrf.mxu0
        %v2879 = vadd.f32 0.0, %v2878
        %v2880 = vpop.f32.mrf.mxu0
        %2881 = vmatprep.mubr.f32.mxu0 0.0
        %2882 = vmatmul.mubr.f32.gmra.mxu0 %v2701
        %v2883 = vpop.f32.mrf.mxu0
        %v2884 = vadd.f32 0.0, %v2883
        %v2885 = vpop.f32.mrf.mxu0
        %2886 = vmatprep.mubr.f32.mxu0 0.0
        %2887 = vmatmul.mubr.f32.gmra.mxu0 %v2704
        %v2888 = vpop.f32.mrf.mxu0
        %v2889 = vadd.f32 0.0, %v2888
        %v2890 = vpop.f32.mrf.mxu0
        %2891 = vmatprep.mubr.f32.mxu0 0.0
        %2892 = vmatmul.mubr.f32.gmra.mxu0 %v2707
        %v2893 = vpop.f32.mrf.mxu0
        %v2894 = vadd.f32 0.0, %v2893
        %v2895 = vpop.f32.mrf.mxu0
        %2896 = vmatprep.mubr.f32.mxu0 0.0
        %2897 = vmatmul.mubr.f32.gmra.mxu0 %v2710
        %v2898 = vpop.f32.mrf.mxu0
        %v2899 = vadd.f32 0.0, %v2898
        %v2900 = vpop.f32.mrf.mxu0
        %2901 = vmatprep.mubr.f32.mxu0 0.0
        %2902 = vmatmul.mubr.f32.gmra.mxu0 %v2713
        %v2903 = vpop.f32.mrf.mxu0
        %v2904 = vadd.f32 0.0, %v2903
        %v2905 = vpop.f32.mrf.mxu0
        %2906 = vmatprep.mubr.f32.mxu0 0.0
        %2907 = vmatmul.mubr.f32.gmra.mxu0 %v2716
        %v2908 = vpop.f32.mrf.mxu0
        %v2909 = vadd.f32 0.0, %v2908
        %v2910 = vpop.f32.mrf.mxu0
        %2911 = vmatprep.mubr.f32.mxu0 0.0
        %2912 = vmatmul.mubr.f32.gmra.mxu0 %v2719
        %v2913 = vpop.f32.mrf.mxu0
        %v2914 = vadd.f32 0.0, %v2913
        %v2915 = vpop.f32.mrf.mxu0
        %2916 = vmatprep.mubr.f32.mxu0 0.0
        %2917 = vmatmul.mubr.f32.gmra.mxu0 %v2722
        %v2918 = vpop.f32.mrf.mxu0
        %v2919 = vadd.f32 0.0, %v2918
        %v2920 = vpop.f32.mrf.mxu0
        %2921 = vmatprep.mubr.f32.mxu0 0.0
        %2922 = vmatmul.mubr.f32.gmra.mxu0 %v2725
        %v2923 = vpop.f32.mrf.mxu0
        %v2924 = vadd.f32 0.0, %v2923
        %v2925 = vpop.f32.mrf.mxu0
        %2926 = vmatprep.mubr.f32.mxu0 0.0
        %2927 = vmatmul.mubr.f32.gmra.mxu0 %v2728
        %v2928 = vpop.f32.mrf.mxu0
        %v2929 = vadd.f32 0.0, %v2928
        %v2930 = vpop.f32.mrf.mxu0
        %2931 = vmatprep.mubr.f32.mxu0 0.0
        %2932 = vmatmul.mubr.f32.gmra.mxu0 %v2731
        %v2933 = vpop.f32.mrf.mxu0
        %v2934 = vadd.f32 0.0, %v2933
        %v2935 = vpop.f32.mrf.mxu0
        %2936 = vmatprep.mubr.f32.mxu0 0.0
        %2937 = vmatmul.mubr.f32.gmra.mxu0 %v2734
        %v2938 = vpop.f32.mrf.mxu0
        %v2939 = vadd.f32 0.0, %v2938
        %v2940 = vpop.f32.mrf.mxu0
        %2941 = vmatprep.mubr.f32.mxu0 0.0
        %2942 = vmatmul.mubr.f32.gmra.mxu0 %v2737
        %v2943 = vpop.f32.mrf.mxu0
        %v2944 = vadd.f32 0.0, %v2943
        %v2945 = vpop.f32.mrf.mxu0
        %2946 = vmatprep.mubr.f32.mxu0 0.0
        %2947 = vmatmul.mubr.f32.gmra.mxu0 %v2740
        %v2948 = vpop.f32.mrf.mxu0
        %v2949 = vadd.f32 0.0, %v2948
        %v2950 = vpop.f32.mrf.mxu0
        %2951 = vmatprep.mubr.f32.mxu0 0.0
        %2952 = vmatmul.mubr.f32.gmra.mxu0 %v2743
        %v2953 = vpop.f32.mrf.mxu0
        %v2954 = vadd.f32 0.0, %v2953
        %v2955 = vpop.f32.mrf.mxu0
        %2956 = vmatprep.mubr.f32.mxu0 0.0
        %2957 = vmatmul.mubr.f32.gmra.mxu0 %v2746
        %v2958 = vpop.f32.mrf.mxu0
        %v2959 = vadd.f32 0.0, %v2958
        %v2960 = vpop.f32.mrf.mxu0
        %2961 = vmatprep.mubr.f32.mxu0 0.0
        %2962 = vmatmul.mubr.f32.gmra.mxu0 %v2749
        %v2963 = vpop.f32.mrf.mxu0
        %v2964 = vadd.f32 0.0, %v2963
        %v2965 = vpop.f32.mrf.mxu0
        %2966 = vmatprep.mubr.f32.mxu0 0.0
        %2967 = vmatmul.mubr.f32.gmra.mxu0 %v2752
        %v2968 = vpop.f32.mrf.mxu0
        %v2969 = vadd.f32 0.0, %v2968
        %v2970 = vpop.f32.mrf.mxu0
        %2971 = vmatprep.mubr.f32.mxu0 0.0
        %2972 = vmatmul.mubr.f32.gmra.mxu0 %v2755
        %v2973 = vpop.f32.mrf.mxu0
        %v2974 = vadd.f32 0.0, %v2973
        %v2975 = vpop.f32.mrf.mxu0
        %2976 = vmatprep.mubr.f32.mxu0 0.0
        %2977 = vmatmul.mubr.f32.gmra.mxu0 %v2758
        %v2978 = vpop.f32.mrf.mxu0
        %v2979 = vadd.f32 0.0, %v2978
        %v2980 = vpop.f32.mrf.mxu0
        %2981 = vmatprep.mubr.f32.mxu0 0.0
        %2982 = vmatmul.mubr.f32.gmra.mxu0 %v2761
        %v2983 = vpop.f32.mrf.mxu0
        %v2984 = vadd.f32 0.0, %v2983
        %v2985 = vpop.f32.mrf.mxu0
        %2986 = vmatprep.mubr.f32.mxu0 0.0
        %2987 = vmatmul.mubr.f32.gmra.mxu0 %v2764
        %v2988 = vpop.f32.mrf.mxu0
        %v2989 = vadd.f32 0.0, %v2988
        %v2990 = vpop.f32.mrf.mxu0
        %2991 = vmatprep.mubr.f32.mxu0 0.0
        %2992 = vmatmul.mubr.f32.gmra.mxu0 %v2767
        %v2993 = vpop.f32.mrf.mxu0
        %v2994 = vadd.f32 0.0, %v2993
        %v2995 = vpop.f32.mrf.mxu0
        %2996 = vdwg.mxu0
        %v2997 = vadd.f32 %v2606, %v2839
        %v2998 = vadd.f32 %v2607, %v2844
        %v2999 = vadd.f32 %v2608, %v2849
        %v3000 = vadd.f32 %v2609, %v2854
        %v3001 = vadd.f32 %v2610, %v2859
        %v3002 = vadd.f32 %v2611, %v2864
        %v3003 = vadd.f32 %v2612, %v2869
        %v3004 = vadd.f32 %v2613, %v2874
        %v3005 = vadd.f32 %v2614, %v2879
        %v3006 = vadd.f32 %v2615, %v2884
        %v3007 = vadd.f32 %v2616, %v2889
        %v3008 = vadd.f32 %v2617, %v2894
        %v3009 = vadd.f32 %v2618, %v2899
        %v3010 = vadd.f32 %v2619, %v2904
        %v3011 = vadd.f32 %v2620, %v2909
        %v3012 = vadd.f32 %v2621, %v2914
        %v3013 = vadd.f32 %v2622, %v2919
        %v3014 = vadd.f32 %v2623, %v2924
        %v3015 = vadd.f32 %v2624, %v2929
        %v3016 = vadd.f32 %v2625, %v2934
        %v3017 = vadd.f32 %v2626, %v2939
        %v3018 = vadd.f32 %v2627, %v2944
        %v3019 = vadd.f32 %v2628, %v2949
        %v3020 = vadd.f32 %v2629, %v2954
        %v3021 = vadd.f32 %v2630, %v2959
        %v3022 = vadd.f32 %v2631, %v2964
        %v3023 = vadd.f32 %v2632, %v2969
        %v3024 = vadd.f32 %v2633, %v2974
        %v3025 = vadd.f32 %v2634, %v2979
        %v3026 = vadd.f32 %v2635, %v2984
        %v3027 = vadd.f32 %v2636, %v2989
        %v3028 = vadd.f32 %v2637, %v2994
        %v3029 = vld [vmem:[%s2638 + $0x1] sm:$0xff]
        %v3030 = vld [vmem:[%s2638 + $0x9] sm:$0xff]
        %v3031 = vld [vmem:[%s2638 + $0x19] sm:$0xff]
        %v3032 = vld [vmem:[%s2638 + $0x21] sm:$0xff]
        %v3033 = vld [vmem:[%s2638 + $0x31] sm:$0xff]
        %v3034 = vld [vmem:[%s2638 + $0x39] sm:$0xff]
        %v3035 = vld [vmem:[%s2638 + $0x49] sm:$0xff]
        %v3036 = vld [vmem:[%s2638 + $0x51] sm:$0xff]
        %v3037 = vld [vmem:[%s2638 + $0x61] sm:$0xff]
        %v3038 = vld [vmem:[%s2638 + $0x69] sm:$0xff]
        %v3039 = vld [vmem:[%s2638 + $0x79] sm:$0xff]
        %v3040 = vld [vmem:[%s2638 + $0x81] sm:$0xff]
        %v3041 = vld [vmem:[%s2638 + $0x91] sm:$0xff]
        %v3042 = vld [vmem:[%s2638 + $0x99] sm:$0xff]
        %v3043 = vld [vmem:[%s2638 + $0xa9] sm:$0xff]
        %v3044 = vld [vmem:[%s2638 + $0xb1] sm:$0xff]
        %v3045 = vld [vmem:[%s2638 + $0xc1] sm:$0xff]
        %v3046 = vld [vmem:[%s2638 + $0xc9] sm:$0xff]
        %v3047 = vld [vmem:[%s2638 + $0xd9] sm:$0xff]
        %v3048 = vld [vmem:[%s2638 + $0xe1] sm:$0xff]
        %v3049 = vld [vmem:[%s2638 + $0xf1] sm:$0xff]
        %v3050 = vld [vmem:[%s2638 + $0xf9] sm:$0xff]
        %v3051 = vld [vmem:[%s2638 + $0x109] sm:$0xff]
        %v3052 = vld [vmem:[%s2638 + $0x111] sm:$0xff]
        %v3053 = vld [vmem:[%s2638 + $0x121] sm:$0xff]
        %v3054 = vld [vmem:[%s2638 + $0x129] sm:$0xff]
        %v3055 = vld [vmem:[%s2638 + $0x139] sm:$0xff]
        %v3056 = vld [vmem:[%s2638 + $0x141] sm:$0xff]
        %v3057 = vld [vmem:[%s2638 + $0x151] sm:$0xff]
        %v3058 = vld [vmem:[%s2638 + $0x159] sm:$0xff]
        %v3059 = vld [vmem:[%s2638 + $0x169] sm:$0xff]
        %v3060 = vld [vmem:[%s2638 + $0x171] sm:$0xff]
        %s3061 = scalar_lea.vmem %s1, 28
        %v3062 = vld [vmem:[%s3061] sm:$0x7]
        %v3064 = vsel %vm169, %v3029, 0
        %v3067 = vsel %vm169, %v3030, 0
        %v3070 = vsel %vm169, %v3031, 0
        %v3073 = vsel %vm169, %v3032, 0
        %v3076 = vsel %vm169, %v3033, 0
        %v3079 = vsel %vm169, %v3034, 0
        %v3082 = vsel %vm169, %v3035, 0
        %v3085 = vsel %vm169, %v3036, 0
        %v3088 = vsel %vm169, %v3037, 0
        %v3091 = vsel %vm169, %v3038, 0
        %v3094 = vsel %vm169, %v3039, 0
        %v3097 = vsel %vm169, %v3040, 0
        %v3100 = vsel %vm169, %v3041, 0
        %v3103 = vsel %vm169, %v3042, 0
        %v3106 = vsel %vm169, %v3043, 0
        %v3109 = vsel %vm169, %v3044, 0
        %v3112 = vsel %vm169, %v3045, 0
        %v3115 = vsel %vm169, %v3046, 0
        %v3118 = vsel %vm169, %v3047, 0
        %v3121 = vsel %vm169, %v3048, 0
        %v3124 = vsel %vm169, %v3049, 0
        %v3127 = vsel %vm169, %v3050, 0
        %v3130 = vsel %vm169, %v3051, 0
        %v3133 = vsel %vm169, %v3052, 0
        %v3136 = vsel %vm169, %v3053, 0
        %v3139 = vsel %vm169, %v3054, 0
        %v3142 = vsel %vm169, %v3055, 0
        %v3145 = vsel %vm169, %v3056, 0
        %v3148 = vsel %vm169, %v3057, 0
        %v3151 = vsel %vm169, %v3058, 0
        %v3154 = vsel %vm169, %v3059, 0
        %v3157 = vsel %vm169, %v3060, 0
        %v3160 = vsel %vm427, %v3062, 0
        %3162 = vmatprep.subr.mxu0 0.0
        %3163 = vmatpush1.msra.mxu0 0.0
        %3164 = vmatprep.subr.mxu0 0.0
        %3165 = vmatpush1.msra.mxu0 0.0
        %3166 = vmatprep.subr.mxu0 0.0
        %3167 = vmatpush1.msra.mxu0 0.0
        %3168 = vmatprep.subr.mxu0 0.0
        %3169 = vmatpush1.msra.mxu0 0.0
        %3170 = vmatprep.subr.mxu0 0.0
        %3171 = vmatpush1.msra.mxu0 0.0
        %3172 = vmatprep.subr.mxu0 0.0
        %3173 = vmatpush1.msra.mxu0 0.0
        %3174 = vmatprep.subr.mxu0 0.0
        %3175 = vmatpush1.msra.mxu0 0.0
        %3176 = vmatprep.subr.mxu0 0.0
        %3177 = vmatpush1.msra.mxu0 0.0
        %3178 = vmatprep.subr.mxu0 0.0
        %3179 = vmatpush1.msra.mxu0 0.0
        %3180 = vmatprep.subr.mxu0 0.0
        %3181 = vmatpush1.msra.mxu0 0.0
        %3182 = vmatprep.subr.mxu0 0.0
        %3183 = vmatpush1.msra.mxu0 0.0
        %3184 = vmatprep.subr.mxu0 0.0
        %3185 = vmatpush1.msra.mxu0 0.0
        %3186 = vmatprep.subr.mxu0 0.0
        %3187 = vmatpush1.msra.mxu0 0.0
        %3188 = vmatprep.subr.mxu0 0.0
        %3189 = vmatpush1.msra.mxu0 0.0
        %3190 = vmatprep.subr.mxu0 0.0
        %3191 = vmatpush1.msra.mxu0 0.0
        %3192 = vmatprep.subr.mxu0 0.0
        %3193 = vmatpush1.msra.mxu0 %v3160
        %3194 = vmatprep.subr.mxu0 0.0
        %3195 = vmatpush2.msra.mxu0 0.0
        %3196 = vmatprep.subr.mxu0 0.0
        %3197 = vmatpush2.msra.mxu0 0.0
        %3198 = vmatprep.subr.mxu0 0.0
        %3199 = vmatpush2.msra.mxu0 0.0
        %3200 = vmatprep.subr.mxu0 0.0
        %3201 = vmatpush2.msra.mxu0 0.0
        %3202 = vmatprep.subr.mxu0 0.0
        %3203 = vmatpush2.msra.mxu0 0.0
        %3204 = vmatprep.subr.mxu0 0.0
        %3205 = vmatpush2.msra.mxu0 0.0
        %3206 = vmatprep.subr.mxu0 0.0
        %3207 = vmatpush2.msra.mxu0 0.0
        %3208 = vmatprep.subr.mxu0 0.0
        %3209 = vmatpush2.msra.mxu0 0.0
        %3210 = vmatprep.subr.mxu0 0.0
        %3211 = vmatpush2.msra.mxu0 0.0
        %3212 = vmatprep.subr.mxu0 0.0
        %3213 = vmatpush2.msra.mxu0 0.0
        %3214 = vmatprep.subr.mxu0 0.0
        %3215 = vmatpush2.msra.mxu0 0.0
        %3216 = vmatprep.subr.mxu0 0.0
        %3217 = vmatpush2.msra.mxu0 0.0
        %3218 = vmatprep.subr.mxu0 0.0
        %3219 = vmatpush2.msra.mxu0 0.0
        %3220 = vmatprep.subr.mxu0 0.0
        %3221 = vmatpush2.msra.mxu0 0.0
        %3222 = vmatprep.subr.mxu0 0.0
        %3223 = vmatpush2.msra.mxu0 0.0
        %3224 = vmatprep.subr.mxu0 0.0
        %3225 = vmatpush2.msra.mxu0 0.0
        %3226 = vmatprep.mubr.f32.mxu0 0.0
        %3227 = vmatmul.mubr.f32.gmra.mxu0 %v3064
        %v3228 = vpop.f32.mrf.mxu0
        %v3229 = vadd.f32 0.0, %v3228
        %v3230 = vpop.f32.mrf.mxu0
        %3231 = vmatprep.mubr.f32.mxu0 0.0
        %3232 = vmatmul.mubr.f32.gmra.mxu0 %v3067
        %v3233 = vpop.f32.mrf.mxu0
        %v3234 = vadd.f32 0.0, %v3233
        %v3235 = vpop.f32.mrf.mxu0
        %3236 = vmatprep.mubr.f32.mxu0 0.0
        %3237 = vmatmul.mubr.f32.gmra.mxu0 %v3070
        %v3238 = vpop.f32.mrf.mxu0
        %v3239 = vadd.f32 0.0, %v3238
        %v3240 = vpop.f32.mrf.mxu0
        %3241 = vmatprep.mubr.f32.mxu0 0.0
        %3242 = vmatmul.mubr.f32.gmra.mxu0 %v3073
        %v3243 = vpop.f32.mrf.mxu0
        %v3244 = vadd.f32 0.0, %v3243
        %v3245 = vpop.f32.mrf.mxu0
        %3246 = vmatprep.mubr.f32.mxu0 0.0
        %3247 = vmatmul.mubr.f32.gmra.mxu0 %v3076
        %v3248 = vpop.f32.mrf.mxu0
        %v3249 = vadd.f32 0.0, %v3248
        %v3250 = vpop.f32.mrf.mxu0
        %3251 = vmatprep.mubr.f32.mxu0 0.0
        %3252 = vmatmul.mubr.f32.gmra.mxu0 %v3079
        %v3253 = vpop.f32.mrf.mxu0
        %v3254 = vadd.f32 0.0, %v3253
        %v3255 = vpop.f32.mrf.mxu0
        %3256 = vmatprep.mubr.f32.mxu0 0.0
        %3257 = vmatmul.mubr.f32.gmra.mxu0 %v3082
        %v3258 = vpop.f32.mrf.mxu0
        %v3259 = vadd.f32 0.0, %v3258
        %v3260 = vpop.f32.mrf.mxu0
        %3261 = vmatprep.mubr.f32.mxu0 0.0
        %3262 = vmatmul.mubr.f32.gmra.mxu0 %v3085
        %v3263 = vpop.f32.mrf.mxu0
        %v3264 = vadd.f32 0.0, %v3263
        %v3265 = vpop.f32.mrf.mxu0
        %3266 = vmatprep.mubr.f32.mxu0 0.0
        %3267 = vmatmul.mubr.f32.gmra.mxu0 %v3088
        %v3268 = vpop.f32.mrf.mxu0
        %v3269 = vadd.f32 0.0, %v3268
        %v3270 = vpop.f32.mrf.mxu0
        %3271 = vmatprep.mubr.f32.mxu0 0.0
        %3272 = vmatmul.mubr.f32.gmra.mxu0 %v3091
        %v3273 = vpop.f32.mrf.mxu0
        %v3274 = vadd.f32 0.0, %v3273
        %v3275 = vpop.f32.mrf.mxu0
        %3276 = vmatprep.mubr.f32.mxu0 0.0
        %3277 = vmatmul.mubr.f32.gmra.mxu0 %v3094
        %v3278 = vpop.f32.mrf.mxu0
        %v3279 = vadd.f32 0.0, %v3278
        %v3280 = vpop.f32.mrf.mxu0
        %3281 = vmatprep.mubr.f32.mxu0 0.0
        %3282 = vmatmul.mubr.f32.gmra.mxu0 %v3097
        %v3283 = vpop.f32.mrf.mxu0
        %v3284 = vadd.f32 0.0, %v3283
        %v3285 = vpop.f32.mrf.mxu0
        %3286 = vmatprep.mubr.f32.mxu0 0.0
        %3287 = vmatmul.mubr.f32.gmra.mxu0 %v3100
        %v3288 = vpop.f32.mrf.mxu0
        %v3289 = vadd.f32 0.0, %v3288
        %v3290 = vpop.f32.mrf.mxu0
        %3291 = vmatprep.mubr.f32.mxu0 0.0
        %3292 = vmatmul.mubr.f32.gmra.mxu0 %v3103
        %v3293 = vpop.f32.mrf.mxu0
        %v3294 = vadd.f32 0.0, %v3293
        %v3295 = vpop.f32.mrf.mxu0
        %3296 = vmatprep.mubr.f32.mxu0 0.0
        %3297 = vmatmul.mubr.f32.gmra.mxu0 %v3106
        %v3298 = vpop.f32.mrf.mxu0
        %v3299 = vadd.f32 0.0, %v3298
        %v3300 = vpop.f32.mrf.mxu0
        %3301 = vmatprep.mubr.f32.mxu0 0.0
        %3302 = vmatmul.mubr.f32.gmra.mxu0 %v3109
        %v3303 = vpop.f32.mrf.mxu0
        %v3304 = vadd.f32 0.0, %v3303
        %v3305 = vpop.f32.mrf.mxu0
        %3306 = vmatprep.mubr.f32.mxu0 0.0
        %3307 = vmatmul.mubr.f32.gmra.mxu0 %v3112
        %v3308 = vpop.f32.mrf.mxu0
        %v3309 = vadd.f32 0.0, %v3308
        %v3310 = vpop.f32.mrf.mxu0
        %3311 = vmatprep.mubr.f32.mxu0 0.0
        %3312 = vmatmul.mubr.f32.gmra.mxu0 %v3115
        %v3313 = vpop.f32.mrf.mxu0
        %v3314 = vadd.f32 0.0, %v3313
        %v3315 = vpop.f32.mrf.mxu0
        %3316 = vmatprep.mubr.f32.mxu0 0.0
        %3317 = vmatmul.mubr.f32.gmra.mxu0 %v3118
        %v3318 = vpop.f32.mrf.mxu0
        %v3319 = vadd.f32 0.0, %v3318
        %v3320 = vpop.f32.mrf.mxu0
        %3321 = vmatprep.mubr.f32.mxu0 0.0
        %3322 = vmatmul.mubr.f32.gmra.mxu0 %v3121
        %v3323 = vpop.f32.mrf.mxu0
        %v3324 = vadd.f32 0.0, %v3323
        %v3325 = vpop.f32.mrf.mxu0
        %3326 = vmatprep.mubr.f32.mxu0 0.0
        %3327 = vmatmul.mubr.f32.gmra.mxu0 %v3124
        %v3328 = vpop.f32.mrf.mxu0
        %v3329 = vadd.f32 0.0, %v3328
        %v3330 = vpop.f32.mrf.mxu0
        %3331 = vmatprep.mubr.f32.mxu0 0.0
        %3332 = vmatmul.mubr.f32.gmra.mxu0 %v3127
        %v3333 = vpop.f32.mrf.mxu0
        %v3334 = vadd.f32 0.0, %v3333
        %v3335 = vpop.f32.mrf.mxu0
        %3336 = vmatprep.mubr.f32.mxu0 0.0
        %3337 = vmatmul.mubr.f32.gmra.mxu0 %v3130
        %v3338 = vpop.f32.mrf.mxu0
        %v3339 = vadd.f32 0.0, %v3338
        %v3340 = vpop.f32.mrf.mxu0
        %3341 = vmatprep.mubr.f32.mxu0 0.0
        %3342 = vmatmul.mubr.f32.gmra.mxu0 %v3133
        %v3343 = vpop.f32.mrf.mxu0
        %v3344 = vadd.f32 0.0, %v3343
        %v3345 = vpop.f32.mrf.mxu0
        %3346 = vmatprep.mubr.f32.mxu0 0.0
        %3347 = vmatmul.mubr.f32.gmra.mxu0 %v3136
        %v3348 = vpop.f32.mrf.mxu0
        %v3349 = vadd.f32 0.0, %v3348
        %v3350 = vpop.f32.mrf.mxu0
        %3351 = vmatprep.mubr.f32.mxu0 0.0
        %3352 = vmatmul.mubr.f32.gmra.mxu0 %v3139
        %v3353 = vpop.f32.mrf.mxu0
        %v3354 = vadd.f32 0.0, %v3353
        %v3355 = vpop.f32.mrf.mxu0
        %3356 = vmatprep.mubr.f32.mxu0 0.0
        %3357 = vmatmul.mubr.f32.gmra.mxu0 %v3142
        %v3358 = vpop.f32.mrf.mxu0
        %v3359 = vadd.f32 0.0, %v3358
        %v3360 = vpop.f32.mrf.mxu0
        %3361 = vmatprep.mubr.f32.mxu0 0.0
        %3362 = vmatmul.mubr.f32.gmra.mxu0 %v3145
        %v3363 = vpop.f32.mrf.mxu0
        %v3364 = vadd.f32 0.0, %v3363
        %v3365 = vpop.f32.mrf.mxu0
        %3366 = vmatprep.mubr.f32.mxu0 0.0
        %3367 = vmatmul.mubr.f32.gmra.mxu0 %v3148
        %v3368 = vpop.f32.mrf.mxu0
        %v3369 = vadd.f32 0.0, %v3368
        %v3370 = vpop.f32.mrf.mxu0
        %3371 = vmatprep.mubr.f32.mxu0 0.0
        %3372 = vmatmul.mubr.f32.gmra.mxu0 %v3151
        %v3373 = vpop.f32.mrf.mxu0
        %v3374 = vadd.f32 0.0, %v3373
        %v3375 = vpop.f32.mrf.mxu0
        %3376 = vmatprep.mubr.f32.mxu0 0.0
        %3377 = vmatmul.mubr.f32.gmra.mxu0 %v3154
        %v3378 = vpop.f32.mrf.mxu0
        %v3379 = vadd.f32 0.0, %v3378
        %v3380 = vpop.f32.mrf.mxu0
        %3381 = vmatprep.mubr.f32.mxu0 0.0
        %3382 = vmatmul.mubr.f32.gmra.mxu0 %v3157
        %v3383 = vpop.f32.mrf.mxu0
        %v3384 = vadd.f32 0.0, %v3383
        %v3385 = vpop.f32.mrf.mxu0
        %3386 = vdwg.mxu0
        %v3387 = vadd.f32 %v2997, %v3229
        %v3388 = vadd.f32 %v2998, %v3234
        %v3389 = vadd.f32 %v2999, %v3239
        %v3390 = vadd.f32 %v3000, %v3244
        %v3391 = vadd.f32 %v3001, %v3249
        %v3392 = vadd.f32 %v3002, %v3254
        %v3393 = vadd.f32 %v3003, %v3259
        %v3394 = vadd.f32 %v3004, %v3264
        %v3395 = vadd.f32 %v3005, %v3269
        %v3396 = vadd.f32 %v3006, %v3274
        %v3397 = vadd.f32 %v3007, %v3279
        %v3398 = vadd.f32 %v3008, %v3284
        %v3399 = vadd.f32 %v3009, %v3289
        %v3400 = vadd.f32 %v3010, %v3294
        %v3401 = vadd.f32 %v3011, %v3299
        %v3402 = vadd.f32 %v3012, %v3304
        %v3403 = vadd.f32 %v3013, %v3309
        %v3404 = vadd.f32 %v3014, %v3314
        %v3405 = vadd.f32 %v3015, %v3319
        %v3406 = vadd.f32 %v3016, %v3324
        %v3407 = vadd.f32 %v3017, %v3329
        %v3408 = vadd.f32 %v3018, %v3334
        %v3409 = vadd.f32 %v3019, %v3339
        %v3410 = vadd.f32 %v3020, %v3344
        %v3411 = vadd.f32 %v3021, %v3349
        %v3412 = vadd.f32 %v3022, %v3354
        %v3413 = vadd.f32 %v3023, %v3359
        %v3414 = vadd.f32 %v3024, %v3364
        %v3415 = vadd.f32 %v3025, %v3369
        %v3416 = vadd.f32 %v3026, %v3374
        %v3417 = vadd.f32 %v3027, %v3379
        %v3418 = vadd.f32 %v3028, %v3384
        %v3419 = vld [vmem:[%s2638 + $0x2] sm:$0xff]
        %v3420 = vld [vmem:[%s2638 + $0xa] sm:$0xff]
        %v3421 = vld [vmem:[%s2638 + $0x1a] sm:$0xff]
        %v3422 = vld [vmem:[%s2638 + $0x22] sm:$0xff]
        %v3423 = vld [vmem:[%s2638 + $0x32] sm:$0xff]
        %v3424 = vld [vmem:[%s2638 + $0x3a] sm:$0xff]
        %v3425 = vld [vmem:[%s2638 + $0x4a] sm:$0xff]
        %v3426 = vld [vmem:[%s2638 + $0x52] sm:$0xff]
        %v3427 = vld [vmem:[%s2638 + $0x62] sm:$0xff]
        %v3428 = vld [vmem:[%s2638 + $0x6a] sm:$0xff]
        %v3429 = vld [vmem:[%s2638 + $0x7a] sm:$0xff]
        %v3430 = vld [vmem:[%s2638 + $0x82] sm:$0xff]
        %v3431 = vld [vmem:[%s2638 + $0x92] sm:$0xff]
        %v3432 = vld [vmem:[%s2638 + $0x9a] sm:$0xff]
        %v3433 = vld [vmem:[%s2638 + $0xaa] sm:$0xff]
        %v3434 = vld [vmem:[%s2638 + $0xb2] sm:$0xff]
        %v3435 = vld [vmem:[%s2638 + $0xc2] sm:$0xff]
        %v3436 = vld [vmem:[%s2638 + $0xca] sm:$0xff]
        %v3437 = vld [vmem:[%s2638 + $0xda] sm:$0xff]
        %v3438 = vld [vmem:[%s2638 + $0xe2] sm:$0xff]
        %v3439 = vld [vmem:[%s2638 + $0xf2] sm:$0xff]
        %v3440 = vld [vmem:[%s2638 + $0xfa] sm:$0xff]
        %v3441 = vld [vmem:[%s2638 + $0x10a] sm:$0xff]
        %v3442 = vld [vmem:[%s2638 + $0x112] sm:$0xff]
        %v3443 = vld [vmem:[%s2638 + $0x122] sm:$0xff]
        %v3444 = vld [vmem:[%s2638 + $0x12a] sm:$0xff]
        %v3445 = vld [vmem:[%s2638 + $0x13a] sm:$0xff]
        %v3446 = vld [vmem:[%s2638 + $0x142] sm:$0xff]
        %v3447 = vld [vmem:[%s2638 + $0x152] sm:$0xff]
        %v3448 = vld [vmem:[%s2638 + $0x15a] sm:$0xff]
        %v3449 = vld [vmem:[%s2638 + $0x16a] sm:$0xff]
        %v3450 = vld [vmem:[%s2638 + $0x172] sm:$0xff]
        %s3451 = scalar_lea.vmem %s1, 32
        %v3452 = vld [vmem:[%s3451] sm:$0x7]
        %v3454 = vsel %vm169, %v3419, 0
        %v3457 = vsel %vm169, %v3420, 0
        %v3460 = vsel %vm169, %v3421, 0
        %v3463 = vsel %vm169, %v3422, 0
        %v3466 = vsel %vm169, %v3423, 0
        %v3469 = vsel %vm169, %v3424, 0
        %v3472 = vsel %vm169, %v3425, 0
        %v3475 = vsel %vm169, %v3426, 0
        %v3478 = vsel %vm169, %v3427, 0
        %v3481 = vsel %vm169, %v3428, 0
        %v3484 = vsel %vm169, %v3429, 0
        %v3487 = vsel %vm169, %v3430, 0
        %v3490 = vsel %vm169, %v3431, 0
        %v3493 = vsel %vm169, %v3432, 0
        %v3496 = vsel %vm169, %v3433, 0
        %v3499 = vsel %vm169, %v3434, 0
        %v3502 = vsel %vm169, %v3435, 0
        %v3505 = vsel %vm169, %v3436, 0
        %v3508 = vsel %vm169, %v3437, 0
        %v3511 = vsel %vm169, %v3438, 0
        %v3514 = vsel %vm169, %v3439, 0
        %v3517 = vsel %vm169, %v3440, 0
        %v3520 = vsel %vm169, %v3441, 0
        %v3523 = vsel %vm169, %v3442, 0
        %v3526 = vsel %vm169, %v3443, 0
        %v3529 = vsel %vm169, %v3444, 0
        %v3532 = vsel %vm169, %v3445, 0
        %v3535 = vsel %vm169, %v3446, 0
        %v3538 = vsel %vm169, %v3447, 0
        %v3541 = vsel %vm169, %v3448, 0
        %v3544 = vsel %vm169, %v3449, 0
        %v3547 = vsel %vm169, %v3450, 0
        %v3550 = vsel %vm427, %v3452, 0
        %3552 = vmatprep.subr.mxu0 0.0
        %3553 = vmatpush1.msra.mxu0 0.0
        %3554 = vmatprep.subr.mxu0 0.0
        %3555 = vmatpush1.msra.mxu0 0.0
        %3556 = vmatprep.subr.mxu0 0.0
        %3557 = vmatpush1.msra.mxu0 0.0
        %3558 = vmatprep.subr.mxu0 0.0
        %3559 = vmatpush1.msra.mxu0 0.0
        %3560 = vmatprep.subr.mxu0 0.0
        %3561 = vmatpush1.msra.mxu0 0.0
        %3562 = vmatprep.subr.mxu0 0.0
        %3563 = vmatpush1.msra.mxu0 0.0
        %3564 = vmatprep.subr.mxu0 0.0
        %3565 = vmatpush1.msra.mxu0 0.0
        %3566 = vmatprep.subr.mxu0 0.0
        %3567 = vmatpush1.msra.mxu0 0.0
        %3568 = vmatprep.subr.mxu0 0.0
        %3569 = vmatpush1.msra.mxu0 0.0
        %3570 = vmatprep.subr.mxu0 0.0
        %3571 = vmatpush1.msra.mxu0 0.0
        %3572 = vmatprep.subr.mxu0 0.0
        %3573 = vmatpush1.msra.mxu0 0.0
        %3574 = vmatprep.subr.mxu0 0.0
        %3575 = vmatpush1.msra.mxu0 0.0
        %3576 = vmatprep.subr.mxu0 0.0
        %3577 = vmatpush1.msra.mxu0 0.0
        %3578 = vmatprep.subr.mxu0 0.0
        %3579 = vmatpush1.msra.mxu0 0.0
        %3580 = vmatprep.subr.mxu0 0.0
        %3581 = vmatpush1.msra.mxu0 0.0
        %3582 = vmatprep.subr.mxu0 0.0
        %3583 = vmatpush1.msra.mxu0 %v3550
        %3584 = vmatprep.subr.mxu0 0.0
        %3585 = vmatpush2.msra.mxu0 0.0
        %3586 = vmatprep.subr.mxu0 0.0
        %3587 = vmatpush2.msra.mxu0 0.0
        %3588 = vmatprep.subr.mxu0 0.0
        %3589 = vmatpush2.msra.mxu0 0.0
        %3590 = vmatprep.subr.mxu0 0.0
        %3591 = vmatpush2.msra.mxu0 0.0
        %3592 = vmatprep.subr.mxu0 0.0
        %3593 = vmatpush2.msra.mxu0 0.0
        %3594 = vmatprep.subr.mxu0 0.0
        %3595 = vmatpush2.msra.mxu0 0.0
        %3596 = vmatprep.subr.mxu0 0.0
        %3597 = vmatpush2.msra.mxu0 0.0
        %3598 = vmatprep.subr.mxu0 0.0
        %3599 = vmatpush2.msra.mxu0 0.0
        %3600 = vmatprep.subr.mxu0 0.0
        %3601 = vmatpush2.msra.mxu0 0.0
        %3602 = vmatprep.subr.mxu0 0.0
        %3603 = vmatpush2.msra.mxu0 0.0
        %3604 = vmatprep.subr.mxu0 0.0
        %3605 = vmatpush2.msra.mxu0 0.0
        %3606 = vmatprep.subr.mxu0 0.0
        %3607 = vmatpush2.msra.mxu0 0.0
        %3608 = vmatprep.subr.mxu0 0.0
        %3609 = vmatpush2.msra.mxu0 0.0
        %3610 = vmatprep.subr.mxu0 0.0
        %3611 = vmatpush2.msra.mxu0 0.0
        %3612 = vmatprep.subr.mxu0 0.0
        %3613 = vmatpush2.msra.mxu0 0.0
        %3614 = vmatprep.subr.mxu0 0.0
        %3615 = vmatpush2.msra.mxu0 0.0
        %3616 = vmatprep.mubr.f32.mxu0 0.0
        %3617 = vmatmul.mubr.f32.gmra.mxu0 %v3454
        %v3618 = vpop.f32.mrf.mxu0
        %v3619 = vadd.f32 0.0, %v3618
        %v3620 = vpop.f32.mrf.mxu0
        %3621 = vmatprep.mubr.f32.mxu0 0.0
        %3622 = vmatmul.mubr.f32.gmra.mxu0 %v3457
        %v3623 = vpop.f32.mrf.mxu0
        %v3624 = vadd.f32 0.0, %v3623
        %v3625 = vpop.f32.mrf.mxu0
        %3626 = vmatprep.mubr.f32.mxu0 0.0
        %3627 = vmatmul.mubr.f32.gmra.mxu0 %v3460
        %v3628 = vpop.f32.mrf.mxu0
        %v3629 = vadd.f32 0.0, %v3628
        %v3630 = vpop.f32.mrf.mxu0
        %3631 = vmatprep.mubr.f32.mxu0 0.0
        %3632 = vmatmul.mubr.f32.gmra.mxu0 %v3463
        %v3633 = vpop.f32.mrf.mxu0
        %v3634 = vadd.f32 0.0, %v3633
        %v3635 = vpop.f32.mrf.mxu0
        %3636 = vmatprep.mubr.f32.mxu0 0.0
        %3637 = vmatmul.mubr.f32.gmra.mxu0 %v3466
        %v3638 = vpop.f32.mrf.mxu0
        %v3639 = vadd.f32 0.0, %v3638
        %v3640 = vpop.f32.mrf.mxu0
        %3641 = vmatprep.mubr.f32.mxu0 0.0
        %3642 = vmatmul.mubr.f32.gmra.mxu0 %v3469
        %v3643 = vpop.f32.mrf.mxu0
        %v3644 = vadd.f32 0.0, %v3643
        %v3645 = vpop.f32.mrf.mxu0
        %3646 = vmatprep.mubr.f32.mxu0 0.0
        %3647 = vmatmul.mubr.f32.gmra.mxu0 %v3472
        %v3648 = vpop.f32.mrf.mxu0
        %v3649 = vadd.f32 0.0, %v3648
        %v3650 = vpop.f32.mrf.mxu0
        %3651 = vmatprep.mubr.f32.mxu0 0.0
        %3652 = vmatmul.mubr.f32.gmra.mxu0 %v3475
        %v3653 = vpop.f32.mrf.mxu0
        %v3654 = vadd.f32 0.0, %v3653
        %v3655 = vpop.f32.mrf.mxu0
        %3656 = vmatprep.mubr.f32.mxu0 0.0
        %3657 = vmatmul.mubr.f32.gmra.mxu0 %v3478
        %v3658 = vpop.f32.mrf.mxu0
        %v3659 = vadd.f32 0.0, %v3658
        %v3660 = vpop.f32.mrf.mxu0
        %3661 = vmatprep.mubr.f32.mxu0 0.0
        %3662 = vmatmul.mubr.f32.gmra.mxu0 %v3481
        %v3663 = vpop.f32.mrf.mxu0
        %v3664 = vadd.f32 0.0, %v3663
        %v3665 = vpop.f32.mrf.mxu0
        %3666 = vmatprep.mubr.f32.mxu0 0.0
        %3667 = vmatmul.mubr.f32.gmra.mxu0 %v3484
        %v3668 = vpop.f32.mrf.mxu0
        %v3669 = vadd.f32 0.0, %v3668
        %v3670 = vpop.f32.mrf.mxu0
        %3671 = vmatprep.mubr.f32.mxu0 0.0
        %3672 = vmatmul.mubr.f32.gmra.mxu0 %v3487
        %v3673 = vpop.f32.mrf.mxu0
        %v3674 = vadd.f32 0.0, %v3673
        %v3675 = vpop.f32.mrf.mxu0
        %3676 = vmatprep.mubr.f32.mxu0 0.0
        %3677 = vmatmul.mubr.f32.gmra.mxu0 %v3490
        %v3678 = vpop.f32.mrf.mxu0
        %v3679 = vadd.f32 0.0, %v3678
        %v3680 = vpop.f32.mrf.mxu0
        %3681 = vmatprep.mubr.f32.mxu0 0.0
        %3682 = vmatmul.mubr.f32.gmra.mxu0 %v3493
        %v3683 = vpop.f32.mrf.mxu0
        %v3684 = vadd.f32 0.0, %v3683
        %v3685 = vpop.f32.mrf.mxu0
        %3686 = vmatprep.mubr.f32.mxu0 0.0
        %3687 = vmatmul.mubr.f32.gmra.mxu0 %v3496
        %v3688 = vpop.f32.mrf.mxu0
        %v3689 = vadd.f32 0.0, %v3688
        %v3690 = vpop.f32.mrf.mxu0
        %3691 = vmatprep.mubr.f32.mxu0 0.0
        %3692 = vmatmul.mubr.f32.gmra.mxu0 %v3499
        %v3693 = vpop.f32.mrf.mxu0
        %v3694 = vadd.f32 0.0, %v3693
        %v3695 = vpop.f32.mrf.mxu0
        %3696 = vmatprep.mubr.f32.mxu0 0.0
        %3697 = vmatmul.mubr.f32.gmra.mxu0 %v3502
        %v3698 = vpop.f32.mrf.mxu0
        %v3699 = vadd.f32 0.0, %v3698
        %v3700 = vpop.f32.mrf.mxu0
        %3701 = vmatprep.mubr.f32.mxu0 0.0
        %3702 = vmatmul.mubr.f32.gmra.mxu0 %v3505
        %v3703 = vpop.f32.mrf.mxu0
        %v3704 = vadd.f32 0.0, %v3703
        %v3705 = vpop.f32.mrf.mxu0
        %3706 = vmatprep.mubr.f32.mxu0 0.0
        %3707 = vmatmul.mubr.f32.gmra.mxu0 %v3508
        %v3708 = vpop.f32.mrf.mxu0
        %v3709 = vadd.f32 0.0, %v3708
        %v3710 = vpop.f32.mrf.mxu0
        %3711 = vmatprep.mubr.f32.mxu0 0.0
        %3712 = vmatmul.mubr.f32.gmra.mxu0 %v3511
        %v3713 = vpop.f32.mrf.mxu0
        %v3714 = vadd.f32 0.0, %v3713
        %v3715 = vpop.f32.mrf.mxu0
        %3716 = vmatprep.mubr.f32.mxu0 0.0
        %3717 = vmatmul.mubr.f32.gmra.mxu0 %v3514
        %v3718 = vpop.f32.mrf.mxu0
        %v3719 = vadd.f32 0.0, %v3718
        %v3720 = vpop.f32.mrf.mxu0
        %3721 = vmatprep.mubr.f32.mxu0 0.0
        %3722 = vmatmul.mubr.f32.gmra.mxu0 %v3517
        %v3723 = vpop.f32.mrf.mxu0
        %v3724 = vadd.f32 0.0, %v3723
        %v3725 = vpop.f32.mrf.mxu0
        %3726 = vmatprep.mubr.f32.mxu0 0.0
        %3727 = vmatmul.mubr.f32.gmra.mxu0 %v3520
        %v3728 = vpop.f32.mrf.mxu0
        %v3729 = vadd.f32 0.0, %v3728
        %v3730 = vpop.f32.mrf.mxu0
        %3731 = vmatprep.mubr.f32.mxu0 0.0
        %3732 = vmatmul.mubr.f32.gmra.mxu0 %v3523
        %v3733 = vpop.f32.mrf.mxu0
        %v3734 = vadd.f32 0.0, %v3733
        %v3735 = vpop.f32.mrf.mxu0
        %3736 = vmatprep.mubr.f32.mxu0 0.0
        %3737 = vmatmul.mubr.f32.gmra.mxu0 %v3526
        %v3738 = vpop.f32.mrf.mxu0
        %v3739 = vadd.f32 0.0, %v3738
        %v3740 = vpop.f32.mrf.mxu0
        %3741 = vmatprep.mubr.f32.mxu0 0.0
        %3742 = vmatmul.mubr.f32.gmra.mxu0 %v3529
        %v3743 = vpop.f32.mrf.mxu0
        %v3744 = vadd.f32 0.0, %v3743
        %v3745 = vpop.f32.mrf.mxu0
        %3746 = vmatprep.mubr.f32.mxu0 0.0
        %3747 = vmatmul.mubr.f32.gmra.mxu0 %v3532
        %v3748 = vpop.f32.mrf.mxu0
        %v3749 = vadd.f32 0.0, %v3748
        %v3750 = vpop.f32.mrf.mxu0
        %3751 = vmatprep.mubr.f32.mxu0 0.0
        %3752 = vmatmul.mubr.f32.gmra.mxu0 %v3535
        %v3753 = vpop.f32.mrf.mxu0
        %v3754 = vadd.f32 0.0, %v3753
        %v3755 = vpop.f32.mrf.mxu0
        %3756 = vmatprep.mubr.f32.mxu0 0.0
        %3757 = vmatmul.mubr.f32.gmra.mxu0 %v3538
        %v3758 = vpop.f32.mrf.mxu0
        %v3759 = vadd.f32 0.0, %v3758
        %v3760 = vpop.f32.mrf.mxu0
        %3761 = vmatprep.mubr.f32.mxu0 0.0
        %3762 = vmatmul.mubr.f32.gmra.mxu0 %v3541
        %v3763 = vpop.f32.mrf.mxu0
        %v3764 = vadd.f32 0.0, %v3763
        %v3765 = vpop.f32.mrf.mxu0
        %3766 = vmatprep.mubr.f32.mxu0 0.0
        %3767 = vmatmul.mubr.f32.gmra.mxu0 %v3544
        %v3768 = vpop.f32.mrf.mxu0
        %v3769 = vadd.f32 0.0, %v3768
        %v3770 = vpop.f32.mrf.mxu0
        %3771 = vmatprep.mubr.f32.mxu0 0.0
        %3772 = vmatmul.mubr.f32.gmra.mxu0 %v3547
        %v3773 = vpop.f32.mrf.mxu0
        %v3774 = vadd.f32 0.0, %v3773
        %v3775 = vpop.f32.mrf.mxu0
        %3776 = vdwg.mxu0
        %v3777 = vadd.f32 %v3387, %v3619
        %v3778 = vadd.f32 %v3388, %v3624
        %v3779 = vadd.f32 %v3389, %v3629
        %v3780 = vadd.f32 %v3390, %v3634
        %v3781 = vadd.f32 %v3391, %v3639
        %v3782 = vadd.f32 %v3392, %v3644
        %v3783 = vadd.f32 %v3393, %v3649
        %v3784 = vadd.f32 %v3394, %v3654
        %v3785 = vadd.f32 %v3395, %v3659
        %v3786 = vadd.f32 %v3396, %v3664
        %v3787 = vadd.f32 %v3397, %v3669
        %v3788 = vadd.f32 %v3398, %v3674
        %v3789 = vadd.f32 %v3399, %v3679
        %v3790 = vadd.f32 %v3400, %v3684
        %v3791 = vadd.f32 %v3401, %v3689
        %v3792 = vadd.f32 %v3402, %v3694
        %v3793 = vadd.f32 %v3403, %v3699
        %v3794 = vadd.f32 %v3404, %v3704
        %v3795 = vadd.f32 %v3405, %v3709
        %v3796 = vadd.f32 %v3406, %v3714
        %v3797 = vadd.f32 %v3407, %v3719
        %v3798 = vadd.f32 %v3408, %v3724
        %v3799 = vadd.f32 %v3409, %v3729
        %v3800 = vadd.f32 %v3410, %v3734
        %v3801 = vadd.f32 %v3411, %v3739
        %v3802 = vadd.f32 %v3412, %v3744
        %v3803 = vadd.f32 %v3413, %v3749
        %v3804 = vadd.f32 %v3414, %v3754
        %v3805 = vadd.f32 %v3415, %v3759
        %v3806 = vadd.f32 %v3416, %v3764
        %v3807 = vadd.f32 %v3417, %v3769
        %v3808 = vadd.f32 %v3418, %v3774
        %v3809 = vmax.f32 %v3777, 0.0
        %v3810 = vmax.f32 %v3778, 0.0
        %v3811 = vmax.f32 %v3779, 0.0
        %v3812 = vmax.f32 %v3780, 0.0
        %v3813 = vmax.f32 %v3781, 0.0
        %v3814 = vmax.f32 %v3782, 0.0
        %v3815 = vmax.f32 %v3783, 0.0
        %v3816 = vmax.f32 %v3784, 0.0
        %v3817 = vmax.f32 %v3785, 0.0
        %v3818 = vmax.f32 %v3786, 0.0
        %v3819 = vmax.f32 %v3787, 0.0
        %v3820 = vmax.f32 %v3788, 0.0
        %v3821 = vmax.f32 %v3789, 0.0
        %v3822 = vmax.f32 %v3790, 0.0
        %v3823 = vmax.f32 %v3791, 0.0
        %v3824 = vmax.f32 %v3792, 0.0
        %v3825 = vmax.f32 %v3793, 0.0
        %v3826 = vmax.f32 %v3794, 0.0
        %v3827 = vmax.f32 %v3795, 0.0
        %v3828 = vmax.f32 %v3796, 0.0
        %v3829 = vmax.f32 %v3797, 0.0
        %v3830 = vmax.f32 %v3798, 0.0
        %v3831 = vmax.f32 %v3799, 0.0
        %v3832 = vmax.f32 %v3800, 0.0
        %v3833 = vmax.f32 %v3801, 0.0
        %v3834 = vmax.f32 %v3802, 0.0
        %v3835 = vmax.f32 %v3803, 0.0
        %v3836 = vmax.f32 %v3804, 0.0
        %v3837 = vmax.f32 %v3805, 0.0
        %v3838 = vmax.f32 %v3806, 0.0
        %v3839 = vmax.f32 %v3807, 0.0
        %v3840 = vmax.f32 %v3808, 0.0
        %vm3841 = vcmask 261120
        %3842 = vst.msk [vmem:[%s163] sm:$0xff] %vm3841, %v3809
        %3843 = vst.msk [vmem:[%s163 + $0x8] sm:$0xff] %vm3841, %v3810
        %3844 = vst.msk [vmem:[%s163 + $0x10] sm:$0xff] %vm3841, %v3811
        %3845 = vst.msk [vmem:[%s163 + $0x18] sm:$0xff] %vm3841, %v3812
        %3846 = vst.msk [vmem:[%s163 + $0x20] sm:$0xff] %vm3841, %v3813
        %3847 = vst.msk [vmem:[%s163 + $0x28] sm:$0xff] %vm3841, %v3814
        %3848 = vst.msk [vmem:[%s163 + $0x30] sm:$0xff] %vm3841, %v3815
        %3849 = vst.msk [vmem:[%s163 + $0x38] sm:$0xff] %vm3841, %v3816
        %3850 = vst.msk [vmem:[%s163 + $0x40] sm:$0xff] %vm3841, %v3817
        %3851 = vst.msk [vmem:[%s163 + $0x48] sm:$0xff] %vm3841, %v3818
        %3852 = vst.msk [vmem:[%s163 + $0x50] sm:$0xff] %vm3841, %v3819
        %3853 = vst.msk [vmem:[%s163 + $0x58] sm:$0xff] %vm3841, %v3820
        %3854 = vst.msk [vmem:[%s163 + $0x60] sm:$0xff] %vm3841, %v3821
        %3855 = vst.msk [vmem:[%s163 + $0x68] sm:$0xff] %vm3841, %v3822
        %3856 = vst.msk [vmem:[%s163 + $0x70] sm:$0xff] %vm3841, %v3823
        %3857 = vst.msk [vmem:[%s163 + $0x78] sm:$0xff] %vm3841, %v3824
        %3858 = vst.msk [vmem:[%s163 + $0x80] sm:$0xff] %vm3841, %v3825
        %3859 = vst.msk [vmem:[%s163 + $0x88] sm:$0xff] %vm3841, %v3826
        %3860 = vst.msk [vmem:[%s163 + $0x90] sm:$0xff] %vm3841, %v3827
        %3861 = vst.msk [vmem:[%s163 + $0x98] sm:$0xff] %vm3841, %v3828
        %3862 = vst.msk [vmem:[%s163 + $0xa0] sm:$0xff] %vm3841, %v3829
        %3863 = vst.msk [vmem:[%s163 + $0xa8] sm:$0xff] %vm3841, %v3830
        %3864 = vst.msk [vmem:[%s163 + $0xb0] sm:$0xff] %vm3841, %v3831
        %3865 = vst.msk [vmem:[%s163 + $0xb8] sm:$0xff] %vm3841, %v3832
        %3866 = vst.msk [vmem:[%s163 + $0xc0] sm:$0xff] %vm3841, %v3833
        %3867 = vst.msk [vmem:[%s163 + $0xc8] sm:$0xff] %vm3841, %v3834
        %3868 = vst.msk [vmem:[%s163 + $0xd0] sm:$0xff] %vm3841, %v3835
        %3869 = vst.msk [vmem:[%s163 + $0xd8] sm:$0xff] %vm3841, %v3836
        %3870 = vst.msk [vmem:[%s163 + $0xe0] sm:$0xff] %vm3841, %v3837
        %3871 = vst.msk [vmem:[%s163 + $0xe8] sm:$0xff] %vm3841, %v3838
        %3872 = vst.msk [vmem:[%s163 + $0xf0] sm:$0xff] %vm3841, %v3839
        %3873 = vst.msk [vmem:[%s163 + $0xf8] sm:$0xff] %vm3841, %v3840
        %s3874 = sand.u32 %s93, 1
        %s3875 = scalar_lea.sflag [#allocation4], %s3874
        %s3876 = sand.u32 %s93, 1
        %s3877 = smul.addr %s3876, 256
        %s3878 = scalar_lea.vmem [#allocation3], %s3877
        // Predicated region
        $region33: #{tpu_custom_call.1} parent=31 // pred_check
          %p3879 = pneg %p103
        $region34: #{tpu_custom_call.1} parent=31 // pred_check_branch
          %3881 = sbr.rel (%p3879) target = $region36
        $region35: #{tpu_custom_call.1} parent=31 // pred_region
          %s3883 = ssub.s32 4096, 4096
          %3884 = vsyncadd %s3875, %s3883
          %s3885 = smul.addr %s17, 32
          %s3886 = smul.addr %s3885, 128
          %s3887 = scalar_lea.hbm %s3, %s3886
          %s3888 = sshll.u32 %s3878, 4
          %s3889 = int_to_ptr.vmem [resolvable:$true] %s3888
          %3894 = dma.vmem_to_hbm [thread:$0]  %s3889, 4096, %s3887, %s3875, 128, 128, 8
        $region36: #{tpu_custom_call.1} parent=31 // pred_fallthru
          _
      $region32: #{tpu_custom_call.1} parent=5 // pred_fallthru
        _
      %p3895 = scmp.le.s32.totalorder 2, %s12
      // Predicated region
      $region37: #{tpu_custom_call.1} parent=5 // pred_check
        %p3896 = pneg %p3895
      $region38: #{tpu_custom_call.1} parent=5 // pred_check_branch
        %3898 = sbr.rel (%p3896) target = $region40
      $region39: #{tpu_custom_call.1} parent=5 // pred_region
        %s3899 = ssub.s32 %s12, 2
        // Predicated region
        $region41: #{tpu_custom_call.1} parent=39 // pred_check
          %p3900 = pneg %p109
        $region42: #{tpu_custom_call.1} parent=39 // pred_check_branch
          %3902 = sbr.rel (%p3900) target = $region44
        $region43: #{tpu_custom_call.1} parent=39 // pred_region
          %s3903 = sand.u32 %s94, 1
          %s3904 = scalar_lea.sflag [#allocation4], %s3903
          %s3905 = sand.u32 %s94, 1
          %s3906 = smul.addr %s3905, 256
          %s3907 = scalar_lea.vmem [#allocation3], %s3906
          %3908 = dma.done %s3904, 4096
        $region44: #{tpu_custom_call.1} parent=39 // pred_fallthru
          _
      $region40: #{tpu_custom_call.1} parent=5 // pred_fallthru
        _
    $region6: #{tpu_custom_call.1} parent=1 // loop_footer
      %s16 = sadd.s32 1, %s12
    $region7: #{tpu_custom_call.1} parent=1 // loop_footer_branch
      %11 = sbr.rel target = $region3
    $region8: #{tpu_custom_call.1} parent=1 // loop_exit
      _
    %3909 = vsyncpa [#allocation4], 1
    %s3910 = scalar_lea.sflag [#allocation4], 1
    %3911 = vsyncpa %s3910, 1

</llo_original>
